<compile_context>
chip_gen: v7x
topology: tpu7x:2x2x1
jax: 0.10.0
libtpu: 0.0.40
codegen_flags: <defaults>
</compile_context>

<pallas_src>
import functools

import jax
import jax.numpy as jnp
from jax.experimental import pallas as pl
from jax.experimental.pallas import tpu as pltpu


# ----------------------------------------------------------------------------
# Pallas kernels
# ----------------------------------------------------------------------------
def _fused_single_kernel(p_ref, w_ref, g_ref, beta_ref, fm_ref, o_ref, *,
                         eps, neg_slope):
    """Single-shot: conv GEMM + fm add + folded BN + LeakyReLU."""
    y = jnp.dot(p_ref[...], w_ref[...],
                preferred_element_type=jnp.float32) + fm_ref[...]
    # Training-mode BatchNorm: per-channel stats over rows (= N*OH*OW).
    mean = jnp.mean(y, axis=0, keepdims=True)
    var = jnp.mean(jnp.square(y - mean), axis=0, keepdims=True)
    scale = g_ref[...] * jax.lax.rsqrt(var + eps)     # rsqrt -> EUP (free slot)
    shift = beta_ref[...] - mean * scale
    y_bn = y * scale + shift
    o_ref[...] = jnp.where(y_bn >= 0.0, y_bn, neg_slope * y_bn)


def _fused_tiled_kernel(p_ref, w_ref, g_ref, beta_ref, fm_ref, o_ref, *,
                        eps, neg_slope):
    """Grid = (channel-split [parallel], K-tiles [arbitrary]).

    Accumulates directly into the VMEM-resident output block (its block index
    is constant along k), then runs the fused epilogue at the last k step.
    """
    k = pl.program_id(1)

    @pl.when(k == 0)
    def _():
        o_ref[...] = jnp.zeros_like(o_ref)

    o_ref[...] += jnp.dot(p_ref[...], w_ref[...],
                          preferred_element_type=jnp.float32)

    @pl.when(k == pl.num_programs(1) - 1)
    def _():
        y = o_ref[...] + fm_ref[...]
        mean = jnp.mean(y, axis=0, keepdims=True)
        var = jnp.mean(jnp.square(y - mean), axis=0, keepdims=True)
        scale = g_ref[...] * jax.lax.rsqrt(var + eps)
        shift = beta_ref[...] - mean * scale
        y_bn = y * scale + shift
        o_ref[...] = jnp.where(y_bn >= 0.0, y_bn, neg_slope * y_bn)


# ----------------------------------------------------------------------------
# pallas_call wrappers
# ----------------------------------------------------------------------------
def _cost(patches, w2d, gamma, beta, fm2d, out_bytes):
    by = sum(int(a.size) * int(a.dtype.itemsize)
             for a in (patches, w2d, gamma, beta, fm2d)) + int(out_bytes)
    R, K = patches.shape
    C = w2d.shape[1]
    return pl.CostEstimate(flops=2 * int(R) * int(K) * int(C),
                           transcendentals=int(C),
                           bytes_accessed=by)


def fused_layer_single(patches, w2d, gamma, beta, fm2d, *,
                       eps=1e-5, neg_slope=0.1):
    """patches:(R,K) bf16, w2d:(K,C) bf16, gamma/beta:(1,C) f32, fm2d:(R,C) f32."""
    R, K = patches.shape
    Kw, C = w2d.shape
    assert K == Kw
    kernel = functools.partial(_fused_single_kernel, eps=eps,
                               neg_slope=neg_slope)
    return pl.pallas_call(
        kernel,
        out_shape=jax.ShapeDtypeStruct((R, C), jnp.float32),
        cost_estimate=_cost(patches, w2d, gamma, beta, fm2d, R * C * 4),
    )(patches, w2d, gamma, beta, fm2d)


def fused_layer_tiled(patches, w2d, gamma, beta, fm2d, *, tk, tc,
                      eps=1e-5, neg_slope=0.1):
    """K-tiled + channel-split fused layer (used for the big layer 3)."""
    R, K = patches.shape
    Kw, C = w2d.shape
    assert K == Kw and K % tk == 0 and C % tc == 0
    nk, nc = K // tk, C // tc
    kernel = functools.partial(_fused_tiled_kernel, eps=eps,
                               neg_slope=neg_slope)
    return pl.pallas_call(
        kernel,
        out_shape=jax.ShapeDtypeStruct((R, C), jnp.float32),
        grid=(nc, nk),
        in_specs=[
            pl.BlockSpec((R, tk), lambda c, k: (0, k)),   # patches  (K-tiled)
            pl.BlockSpec((tk, tc), lambda c, k: (k, c)),  # weights  (K,C-tiled)
            pl.BlockSpec((1, tc), lambda c, k: (0, c)),   # bn gamma
            pl.BlockSpec((1, tc), lambda c, k: (0, c)),   # bn beta
            pl.BlockSpec((R, tc), lambda c, k: (0, c)),   # fm residual
        ],
        out_specs=pl.BlockSpec((R, tc), lambda c, k: (0, c)),
        compiler_params=pltpu.CompilerParams(
            dimension_semantics=("parallel", "arbitrary")),
        cost_estimate=_cost(patches, w2d, gamma, beta, fm2d, R * C * 4),
    )(patches, w2d, gamma, beta, fm2d)


# ----------------------------------------------------------------------------
# Plain-JAX glue: NHWC im2col + one-time parameter prep (outside hot path)
# ----------------------------------------------------------------------------
def im2col_nhwc(x, kh, kw, stride, pad):
    """x: (B,H,W,C) -> patches (B*OH*OW, kh*kw*C), feature order (kh,kw,C)."""
    B, H, W, C = x.shape
    xp = jnp.pad(x, ((0, 0), (pad, pad), (pad, pad), (0, 0)))
    OH = (H + 2 * pad - kh) // stride + 1
    OW = (W + 2 * pad - kw) // stride + 1
    slabs = []
    for i in range(kh):
        for j in range(kw):
            slabs.append(xp[:, i:i + stride * OH:stride,
                            j:j + stride * OW:stride, :])   # (B,OH,OW,C)
    p = jnp.stack(slabs, axis=3)                             # (B,OH,OW,kh*kw,C)
    return p.reshape(B * OH * OW, kh * kw * C), OH, OW


def _w_to_gemm(w):
    """PyTorch (C_out,C_in,kh,kw) -> GEMM (kh*kw*C_in, C_out) matching im2col."""
    co, ci, kh, kw = w.shape
    return jnp.transpose(w, (2, 3, 1, 0)).reshape(kh * kw * ci, co)


C1_PAD = 128  # layer-1 output channels padded 64 -> 128 for lane-dense stores


def prepare_params(params):
    """One-time (non-jit) weight reshape / pad / bf16 cast."""
    w1 = jnp.pad(_w_to_gemm(params["w1"]), ((0, 0), (0, C1_PAD - 64)))
    g1 = jnp.pad(params["g1"], (0, C1_PAD - 64))[None, :]
    be1 = jnp.pad(params["be1"], (0, C1_PAD - 64))[None, :]
    # layer-2 weights: zero-pad the *input*-channel axis to match padded x1.
    w2 = jnp.pad(params["w2"], ((0, 0), (0, C1_PAD - 64), (0, 0), (0, 0)))
    return {
        "w1": w1.astype(jnp.bfloat16),                      # (16, 128)
        "g1": g1, "be1": be1,
        # conv1 bias is exactly cancelled by BN mean subtraction -> unused.
        "w2": _w_to_gemm(w2).astype(jnp.bfloat16),          # (2048, 128)
        "g2": params["g2"][None, :], "be2": params["be2"][None, :],
        "w3": _w_to_gemm(params["w3"]).astype(jnp.bfloat16),  # (6272, 1024)
        "g3": params["g3"][None, :], "be3": params["be3"][None, :],
    }


# ----------------------------------------------------------------------------
# Stretcher forward
# ----------------------------------------------------------------------------
def stretcher_forward(x, fm, pp):
    B = x.shape[0]

    # One-time NCHW -> NHWC conversion for the activations.
    x_nhwc = jnp.transpose(x, (0, 2, 3, 1))          # (B,28,28,1)
    fm0 = jnp.transpose(fm[0], (0, 2, 3, 1))         # (B,14,14,64)
    fm1 = jnp.transpose(fm[1], (0, 2, 3, 1))         # (B,7,7,128)
    fm2 = jnp.transpose(fm[2], (0, 2, 3, 1))         # (B,1,1,1024)

    # --- layer 1: Conv2d(1, 64, 4, 2, 1) + fm[0], BN, LeakyReLU(0.1) --------
    p1, OH1, OW1 = im2col_nhwc(x_nhwc, 4, 4, 2, 1)   # (392, 16)
    fm0r = jnp.pad(fm0, ((0, 0), (0, 0), (0, 0), (0, C1_PAD - 64)))
    fm0r = fm0r.reshape(B * OH1 * OW1, C1_PAD)       # (392, 128)
    y1 = fused_layer_single(p1.astype(jnp.bfloat16), pp["w1"],
                            pp["g1"], pp["be1"], fm0r)
    x1 = y1.reshape(B, OH1, OW1, C1_PAD)             # (B,14,14,128), pad chans = 0

    # --- layer 2: Conv2d(64, 128, 4, 2, 1, bias=False) + fm[1], BN, LReLU ---
    p2, OH2, OW2 = im2col_nhwc(x1, 4, 4, 2, 1)       # (98, 2048)
    fm1r = fm1.reshape(B * OH2 * OW2, 128)
    y2 = fused_layer_single(p2.astype(jnp.bfloat16), pp["w2"],
                            pp["g2"], pp["be2"], fm1r)
    x2 = y2.reshape(B, OH2, OW2, 128)                # (B,7,7,128)

    # --- layer 3: Conv2d(128, 1024, 7, bias=False) + fm[2], BN, LReLU -------
    p3, _, _ = im2col_nhwc(x2, 7, 7, 1, 0)           # (B, 6272)
    fm2r = fm2.reshape(B, 1024)
    y3 = fused_layer_tiled(p3.astype(jnp.bfloat16), pp["w3"],
                           pp["g3"], pp["be3"], fm2r,
                           tk=896, tc=256)           # 6272 = 7*896, 1024 = 4*256
    # Back to PyTorch NCHW output shape (spatial is 1x1 -> pure reshape).
    return y3.reshape(B, 1024, 1, 1)


if __name__ == "__main__":
    key = jax.random.PRNGKey(0)
    kx, kf0, kf1, kf2, kw1, kb1, kw2, kw3 = jax.random.split(key, 8)

    B = 2
    # MNIST-sized input implied by the 28 -> 14 -> 7 -> 1 spatial pipeline.
    x = jax.random.normal(kx, (B, 1, 28, 28), jnp.float32)
    fm = [
        jax.random.normal(kf0, (B, 64, 14, 14), jnp.float32),
        jax.random.normal(kf1, (B, 128, 7, 7), jnp.float32),
        jax.random.normal(kf2, (B, 1024, 1, 1), jnp.float32),
    ]

    params = {
        "w1": jax.random.normal(kw1, (64, 1, 4, 4), jnp.float32) * 0.1,
        # conv1 bias exists in the module but is exactly cancelled by the BN
        # mean subtraction, so the kernels never read it.
        "b1": jax.random.normal(kb1, (64,), jnp.float32) * 0.1,
        "w2": jax.random.normal(kw2, (128, 64, 4, 4), jnp.float32) * 0.05,
        "w3": jax.random.normal(kw3, (1024, 128, 7, 7), jnp.float32) * 0.02,
        # BatchNorm affine params at PyTorch defaults (gamma=1, beta=0).
        "g1": jnp.ones((64,), jnp.float32), "be1": jnp.zeros((64,), jnp.float32),
        "g2": jnp.ones((128,), jnp.float32), "be2": jnp.zeros((128,), jnp.float32),
        "g3": jnp.ones((1024,), jnp.float32), "be3": jnp.zeros((1024,), jnp.float32),
    }

    prepped = prepare_params(params)   # one-time weight layout + bf16 cast
    out = jax.jit(stretcher_forward)(x, fm, prepped)
    out = jax.block_until_ready(out)
    assert out.shape == (B, 1024, 1, 1)
    assert bool(jnp.all(jnp.isfinite(out)))
    print("KERNEL_OK")
</pallas_src>

<mosaic_0001>
module attributes {stable_mosaic.version = 11 : i64} {
  func.func @_fused_single_kernel(%arg0: memref<392x16xbf16, #tpu.memory_space<vmem>>, %arg1: memref<16x128xbf16, #tpu.memory_space<vmem>>, %arg2: memref<1x128xf32, #tpu.memory_space<vmem>>, %arg3: memref<1x128xf32, #tpu.memory_space<vmem>>, %arg4: memref<392x128xf32, #tpu.memory_space<vmem>>, %arg5: memref<392x128xf32, #tpu.memory_space<vmem>>) attributes {dimension_semantics = [], scalar_prefetch = 0 : i64, scratch_operands = 0 : i64, tpu.core_type = #tpu.core_type<tc>} {
    %c0 = arith.constant 0 : index
    %c0_0 = arith.constant 0 : index
    %0 = vector.load %arg0[%c0, %c0_0] : memref<392x16xbf16, #tpu.memory_space<vmem>>, vector<392x16xbf16>
    %c0_1 = arith.constant 0 : index
    %c0_2 = arith.constant 0 : index
    %1 = vector.load %arg1[%c0_1, %c0_2] : memref<16x128xbf16, #tpu.memory_space<vmem>>, vector<16x128xbf16>
    %cst = arith.constant dense<0.000000e+00> : vector<392x128xf32>
    %2 = tpu.matmul %0, %1, %cst {dimension_numbers = #tpu.dot_dimension_numbers<[1], [0], [0], [1], [0, 0, 1, 1], [], []>} : vector<392x16xbf16>, vector<16x128xbf16>, vector<392x128xf32> -> vector<392x128xf32>
    %c0_3 = arith.constant 0 : index
    %c0_4 = arith.constant 0 : index
    %3 = vector.load %arg4[%c0_3, %c0_4] : memref<392x128xf32, #tpu.memory_space<vmem>>, vector<392x128xf32>
    %4 = arith.addf %2, %3 : vector<392x128xf32>
    %cst_5 = arith.constant dense<0.000000e+00> : vector<128xf32>
    %5 = vector.multi_reduction <add>, %4, %cst_5 [0] : vector<392x128xf32> to vector<128xf32>
    %6 = vector.shape_cast %5 : vector<128xf32> to vector<1x128xf32>
    %cst_6 = arith.constant 3.920000e+02 : f32
    %7 = vector.broadcast %cst_6 : f32 to vector<1x128xf32>
    %8 = arith.divf %6, %7 : vector<1x128xf32>
    %9 = vector.broadcast %8 : vector<1x128xf32> to vector<392x128xf32>
    %10 = arith.subf %4, %9 : vector<392x128xf32>
    %11 = arith.mulf %10, %10 : vector<392x128xf32>
    %cst_7 = arith.constant dense<0.000000e+00> : vector<128xf32>
    %12 = vector.multi_reduction <add>, %11, %cst_7 [0] : vector<392x128xf32> to vector<128xf32>
    %13 = vector.shape_cast %12 : vector<128xf32> to vector<1x128xf32>
    %cst_8 = arith.constant 3.920000e+02 : f32
    %14 = vector.broadcast %cst_8 : f32 to vector<1x128xf32>
    %15 = arith.divf %13, %14 : vector<1x128xf32>
    %c0_9 = arith.constant 0 : index
    %c0_10 = arith.constant 0 : index
    %16 = vector.load %arg2[%c0_9, %c0_10] : memref<1x128xf32, #tpu.memory_space<vmem>>, vector<1x128xf32>
    %cst_11 = arith.constant 9.99999974E-6 : f32
    %17 = vector.broadcast %cst_11 : f32 to vector<1x128xf32>
    %18 = arith.addf %15, %17 : vector<1x128xf32>
    %19 = math.rsqrt %18 : vector<1x128xf32>
    %20 = arith.mulf %16, %19 : vector<1x128xf32>
    %c0_12 = arith.constant 0 : index
    %c0_13 = arith.constant 0 : index
    %21 = vector.load %arg3[%c0_12, %c0_13] : memref<1x128xf32, #tpu.memory_space<vmem>>, vector<1x128xf32>
    %22 = arith.mulf %8, %20 : vector<1x128xf32>
    %23 = arith.subf %21, %22 : vector<1x128xf32>
    %24 = vector.broadcast %20 : vector<1x128xf32> to vector<392x128xf32>
    %25 = arith.mulf %4, %24 : vector<392x128xf32>
    %26 = vector.broadcast %23 : vector<1x128xf32> to vector<392x128xf32>
    %27 = arith.addf %25, %26 : vector<392x128xf32>
    %cst_14 = arith.constant 0.000000e+00 : f32
    %28 = vector.broadcast %cst_14 : f32 to vector<392x128xf32>
    %29 = arith.cmpf oge, %27, %28 : vector<392x128xf32>
    %cst_15 = arith.constant 1.000000e-01 : f32
    %30 = vector.broadcast %cst_15 : f32 to vector<392x128xf32>
    %31 = arith.mulf %30, %27 : vector<392x128xf32>
    %32 = arith.select %29, %27, %31 : vector<392x128xi1>, vector<392x128xf32>
    %c0_16 = arith.constant 0 : index
    %c0_17 = arith.constant 0 : index
    %33 = vector.load %arg5[%c0_16, %c0_17] : memref<392x128xf32, #tpu.memory_space<vmem>>, vector<392x128xf32>
    tpu.vector_store %arg5[%c0_16, %c0_17], %32 {strides = array<i32>} : memref<392x128xf32, #tpu.memory_space<vmem>>, vector<392x128xf32>,
    return
  }
}

module attributes {stable_mosaic.version = 11 : i64} {
  func.func @_fused_single_kernel(%arg0: memref<98x2048xbf16, #tpu.memory_space<vmem>>, %arg1: memref<2048x128xbf16, #tpu.memory_space<vmem>>, %arg2: memref<1x128xf32, #tpu.memory_space<vmem>>, %arg3: memref<1x128xf32, #tpu.memory_space<vmem>>, %arg4: memref<98x128xf32, #tpu.memory_space<vmem>>, %arg5: memref<98x128xf32, #tpu.memory_space<vmem>>) attributes {dimension_semantics = [], scalar_prefetch = 0 : i64, scratch_operands = 0 : i64, tpu.core_type = #tpu.core_type<tc>} {
    %c0 = arith.constant 0 : index
    %c0_0 = arith.constant 0 : index
    %0 = vector.load %arg0[%c0, %c0_0] : memref<98x2048xbf16, #tpu.memory_space<vmem>>, vector<98x2048xbf16>
    %c0_1 = arith.constant 0 : index
    %c0_2 = arith.constant 0 : index
    %1 = vector.load %arg1[%c0_1, %c0_2] : memref<2048x128xbf16, #tpu.memory_space<vmem>>, vector<2048x128xbf16>
    %cst = arith.constant dense<0.000000e+00> : vector<98x128xf32>
    %2 = tpu.matmul %0, %1, %cst {dimension_numbers = #tpu.dot_dimension_numbers<[1], [0], [0], [1], [0, 0, 1, 1], [], []>} : vector<98x2048xbf16>, vector<2048x128xbf16>, vector<98x128xf32> -> vector<98x128xf32>
    %c0_3 = arith.constant 0 : index
    %c0_4 = arith.constant 0 : index
    %3 = vector.load %arg4[%c0_3, %c0_4] : memref<98x128xf32, #tpu.memory_space<vmem>>, vector<98x128xf32>
    %4 = arith.addf %2, %3 : vector<98x128xf32>
    %cst_5 = arith.constant dense<0.000000e+00> : vector<128xf32>
    %5 = vector.multi_reduction <add>, %4, %cst_5 [0] : vector<98x128xf32> to vector<128xf32>
    %6 = vector.shape_cast %5 : vector<128xf32> to vector<1x128xf32>
    %cst_6 = arith.constant 9.800000e+01 : f32
    %7 = vector.broadcast %cst_6 : f32 to vector<1x128xf32>
    %8 = arith.divf %6, %7 : vector<1x128xf32>
    %9 = vector.broadcast %8 : vector<1x128xf32> to vector<98x128xf32>
    %10 = arith.subf %4, %9 : vector<98x128xf32>
    %11 = arith.mulf %10, %10 : vector<98x128xf32>
    %cst_7 = arith.constant dense<0.000000e+00> : vector<128xf32>
    %12 = vector.multi_reduction <add>, %11, %cst_7 [0] : vector<98x128xf32> to vector<128xf32>
    %13 = vector.shape_cast %12 : vector<128xf32> to vector<1x128xf32>
    %cst_8 = arith.constant 9.800000e+01 : f32
    %14 = vector.broadcast %cst_8 : f32 to vector<1x128xf32>
    %15 = arith.divf %13, %14 : vector<1x128xf32>
    %c0_9 = arith.constant 0 : index
    %c0_10 = arith.constant 0 : index
    %16 = vector.load %arg2[%c0_9, %c0_10] : memref<1x128xf32, #tpu.memory_space<vmem>>, vector<1x128xf32>
    %cst_11 = arith.constant 9.99999974E-6 : f32
    %17 = vector.broadcast %cst_11 : f32 to vector<1x128xf32>
    %18 = arith.addf %15, %17 : vector<1x128xf32>
    %19 = math.rsqrt %18 : vector<1x128xf32>
    %20 = arith.mulf %16, %19 : vector<1x128xf32>
    %c0_12 = arith.constant 0 : index
    %c0_13 = arith.constant 0 : index
    %21 = vector.load %arg3[%c0_12, %c0_13] : memref<1x128xf32, #tpu.memory_space<vmem>>, vector<1x128xf32>
    %22 = arith.mulf %8, %20 : vector<1x128xf32>
    %23 = arith.subf %21, %22 : vector<1x128xf32>
    %24 = vector.broadcast %20 : vector<1x128xf32> to vector<98x128xf32>
    %25 = arith.mulf %4, %24 : vector<98x128xf32>
    %26 = vector.broadcast %23 : vector<1x128xf32> to vector<98x128xf32>
    %27 = arith.addf %25, %26 : vector<98x128xf32>
    %cst_14 = arith.constant 0.000000e+00 : f32
    %28 = vector.broadcast %cst_14 : f32 to vector<98x128xf32>
    %29 = arith.cmpf oge, %27, %28 : vector<98x128xf32>
    %cst_15 = arith.constant 1.000000e-01 : f32
    %30 = vector.broadcast %cst_15 : f32 to vector<98x128xf32>
    %31 = arith.mulf %30, %27 : vector<98x128xf32>
    %32 = arith.select %29, %27, %31 : vector<98x128xi1>, vector<98x128xf32>
    %c0_16 = arith.constant 0 : index
    %c0_17 = arith.constant 0 : index
    %33 = vector.load %arg5[%c0_16, %c0_17] : memref<98x128xf32, #tpu.memory_space<vmem>>, vector<98x128xf32>
    tpu.vector_store %arg5[%c0_16, %c0_17], %32 {strides = array<i32>} : memref<98x128xf32, #tpu.memory_space<vmem>>, vector<98x128xf32>,
    return
  }
}

module attributes {stable_mosaic.version = 11 : i64} {
  func.func @_fused_tiled_kernel(%arg0: i32, %arg1: i32, %arg2: memref<2x896xbf16, #tpu.memory_space<vmem>>, %arg3: memref<896x256xbf16, #tpu.memory_space<vmem>>, %arg4: memref<1x256xf32, #tpu.memory_space<vmem>>, %arg5: memref<1x256xf32, #tpu.memory_space<vmem>>, %arg6: memref<2x256xf32, #tpu.memory_space<vmem>>, %arg7: memref<2x256xf32, #tpu.memory_space<vmem>>) attributes {dimension_semantics = [#tpu.dimension_semantics<parallel>, #tpu.dimension_semantics<arbitrary>], iteration_bounds = array<i64: 4, 7>, scalar_prefetch = 0 : i64, scratch_operands = 0 : i64, tpu.core_type = #tpu.core_type<tc>, window_params = [{transform_indices = @transform_0, window_bounds = array<i64: 2, 896>}, {transform_indices = @transform_1, window_bounds = array<i64: 896, 256>}, {transform_indices = @transform_2, window_bounds = array<i64: 1, 256>}, {transform_indices = @transform_3, window_bounds = array<i64: 1, 256>}, {transform_indices = @transform_4, window_bounds = array<i64: 2, 256>}, {transform_indices = @transform_5, window_bounds = array<i64: 2, 256>}]} {
    %c0_i32 = arith.constant 0 : i32
    %0 = arith.cmpi eq, %arg1, %c0_i32 : i32
    %1 = arith.extui %0 : i1 to i32
    %c0_i32_0 = arith.constant 0 : i32
    %2 = arith.cmpi ne, %1, %c0_i32_0 : i32
    scf.if %2 {
      %cst_9 = arith.constant 0.000000e+00 : f32
      %12 = vector.broadcast %cst_9 : f32 to vector<2x256xf32>
      %c0_10 = arith.constant 0 : index
      %c0_11 = arith.constant 0 : index
      %13 = vector.load %arg7[%c0_10, %c0_11] : memref<2x256xf32, #tpu.memory_space<vmem>>, vector<2x256xf32>
      tpu.vector_store %arg7[%c0_10, %c0_11], %12 {strides = array<i32>} : memref<2x256xf32, #tpu.memory_space<vmem>>, vector<2x256xf32>,
    } else {
    }
    %c0 = arith.constant 0 : index
    %c0_1 = arith.constant 0 : index
    %3 = vector.load %arg7[%c0, %c0_1] : memref<2x256xf32, #tpu.memory_space<vmem>>, vector<2x256xf32>
    %c0_2 = arith.constant 0 : index
    %c0_3 = arith.constant 0 : index
    %4 = vector.load %arg2[%c0_2, %c0_3] : memref<2x896xbf16, #tpu.memory_space<vmem>>, vector<2x896xbf16>
    %c0_4 = arith.constant 0 : index
    %c0_5 = arith.constant 0 : index
    %5 = vector.load %arg3[%c0_4, %c0_5] : memref<896x256xbf16, #tpu.memory_space<vmem>>, vector<896x256xbf16>
    %cst = arith.constant dense<0.000000e+00> : vector<2x256xf32>
    %6 = tpu.matmul %4, %5, %cst {dimension_numbers = #tpu.dot_dimension_numbers<[1], [0], [0], [1], [0, 0, 1, 1], [], []>} : vector<2x896xbf16>, vector<896x256xbf16>, vector<2x256xf32> -> vector<2x256xf32>
    %7 = arith.addf %3, %6 : vector<2x256xf32>
    %c0_6 = arith.constant 0 : index
    %c0_7 = arith.constant 0 : index
    %8 = vector.load %arg7[%c0_6, %c0_7] : memref<2x256xf32, #tpu.memory_space<vmem>>, vector<2x256xf32>
    tpu.vector_store %arg7[%c0_6, %c0_7], %7 {strides = array<i32>} : memref<2x256xf32, #tpu.memory_space<vmem>>, vector<2x256xf32>,
    %c6_i32 = arith.constant 6 : i32
    %9 = arith.cmpi eq, %arg1, %c6_i32 : i32
    %10 = arith.extui %9 : i1 to i32
    %c0_i32_8 = arith.constant 0 : i32
    %11 = arith.cmpi ne, %10, %c0_i32_8 : i32
    scf.if %11 {
      %c0_9 = arith.constant 0 : index
      %c0_10 = arith.constant 0 : index
      %12 = vector.load %arg7[%c0_9, %c0_10] : memref<2x256xf32, #tpu.memory_space<vmem>>, vector<2x256xf32>
      %c0_11 = arith.constant 0 : index
      %c0_12 = arith.constant 0 : index
      %13 = vector.load %arg6[%c0_11, %c0_12] : memref<2x256xf32, #tpu.memory_space<vmem>>, vector<2x256xf32>
      %14 = arith.addf %12, %13 : vector<2x256xf32>
      %cst_13 = arith.constant dense<0.000000e+00> : vector<256xf32>
      %15 = vector.multi_reduction <add>, %14, %cst_13 [0] : vector<2x256xf32> to vector<256xf32>
      %16 = vector.shape_cast %15 : vector<256xf32> to vector<1x256xf32>
      %cst_14 = arith.constant 2.000000e+00 : f32
      %17 = vector.broadcast %cst_14 : f32 to vector<1x256xf32>
      %18 = arith.divf %16, %17 : vector<1x256xf32>
      %19 = vector.broadcast %18 : vector<1x256xf32> to vector<2x256xf32>
      %20 = arith.subf %14, %19 : vector<2x256xf32>
      %21 = arith.mulf %20, %20 : vector<2x256xf32>
      %cst_15 = arith.constant dense<0.000000e+00> : vector<256xf32>
      %22 = vector.multi_reduction <add>, %21, %cst_15 [0] : vector<2x256xf32> to vector<256xf32>
      %23 = vector.shape_cast %22 : vector<256xf32> to vector<1x256xf32>
      %cst_16 = arith.constant 2.000000e+00 : f32
      %24 = vector.broadcast %cst_16 : f32 to vector<1x256xf32>
      %25 = arith.divf %23, %24 : vector<1x256xf32>
      %c0_17 = arith.constant 0 : index
      %c0_18 = arith.constant 0 : index
      %26 = vector.load %arg4[%c0_17, %c0_18] : memref<1x256xf32, #tpu.memory_space<vmem>>, vector<1x256xf32>
      %cst_19 = arith.constant 9.99999974E-6 : f32
      %27 = vector.broadcast %cst_19 : f32 to vector<1x256xf32>
      %28 = arith.addf %25, %27 : vector<1x256xf32>
      %29 = math.rsqrt %28 : vector<1x256xf32>
      %30 = arith.mulf %26, %29 : vector<1x256xf32>
      %c0_20 = arith.constant 0 : index
      %c0_21 = arith.constant 0 : index
      %31 = vector.load %arg5[%c0_20, %c0_21] : memref<1x256xf32, #tpu.memory_space<vmem>>, vector<1x256xf32>
      %32 = arith.mulf %18, %30 : vector<1x256xf32>
      %33 = arith.subf %31, %32 : vector<1x256xf32>
      %34 = vector.broadcast %30 : vector<1x256xf32> to vector<2x256xf32>
      %35 = arith.mulf %14, %34 : vector<2x256xf32>
      %36 = vector.broadcast %33 : vector<1x256xf32> to vector<2x256xf32>
      %37 = arith.addf %35, %36 : vector<2x256xf32>
      %cst_22 = arith.constant 0.000000e+00 : f32
      %38 = vector.broadcast %cst_22 : f32 to vector<2x256xf32>
      %39 = arith.cmpf oge, %37, %38 : vector<2x256xf32>
      %cst_23 = arith.constant 1.000000e-01 : f32
      %40 = vector.broadcast %cst_23 : f32 to vector<2x256xf32>
      %41 = arith.mulf %40, %37 : vector<2x256xf32>
      %42 = arith.select %39, %37, %41 : vector<2x256xi1>, vector<2x256xf32>
      %c0_24 = arith.constant 0 : index
      %c0_25 = arith.constant 0 : index
      %43 = vector.load %arg7[%c0_24, %c0_25] : memref<2x256xf32, #tpu.memory_space<vmem>>, vector<2x256xf32>
      tpu.vector_store %arg7[%c0_24, %c0_25], %42 {strides = array<i32>} : memref<2x256xf32, #tpu.memory_space<vmem>>, vector<2x256xf32>,
    } else {
    }
    return
  }
  func.func @transform_0(%arg0: i32, %arg1: i32) -> (i32, i32) {
    %c0_i32 = arith.constant 0 : i32
    %c0_i32_0 = arith.constant 0 : i32
    return %c0_i32, %arg1 : i32, i32
  }
  func.func @transform_1(%arg0: i32, %arg1: i32) -> (i32, i32) {
    %c0_i32 = arith.constant 0 : i32
    return %arg1, %arg0 : i32, i32
  }
  func.func @transform_2(%arg0: i32, %arg1: i32) -> (i32, i32) {
    %c0_i32 = arith.constant 0 : i32
    %c0_i32_0 = arith.constant 0 : i32
    return %c0_i32, %arg0 : i32, i32
  }
  func.func @transform_3(%arg0: i32, %arg1: i32) -> (i32, i32) {
    %c0_i32 = arith.constant 0 : i32
    %c0_i32_0 = arith.constant 0 : i32
    return %c0_i32, %arg0 : i32, i32
  }
  func.func @transform_4(%arg0: i32, %arg1: i32) -> (i32, i32) {
    %c0_i32 = arith.constant 0 : i32
    %c0_i32_0 = arith.constant 0 : i32
    return %c0_i32, %arg0 : i32, i32
  }
  func.func @transform_5(%arg0: i32, %arg1: i32) -> (i32, i32) {
    %c0_i32 = arith.constant 0 : i32
    %c0_i32_0 = arith.constant 0 : i32
    return %c0_i32, %arg0 : i32, i32
  }
}

</mosaic_0001>

<llo_original>
// kernel: stretcher_forward.3
$region0: #{stretcher_forward.3}
  #allocation0 [shape = 'u32[]', space=smem, size = 0x4, offset = 0x4, fixed_abs, tag = 'smem constant byte address 0x4 - core index']
  #allocation1 [shape = 'u32[144,128]{1,0:T(1,128)}', space=vmem, size = 0x12000, scoped, tag = 'internal scratch']
  %s0 = inlined_call_operand.vmem [shape: bf16[392,16], index: 0, kind: input, shape index: {}]
  %s1 = inlined_call_operand.hbm [shape: bf16[16,128], index: 1, kind: input, shape index: {}]
  %s2 = inlined_call_operand.hbm [shape: f32[1,128], index: 2, kind: input, shape index: {}]
  %s3 = inlined_call_operand.hbm [shape: f32[1,128], index: 3, kind: input, shape index: {}]
  %s4 = inlined_call_operand.vmem [shape: f32[392,128], index: 4, kind: input, shape index: {}]
  %s5 = inlined_call_operand.vmem [shape: f32[392,128], index: 5, kind: output, shape index: {}]
  %s6 = sld [smem:[#allocation0]]
  $region42: #{stretcher_forward.3} parent=0
    _
  %s8 = ssub.s32 1, %s6
  %s9 = scalar_select 0, %s8, %s6
  $region1: #{stretcher_forward.3} parent=0
    #allocation2 [shape = 'u8[4096]{0}', space=vmem, size = 0x1000, scoped, tag = 'input window, operand 1, single buffered']
    #allocation3 [shape = 's32[1]{0}', space=sflag, size = 0x4, scoped, tag = 'scoped memory for stretcher_forward.3']
    #allocation4 [shape = 'u8[512]{0}', space=vmem, size = 0x400, scoped, tag = 'input window, operand 2, single buffered']
    #allocation5 [shape = 's32[1]{0}', space=sflag, size = 0x4, scoped, tag = 'scoped memory for stretcher_forward.3']
    #allocation6 [shape = 'u8[512]{0}', space=vmem, size = 0x400, scoped, tag = 'input window, operand 3, single buffered']
    %10 = vsyncpa [#allocation3], 0
    %11 = vsyncpa [#allocation5], 0
    // Predicated region
    $region2: #{stretcher_forward.3} parent=1 // pred_check
      _
    $region3: #{stretcher_forward.3} parent=1 // pred_check_branch
      %13 = sbr.rel (0) target = $region5
    $region4: #{stretcher_forward.3} parent=1 // pred_region
      _
    $region5: #{stretcher_forward.3} parent=1 // pred_fallthru
      _
    // Predicated region
    $region6: #{stretcher_forward.3} parent=1 // pred_check
      _
    $region7: #{stretcher_forward.3} parent=1 // pred_check_branch
      %15 = sbr.rel (0) target = $region9
    $region8: #{stretcher_forward.3} parent=1 // pred_region
      %s17 = ssub.s32 128, 128
      %18 = vsyncadd [#allocation3], %s17
      %s19 = sshll.u32 [#allocation2], 4
      %s20 = int_to_ptr.vmem [resolvable:$true] %s19
      %25 = dma.hbm_to_vmem [thread:$0]  %s1, 128, %s20, [#allocation3], 64, 64, 4
    $region9: #{stretcher_forward.3} parent=1 // pred_fallthru
      _
    // Predicated region
    $region10: #{stretcher_forward.3} parent=1 // pred_check
      _
    $region11: #{stretcher_forward.3} parent=1 // pred_check_branch
      %27 = sbr.rel (0) target = $region13
    $region12: #{stretcher_forward.3} parent=1 // pred_region
      %s29 = ssub.s32 16, 16
      %30 = vsyncadd [#allocation5], %s29
      %s32 = sshll.u32 [#allocation4], 4
      %s33 = int_to_ptr.vmem [resolvable:$true] %s32
      %35 = dma.hbm_to_vmem [thread:$0]  %s2, 16, %s33, [#allocation5]
    $region13: #{stretcher_forward.3} parent=1 // pred_fallthru
      _
    // Predicated region
    $region14: #{stretcher_forward.3} parent=1 // pred_check
      _
    $region15: #{stretcher_forward.3} parent=1 // pred_check_branch
      %37 = sbr.rel (0) target = $region17
    $region16: #{stretcher_forward.3} parent=1 // pred_region
      %s39 = ssub.s32 16, 16
      %40 = vsyncadd [#allocation5], %s39
      %s42 = sshll.u32 [#allocation6], 4
      %s43 = int_to_ptr.vmem [resolvable:$true] %s42
      %45 = dma.hbm_to_vmem [thread:$0]  %s3, 16, %s43, [#allocation5]
    $region17: #{stretcher_forward.3} parent=1 // pred_fallthru
      _
    // Predicated region
    $region18: #{stretcher_forward.3} parent=1 // pred_check
      _
    $region19: #{stretcher_forward.3} parent=1 // pred_check_branch
      %47 = sbr.rel (0) target = $region21
    $region20: #{stretcher_forward.3} parent=1 // pred_region
      _
    $region21: #{stretcher_forward.3} parent=1 // pred_fallthru
      _
    // Predicated region
    $region22: #{stretcher_forward.3} parent=1 // pred_check
      _
    $region23: #{stretcher_forward.3} parent=1 // pred_check_branch
      %49 = sbr.rel (0) target = $region25
    $region24: #{stretcher_forward.3} parent=1 // pred_region
      %50 = dma.done [#allocation3], 128
    $region25: #{stretcher_forward.3} parent=1 // pred_fallthru
      _
    // Predicated region
    $region26: #{stretcher_forward.3} parent=1 // pred_check
      _
    $region27: #{stretcher_forward.3} parent=1 // pred_check_branch
      %52 = sbr.rel (0) target = $region29
    $region28: #{stretcher_forward.3} parent=1 // pred_region
      %53 = dma.done [#allocation5], 16
    $region29: #{stretcher_forward.3} parent=1 // pred_fallthru
      _
    // Predicated region
    $region30: #{stretcher_forward.3} parent=1 // pred_check
      _
    $region31: #{stretcher_forward.3} parent=1 // pred_check_branch
      %55 = sbr.rel (0) target = $region33
    $region32: #{stretcher_forward.3} parent=1 // pred_region
      %56 = dma.done [#allocation5], 16
    $region33: #{stretcher_forward.3} parent=1 // pred_fallthru
      _
    %v58 = vld [vmem:[%s0] sm:$0xf]
    %v59 = vld [vmem:[%s0 + $0x4] sm:$0xf]
    %v60 = vld [vmem:[%s0 + $0x8] sm:$0xf]
    %v61 = vld [vmem:[%s0 + $0xc] sm:$0xf]
    %v62 = vld [vmem:[%s0 + $0x10] sm:$0xf]
    %v63 = vld [vmem:[%s0 + $0x14] sm:$0xf]
    %v64 = vld [vmem:[%s0 + $0x18] sm:$0xf]
    %v65 = vld [vmem:[%s0 + $0x1c] sm:$0xf]
    %v66 = vld [vmem:[%s0 + $0x20] sm:$0xf]
    %v67 = vld [vmem:[%s0 + $0x24] sm:$0xf]
    %v68 = vld [vmem:[%s0 + $0x28] sm:$0xf]
    %v69 = vld [vmem:[%s0 + $0x2c] sm:$0xf]
    %v70 = vld [vmem:[%s0 + $0x30] sm:$0xf]
    %v71 = vld [vmem:[%s0 + $0x34] sm:$0xf]
    %v72 = vld [vmem:[%s0 + $0x38] sm:$0xf]
    %v73 = vld [vmem:[%s0 + $0x3c] sm:$0xf]
    %v74 = vld [vmem:[%s0 + $0x40] sm:$0xf]
    %v75 = vld [vmem:[%s0 + $0x44] sm:$0xf]
    %v76 = vld [vmem:[%s0 + $0x48] sm:$0xf]
    %v77 = vld [vmem:[%s0 + $0x4c] sm:$0xf]
    %v78 = vld [vmem:[%s0 + $0x50] sm:$0xf]
    %v79 = vld [vmem:[%s0 + $0x54] sm:$0xf]
    %v80 = vld [vmem:[%s0 + $0x58] sm:$0xf]
    %v81 = vld [vmem:[%s0 + $0x5c] sm:$0xf]
    %v82 = vld [vmem:[%s0 + $0x60] sm:$0xf]
    %v83 = vld [vmem:[%s0 + $0x64] sm:$0xf]
    %v84 = vld [vmem:[%s0 + $0x68] sm:$0xf]
    %v85 = vld [vmem:[%s0 + $0x6c] sm:$0xf]
    %v86 = vld [vmem:[%s0 + $0x70] sm:$0xf]
    %v87 = vld [vmem:[%s0 + $0x74] sm:$0xf]
    %v88 = vld [vmem:[%s0 + $0x78] sm:$0xf]
    %v89 = vld [vmem:[%s0 + $0x7c] sm:$0xf]
    %v90 = vld [vmem:[%s0 + $0x80] sm:$0xf]
    %v91 = vld [vmem:[%s0 + $0x84] sm:$0xf]
    %v92 = vld [vmem:[%s0 + $0x88] sm:$0xf]
    %v93 = vld [vmem:[%s0 + $0x8c] sm:$0xf]
    %v94 = vld [vmem:[%s0 + $0x90] sm:$0xf]
    %v95 = vld [vmem:[%s0 + $0x94] sm:$0xf]
    %v96 = vld [vmem:[%s0 + $0x98] sm:$0xf]
    %v97 = vld [vmem:[%s0 + $0x9c] sm:$0xf]
    %v98 = vld [vmem:[%s0 + $0xa0] sm:$0xf]
    %v99 = vld [vmem:[%s0 + $0xa4] sm:$0xf]
    %v100 = vld [vmem:[%s0 + $0xa8] sm:$0xf]
    %v101 = vld [vmem:[%s0 + $0xac] sm:$0xf]
    %v102 = vld [vmem:[%s0 + $0xb0] sm:$0xf]
    %v103 = vld [vmem:[%s0 + $0xb4] sm:$0xf]
    %v104 = vld [vmem:[%s0 + $0xb8] sm:$0xf]
    %v105 = vld [vmem:[%s0 + $0xbc] sm:$0xf]
    %v106 = vld [vmem:[%s0 + $0xc0] sm:$0xf]
    %v107 = vld [vmem:[#allocation2] sm:$0xf]
    %v108 = vld [vmem:[#allocation2 + $0x4] sm:$0xf]
    %v109 = vld [vmem:[%s4] sm:$0xff]
    %v110 = vld [vmem:[%s4 + $0x8] sm:$0xff]
    %v111 = vld [vmem:[%s4 + $0x10] sm:$0xff]
    %v112 = vld [vmem:[%s4 + $0x18] sm:$0xff]
    %v113 = vld [vmem:[%s4 + $0x20] sm:$0xff]
    %v114 = vld [vmem:[%s4 + $0x28] sm:$0xff]
    %v115 = vld [vmem:[%s4 + $0x30] sm:$0xff]
    %v116 = vld [vmem:[%s4 + $0x38] sm:$0xff]
    %v117 = vld [vmem:[%s4 + $0x40] sm:$0xff]
    %v118 = vld [vmem:[%s4 + $0x48] sm:$0xff]
    %v119 = vld [vmem:[%s4 + $0x50] sm:$0xff]
    %v120 = vld [vmem:[%s4 + $0x58] sm:$0xff]
    %v121 = vld [vmem:[%s4 + $0x60] sm:$0xff]
    %v122 = vld [vmem:[%s4 + $0x68] sm:$0xff]
    %v123 = vld [vmem:[%s4 + $0x70] sm:$0xff]
    %v124 = vld [vmem:[%s4 + $0x78] sm:$0xff]
    %v125 = vld [vmem:[%s4 + $0x80] sm:$0xff]
    %v126 = vld [vmem:[%s4 + $0x88] sm:$0xff]
    %v127 = vld [vmem:[%s4 + $0x90] sm:$0xff]
    %v128 = vld [vmem:[%s4 + $0x98] sm:$0xff]
    %v129 = vld [vmem:[%s4 + $0xa0] sm:$0xff]
    %v130 = vld [vmem:[%s4 + $0xa8] sm:$0xff]
    %v131 = vld [vmem:[%s4 + $0xb0] sm:$0xff]
    %v132 = vld [vmem:[%s4 + $0xb8] sm:$0xff]
    %v133 = vld [vmem:[%s4 + $0xc0] sm:$0xff]
    %v134 = vld [vmem:[%s4 + $0xc8] sm:$0xff]
    %v135 = vld [vmem:[%s4 + $0xd0] sm:$0xff]
    %v136 = vld [vmem:[%s4 + $0xd8] sm:$0xff]
    %v137 = vld [vmem:[%s4 + $0xe0] sm:$0xff]
    %v138 = vld [vmem:[%s4 + $0xe8] sm:$0xff]
    %v139 = vld [vmem:[%s4 + $0xf0] sm:$0xff]
    %v140 = vld [vmem:[%s4 + $0xf8] sm:$0xff]
    %v141 = vld [vmem:[%s4 + $0x100] sm:$0xff]
    %v142 = vld [vmem:[%s4 + $0x108] sm:$0xff]
    %v143 = vld [vmem:[%s4 + $0x110] sm:$0xff]
    %v144 = vld [vmem:[%s4 + $0x118] sm:$0xff]
    %v145 = vld [vmem:[%s4 + $0x120] sm:$0xff]
    %v146 = vld [vmem:[%s4 + $0x128] sm:$0xff]
    %v147 = vld [vmem:[%s4 + $0x130] sm:$0xff]
    %v148 = vld [vmem:[%s4 + $0x138] sm:$0xff]
    %v149 = vld [vmem:[%s4 + $0x140] sm:$0xff]
    %v150 = vld [vmem:[%s4 + $0x148] sm:$0xff]
    %v151 = vld [vmem:[%s4 + $0x150] sm:$0xff]
    %v152 = vld [vmem:[%s4 + $0x158] sm:$0xff]
    %v153 = vld [vmem:[%s4 + $0x160] sm:$0xff]
    %v154 = vld [vmem:[%s4 + $0x168] sm:$0xff]
    %v155 = vld [vmem:[%s4 + $0x170] sm:$0xff]
    %v156 = vld [vmem:[%s4 + $0x178] sm:$0xff]
    %v157 = vld [vmem:[%s4 + $0x180] sm:$0xff]
    %v207 = vunpack.c.l.b16 %v58
    %v208 = vunpack.c.l.b16 %v59
    %v209 = vunpack.c.l.b16 %v60
    %v210 = vunpack.c.l.b16 %v61
    %v211 = vunpack.c.l.b16 %v62
    %v212 = vunpack.c.l.b16 %v63
    %v213 = vunpack.c.l.b16 %v64
    %v214 = vunpack.c.l.b16 %v65
    %v215 = vunpack.c.l.b16 %v66
    %v216 = vunpack.c.l.b16 %v67
    %v217 = vunpack.c.l.b16 %v68
    %v218 = vunpack.c.l.b16 %v69
    %v219 = vunpack.c.l.b16 %v70
    %v220 = vunpack.c.l.b16 %v71
    %v221 = vunpack.c.l.b16 %v72
    %v222 = vunpack.c.l.b16 %v73
    %v223 = vunpack.c.l.b16 %v74
    %v224 = vunpack.c.l.b16 %v75
    %v225 = vunpack.c.l.b16 %v76
    %v226 = vunpack.c.l.b16 %v77
    %v227 = vunpack.c.l.b16 %v78
    %v228 = vunpack.c.l.b16 %v79
    %v229 = vunpack.c.l.b16 %v80
    %v230 = vunpack.c.l.b16 %v81
    %v231 = vunpack.c.l.b16 %v82
    %v232 = vunpack.c.l.b16 %v83
    %v233 = vunpack.c.l.b16 %v84
    %v234 = vunpack.c.l.b16 %v85
    %v235 = vunpack.c.l.b16 %v86
    %v236 = vunpack.c.l.b16 %v87
    %v237 = vunpack.c.l.b16 %v88
    %v238 = vunpack.c.l.b16 %v89
    %v239 = vunpack.c.l.b16 %v90
    %v240 = vunpack.c.l.b16 %v91
    %v241 = vunpack.c.l.b16 %v92
    %v242 = vunpack.c.l.b16 %v93
    %v243 = vunpack.c.l.b16 %v94
    %v244 = vunpack.c.l.b16 %v95
    %v245 = vunpack.c.l.b16 %v96
    %v246 = vunpack.c.l.b16 %v97
    %v247 = vunpack.c.l.b16 %v98
    %v248 = vunpack.c.l.b16 %v99
    %v249 = vunpack.c.l.b16 %v100
    %v250 = vunpack.c.l.b16 %v101
    %v251 = vunpack.c.l.b16 %v102
    %v252 = vunpack.c.l.b16 %v103
    %v253 = vunpack.c.l.b16 %v104
    %v254 = vunpack.c.l.b16 %v105
    %v255 = vunpack.c.l.b16 %v106
    %v256 = vpack.c.b16 %v208, %v207
    %v257 = vpack.c.b16 %v210, %v209
    %v258 = vpack.c.b16 %v212, %v211
    %v259 = vpack.c.b16 %v214, %v213
    %v260 = vpack.c.b16 %v216, %v215
    %v261 = vpack.c.b16 %v218, %v217
    %v262 = vpack.c.b16 %v220, %v219
    %v263 = vpack.c.b16 %v222, %v221
    %v264 = vpack.c.b16 %v224, %v223
    %v265 = vpack.c.b16 %v226, %v225
    %v266 = vpack.c.b16 %v228, %v227
    %v267 = vpack.c.b16 %v230, %v229
    %v268 = vpack.c.b16 %v232, %v231
    %v269 = vpack.c.b16 %v234, %v233
    %v270 = vpack.c.b16 %v236, %v235
    %v271 = vpack.c.b16 %v238, %v237
    %v272 = vpack.c.b16 %v240, %v239
    %v273 = vpack.c.b16 %v242, %v241
    %v274 = vpack.c.b16 %v244, %v243
    %v275 = vpack.c.b16 %v246, %v245
    %v276 = vpack.c.b16 %v248, %v247
    %v277 = vpack.c.b16 %v250, %v249
    %v278 = vpack.c.b16 %v252, %v251
    %v279 = vpack.c.b16 %v254, %v253
    %v280 = vpack.c.b16 %v255, %v255
    %v283 = vunpack.c.l.b16 %v107
    %v284 = vunpack.c.l.b16 %v108
    %v285 = vpack.c.b16 %v284, %v283
    %vm287 = vcmask 130048
    %v289 = vsel %vm287, %v256, 0
    %v292 = vsel %vm287, %v257, 0
    %v295 = vsel %vm287, %v258, 0
    %v298 = vsel %vm287, %v259, 0
    %v301 = vsel %vm287, %v260, 0
    %v304 = vsel %vm287, %v261, 0
    %v307 = vsel %vm287, %v262, 0
    %v310 = vsel %vm287, %v263, 0
    %v313 = vsel %vm287, %v264, 0
    %v316 = vsel %vm287, %v265, 0
    %v319 = vsel %vm287, %v266, 0
    %v322 = vsel %vm287, %v267, 0
    %v325 = vsel %vm287, %v268, 0
    %v328 = vsel %vm287, %v269, 0
    %v331 = vsel %vm287, %v270, 0
    %v334 = vsel %vm287, %v271, 0
    %v337 = vsel %vm287, %v272, 0
    %v340 = vsel %vm287, %v273, 0
    %v343 = vsel %vm287, %v274, 0
    %v346 = vsel %vm287, %v275, 0
    %v349 = vsel %vm287, %v276, 0
    %v352 = vsel %vm287, %v277, 0
    %v355 = vsel %vm287, %v278, 0
    %v358 = vsel %vm287, %v279, 0
    %v361 = vsel %vm287, %v280, 0
    %363 = vmatprep.subr.bf16.mxu0 0
    %364 = vmatpush1.bf16.msra.mxu0 %v285
    %365 = vmatprep.subr.bf16.mxu0 0
    %366 = vmatpush1.bf16.msra.mxu0 0
    %367 = vmatprep.subr.bf16.mxu0 0
    %368 = vmatpush1.bf16.msra.mxu0 0
    %369 = vmatprep.subr.bf16.mxu0 0
    %370 = vmatpush1.bf16.msra.mxu0 0
    %371 = vmatprep.subr.bf16.mxu0 0
    %372 = vmatpush1.bf16.msra.mxu0 0
    %373 = vmatprep.subr.bf16.mxu0 0
    %374 = vmatpush1.bf16.msra.mxu0 0
    %375 = vmatprep.subr.bf16.mxu0 0
    %376 = vmatpush1.bf16.msra.mxu0 0
    %377 = vmatprep.subr.bf16.mxu0 0
    %378 = vmatpush1.bf16.msra.mxu0 0
    %379 = vmatprep.subr.bf16.mxu0 0
    %380 = vmatpush1.bf16.msra.mxu0 0
    %381 = vmatprep.subr.bf16.mxu0 0
    %382 = vmatpush1.bf16.msra.mxu0 0
    %383 = vmatprep.subr.bf16.mxu0 0
    %384 = vmatpush1.bf16.msra.mxu0 0
    %385 = vmatprep.subr.bf16.mxu0 0
    %386 = vmatpush1.bf16.msra.mxu0 0
    %387 = vmatprep.subr.bf16.mxu0 0
    %388 = vmatpush1.bf16.msra.mxu0 0
    %389 = vmatprep.subr.bf16.mxu0 0
    %390 = vmatpush1.bf16.msra.mxu0 0
    %391 = vmatprep.subr.bf16.mxu0 0
    %392 = vmatpush1.bf16.msra.mxu0 0
    %393 = vmatprep.subr.bf16.mxu0 0
    %394 = vmatpush1.bf16.msra.mxu0 0
    %395 = vmatprep.mubr.bf16.mxu0 0
    %396 = vmatmul.mubr.bf16.gmra.mrb[0].mxu0 %v289
    %v397 = vpop.f32.mrb[0].mxu0
    %v398 = vadd.f32 %v109, %v397
    %v399 = vpop.f32.mrb[0].mxu0
    %v400 = vpop.f32.mrb[0].mxu0
    %v401 = vadd.f32 %v110, %v400
    %v402 = vpop.f32.mrb[0].mxu0
    %403 = vmatprep.mubr.bf16.mxu0 0
    %404 = vmatmul.mubr.bf16.gmra.mrb[0].mxu0 %v292
    %v405 = vpop.f32.mrb[0].mxu0
    %v406 = vadd.f32 %v111, %v405
    %v407 = vpop.f32.mrb[0].mxu0
    %v408 = vpop.f32.mrb[0].mxu0
    %v409 = vadd.f32 %v112, %v408
    %v410 = vpop.f32.mrb[0].mxu0
    %411 = vmatprep.mubr.bf16.mxu0 0
    %412 = vmatmul.mubr.bf16.gmra.mrb[0].mxu0 %v295
    %v413 = vpop.f32.mrb[0].mxu0
    %v414 = vadd.f32 %v113, %v413
    %v415 = vpop.f32.mrb[0].mxu0
    %v416 = vpop.f32.mrb[0].mxu0
    %v417 = vadd.f32 %v114, %v416
    %v418 = vpop.f32.mrb[0].mxu0
    %419 = vmatprep.mubr.bf16.mxu0 0
    %420 = vmatmul.mubr.bf16.gmra.mrb[0].mxu0 %v298
    %v421 = vpop.f32.mrb[0].mxu0
    %v422 = vadd.f32 %v115, %v421
    %v423 = vpop.f32.mrb[0].mxu0
    %v424 = vpop.f32.mrb[0].mxu0
    %v425 = vadd.f32 %v116, %v424
    %v426 = vpop.f32.mrb[0].mxu0
    %427 = vmatprep.mubr.bf16.mxu0 0
    %428 = vmatmul.mubr.bf16.gmra.mrb[0].mxu0 %v301
    %v429 = vpop.f32.mrb[0].mxu0
    %v430 = vadd.f32 %v117, %v429
    %v431 = vpop.f32.mrb[0].mxu0
    %v432 = vpop.f32.mrb[0].mxu0
    %v433 = vadd.f32 %v118, %v432
    %v434 = vpop.f32.mrb[0].mxu0
    %435 = vmatprep.mubr.bf16.mxu0 0
    %436 = vmatmul.mubr.bf16.gmra.mrb[0].mxu0 %v304
    %v437 = vpop.f32.mrb[0].mxu0
    %v438 = vadd.f32 %v119, %v437
    %v439 = vpop.f32.mrb[0].mxu0
    %v440 = vpop.f32.mrb[0].mxu0
    %v441 = vadd.f32 %v120, %v440
    %v442 = vpop.f32.mrb[0].mxu0
    %443 = vmatprep.mubr.bf16.mxu0 0
    %444 = vmatmul.mubr.bf16.gmra.mrb[0].mxu0 %v307
    %v445 = vpop.f32.mrb[0].mxu0
    %v446 = vadd.f32 %v121, %v445
    %v447 = vpop.f32.mrb[0].mxu0
    %v448 = vpop.f32.mrb[0].mxu0
    %v449 = vadd.f32 %v122, %v448
    %v450 = vpop.f32.mrb[0].mxu0
    %451 = vmatprep.mubr.bf16.mxu0 0
    %452 = vmatmul.mubr.bf16.gmra.mrb[0].mxu0 %v310
    %v453 = vpop.f32.mrb[0].mxu0
    %v454 = vadd.f32 %v123, %v453
    %v455 = vpop.f32.mrb[0].mxu0
    %v456 = vpop.f32.mrb[0].mxu0
    %v457 = vadd.f32 %v124, %v456
    %v458 = vpop.f32.mrb[0].mxu0
    %459 = vmatprep.mubr.bf16.mxu0 0
    %460 = vmatmul.mubr.bf16.gmra.mrb[0].mxu0 %v313
    %v461 = vpop.f32.mrb[0].mxu0
    %v462 = vadd.f32 %v125, %v461
    %v463 = vpop.f32.mrb[0].mxu0
    %v464 = vpop.f32.mrb[0].mxu0
    %v465 = vadd.f32 %v126, %v464
    %v466 = vpop.f32.mrb[0].mxu0
    %467 = vmatprep.mubr.bf16.mxu0 0
    %468 = vmatmul.mubr.bf16.gmra.mrb[0].mxu0 %v316
    %v469 = vpop.f32.mrb[0].mxu0
    %v470 = vadd.f32 %v127, %v469
    %v471 = vpop.f32.mrb[0].mxu0
    %v472 = vpop.f32.mrb[0].mxu0
    %v473 = vadd.f32 %v128, %v472
    %v474 = vpop.f32.mrb[0].mxu0
    %475 = vmatprep.mubr.bf16.mxu0 0
    %476 = vmatmul.mubr.bf16.gmra.mrb[0].mxu0 %v319
    %v477 = vpop.f32.mrb[0].mxu0
    %v478 = vadd.f32 %v129, %v477
    %v479 = vpop.f32.mrb[0].mxu0
    %v480 = vpop.f32.mrb[0].mxu0
    %v481 = vadd.f32 %v130, %v480
    %v482 = vpop.f32.mrb[0].mxu0
    %483 = vmatprep.mubr.bf16.mxu0 0
    %484 = vmatmul.mubr.bf16.gmra.mrb[0].mxu0 %v322
    %v485 = vpop.f32.mrb[0].mxu0
    %v486 = vadd.f32 %v131, %v485
    %v487 = vpop.f32.mrb[0].mxu0
    %v488 = vpop.f32.mrb[0].mxu0
    %v489 = vadd.f32 %v132, %v488
    %v490 = vpop.f32.mrb[0].mxu0
    %491 = vmatprep.mubr.bf16.mxu0 0
    %492 = vmatmul.mubr.bf16.gmra.mrb[0].mxu0 %v325
    %v493 = vpop.f32.mrb[0].mxu0
    %v494 = vadd.f32 %v133, %v493
    %v495 = vpop.f32.mrb[0].mxu0
    %v496 = vpop.f32.mrb[0].mxu0
    %v497 = vadd.f32 %v134, %v496
    %v498 = vpop.f32.mrb[0].mxu0
    %499 = vmatprep.mubr.bf16.mxu0 0
    %500 = vmatmul.mubr.bf16.gmra.mrb[0].mxu0 %v328
    %v501 = vpop.f32.mrb[0].mxu0
    %v502 = vadd.f32 %v135, %v501
    %v503 = vpop.f32.mrb[0].mxu0
    %v504 = vpop.f32.mrb[0].mxu0
    %v505 = vadd.f32 %v136, %v504
    %v506 = vpop.f32.mrb[0].mxu0
    %507 = vmatprep.mubr.bf16.mxu0 0
    %508 = vmatmul.mubr.bf16.gmra.mrb[0].mxu0 %v331
    %v509 = vpop.f32.mrb[0].mxu0
    %v510 = vadd.f32 %v137, %v509
    %v511 = vpop.f32.mrb[0].mxu0
    %v512 = vpop.f32.mrb[0].mxu0
    %v513 = vadd.f32 %v138, %v512
    %v514 = vpop.f32.mrb[0].mxu0
    %515 = vmatprep.mubr.bf16.mxu0 0
    %516 = vmatmul.mubr.bf16.gmra.mrb[0].mxu0 %v334
    %v517 = vpop.f32.mrb[0].mxu0
    %v518 = vadd.f32 %v139, %v517
    %v519 = vpop.f32.mrb[0].mxu0
    %v520 = vpop.f32.mrb[0].mxu0
    %v521 = vadd.f32 %v140, %v520
    %v522 = vpop.f32.mrb[0].mxu0
    %523 = vmatprep.mubr.bf16.mxu0 0
    %524 = vmatmul.mubr.bf16.gmra.mrb[0].mxu0 %v337
    %v525 = vpop.f32.mrb[0].mxu0
    %v526 = vadd.f32 %v141, %v525
    %v527 = vpop.f32.mrb[0].mxu0
    %v528 = vpop.f32.mrb[0].mxu0
    %v529 = vadd.f32 %v142, %v528
    %v530 = vpop.f32.mrb[0].mxu0
    %531 = vmatprep.mubr.bf16.mxu0 0
    %532 = vmatmul.mubr.bf16.gmra.mrb[0].mxu0 %v340
    %v533 = vpop.f32.mrb[0].mxu0
    %v534 = vadd.f32 %v143, %v533
    %v535 = vpop.f32.mrb[0].mxu0
    %v536 = vpop.f32.mrb[0].mxu0
    %v537 = vadd.f32 %v144, %v536
    %v538 = vpop.f32.mrb[0].mxu0
    %539 = vmatprep.mubr.bf16.mxu0 0
    %540 = vmatmul.mubr.bf16.gmra.mrb[0].mxu0 %v343
    %v541 = vpop.f32.mrb[0].mxu0
    %v542 = vadd.f32 %v145, %v541
    %v543 = vpop.f32.mrb[0].mxu0
    %v544 = vpop.f32.mrb[0].mxu0
    %v545 = vadd.f32 %v146, %v544
    %v546 = vpop.f32.mrb[0].mxu0
    %547 = vmatprep.mubr.bf16.mxu0 0
    %548 = vmatmul.mubr.bf16.gmra.mrb[0].mxu0 %v346
    %v549 = vpop.f32.mrb[0].mxu0
    %v550 = vadd.f32 %v147, %v549
    %v551 = vpop.f32.mrb[0].mxu0
    %v552 = vpop.f32.mrb[0].mxu0
    %v553 = vadd.f32 %v148, %v552
    %v554 = vpop.f32.mrb[0].mxu0
    %555 = vmatprep.mubr.bf16.mxu0 0
    %556 = vmatmul.mubr.bf16.gmra.mrb[0].mxu0 %v349
    %v557 = vpop.f32.mrb[0].mxu0
    %v558 = vadd.f32 %v149, %v557
    %v559 = vpop.f32.mrb[0].mxu0
    %v560 = vpop.f32.mrb[0].mxu0
    %v561 = vadd.f32 %v150, %v560
    %v562 = vpop.f32.mrb[0].mxu0
    %563 = vmatprep.mubr.bf16.mxu0 0
    %564 = vmatmul.mubr.bf16.gmra.mrb[0].mxu0 %v352
    %v565 = vpop.f32.mrb[0].mxu0
    %v566 = vadd.f32 %v151, %v565
    %v567 = vpop.f32.mrb[0].mxu0
    %v568 = vpop.f32.mrb[0].mxu0
    %v569 = vadd.f32 %v152, %v568
    %v570 = vpop.f32.mrb[0].mxu0
    %571 = vmatprep.mubr.bf16.mxu0 0
    %572 = vmatmul.mubr.bf16.gmra.mrb[0].mxu0 %v355
    %v573 = vpop.f32.mrb[0].mxu0
    %v574 = vadd.f32 %v153, %v573
    %v575 = vpop.f32.mrb[0].mxu0
    %v576 = vpop.f32.mrb[0].mxu0
    %v577 = vadd.f32 %v154, %v576
    %v578 = vpop.f32.mrb[0].mxu0
    %579 = vmatprep.mubr.bf16.mxu0 0
    %580 = vmatmul.mubr.bf16.gmra.mrb[0].mxu0 %v358
    %v581 = vpop.f32.mrb[0].mxu0
    %v582 = vadd.f32 %v155, %v581
    %v583 = vpop.f32.mrb[0].mxu0
    %v584 = vpop.f32.mrb[0].mxu0
    %v585 = vadd.f32 %v156, %v584
    %v586 = vpop.f32.mrb[0].mxu0
    %587 = vmatprep.mubr.bf16.mxu0 0
    %588 = vmatmul.mubr.bf16.gmra.mrb[0].mxu0 %v361
    %v589 = vpop.f32.mrb[0].mxu0
    %v590 = vadd.f32 %v157, %v589
    %v591 = vpop.f32.mrb[0].mxu0
    %v592 = vpop.f32.mrb[0].mxu0
    %v593 = vpop.f32.mrb[0].mxu0
    %594 = vdwg.mxu0
    %v595 = vadd.f32 %v398, %v401
    %v596 = vadd.f32 %v595, %v406
    %v597 = vadd.f32 %v596, %v409
    %v598 = vadd.f32 %v597, %v414
    %v599 = vadd.f32 %v598, %v417
    %v600 = vadd.f32 %v599, %v422
    %v601 = vadd.f32 %v600, %v425
    %v602 = vadd.f32 %v601, %v430
    %v603 = vadd.f32 %v602, %v433
    %v604 = vadd.f32 %v603, %v438
    %v605 = vadd.f32 %v604, %v441
    %v606 = vadd.f32 %v605, %v446
    %v607 = vadd.f32 %v606, %v449
    %v608 = vadd.f32 %v607, %v454
    %v609 = vadd.f32 %v608, %v457
    %v610 = vadd.f32 %v609, %v462
    %v611 = vadd.f32 %v610, %v465
    %v612 = vadd.f32 %v611, %v470
    %v613 = vadd.f32 %v612, %v473
    %v614 = vadd.f32 %v613, %v478
    %v615 = vadd.f32 %v614, %v481
    %v616 = vadd.f32 %v615, %v486
    %v617 = vadd.f32 %v616, %v489
    %v618 = vadd.f32 %v617, %v494
    %v619 = vadd.f32 %v618, %v497
    %v620 = vadd.f32 %v619, %v502
    %v621 = vadd.f32 %v620, %v505
    %v622 = vadd.f32 %v621, %v510
    %v623 = vadd.f32 %v622, %v513
    %v624 = vadd.f32 %v623, %v518
    %v625 = vadd.f32 %v624, %v521
    %v626 = vadd.f32 %v625, %v526
    %v627 = vadd.f32 %v626, %v529
    %v628 = vadd.f32 %v627, %v534
    %v629 = vadd.f32 %v628, %v537
    %v630 = vadd.f32 %v629, %v542
    %v631 = vadd.f32 %v630, %v545
    %v632 = vadd.f32 %v631, %v550
    %v633 = vadd.f32 %v632, %v553
    %v634 = vadd.f32 %v633, %v558
    %v635 = vadd.f32 %v634, %v561
    %v636 = vadd.f32 %v635, %v566
    %v637 = vadd.f32 %v636, %v569
    %v638 = vadd.f32 %v637, %v574
    %v639 = vadd.f32 %v638, %v577
    %v640 = vadd.f32 %v639, %v582
    %v641 = vadd.f32 %v640, %v585
    %v642 = vadd.f32 %v641, %v590
    %v643 = vrot.slane %v642, 4
    %v644 = vadd.f32 %v642, %v643
    %v645 = vrot.slane %v644, 2
    %v646 = vadd.f32 %v644, %v645
    %v647 = vrot.slane %v646, 1
    %v648 = vadd.f32 %v646, %v647
    %v649 = vrcp.pop 392.0
    %v650 = vmul.f32 %v648, %v649
    %v651 = vsub.f32 %v398, %v650
    %v652 = vsub.f32 %v401, %v650
    %v653 = vsub.f32 %v406, %v650
    %v654 = vsub.f32 %v409, %v650
    %v655 = vsub.f32 %v414, %v650
    %v656 = vsub.f32 %v417, %v650
    %v657 = vsub.f32 %v422, %v650
    %v658 = vsub.f32 %v425, %v650
    %v659 = vsub.f32 %v430, %v650
    %v660 = vsub.f32 %v433, %v650
    %v661 = vsub.f32 %v438, %v650
    %v662 = vsub.f32 %v441, %v650
    %v663 = vsub.f32 %v446, %v650
    %v664 = vsub.f32 %v449, %v650
    %v665 = vsub.f32 %v454, %v650
    %v666 = vsub.f32 %v457, %v650
    %v667 = vsub.f32 %v462, %v650
    %v668 = vsub.f32 %v465, %v650
    %v669 = vsub.f32 %v470, %v650
    %v670 = vsub.f32 %v473, %v650
    %v671 = vsub.f32 %v478, %v650
    %v672 = vsub.f32 %v481, %v650
    %v673 = vsub.f32 %v486, %v650
    %v674 = vsub.f32 %v489, %v650
    %v675 = vsub.f32 %v494, %v650
    %v676 = vsub.f32 %v497, %v650
    %v677 = vsub.f32 %v502, %v650
    %v678 = vsub.f32 %v505, %v650
    %v679 = vsub.f32 %v510, %v650
    %v680 = vsub.f32 %v513, %v650
    %v681 = vsub.f32 %v518, %v650
    %v682 = vsub.f32 %v521, %v650
    %v683 = vsub.f32 %v526, %v650
    %v684 = vsub.f32 %v529, %v650
    %v685 = vsub.f32 %v534, %v650
    %v686 = vsub.f32 %v537, %v650
    %v687 = vsub.f32 %v542, %v650
    %v688 = vsub.f32 %v545, %v650
    %v689 = vsub.f32 %v550, %v650
    %v690 = vsub.f32 %v553, %v650
    %v691 = vsub.f32 %v558, %v650
    %v692 = vsub.f32 %v561, %v650
    %v693 = vsub.f32 %v566, %v650
    %v694 = vsub.f32 %v569, %v650
    %v695 = vsub.f32 %v574, %v650
    %v696 = vsub.f32 %v577, %v650
    %v697 = vsub.f32 %v582, %v650
    %v698 = vsub.f32 %v585, %v650
    %v699 = vsub.f32 %v590, %v650
    %v700 = vmul.f32 %v651, %v651
    %v701 = vmul.f32 %v652, %v652
    %v702 = vmul.f32 %v653, %v653
    %v703 = vmul.f32 %v654, %v654
    %v704 = vmul.f32 %v655, %v655
    %v705 = vmul.f32 %v656, %v656
    %v706 = vmul.f32 %v657, %v657
    %v707 = vmul.f32 %v658, %v658
    %v708 = vmul.f32 %v659, %v659
    %v709 = vmul.f32 %v660, %v660
    %v710 = vmul.f32 %v661, %v661
    %v711 = vmul.f32 %v662, %v662
    %v712 = vmul.f32 %v663, %v663
    %v713 = vmul.f32 %v664, %v664
    %v714 = vmul.f32 %v665, %v665
    %v715 = vmul.f32 %v666, %v666
    %v716 = vmul.f32 %v667, %v667
    %v717 = vmul.f32 %v668, %v668
    %v718 = vmul.f32 %v669, %v669
    %v719 = vmul.f32 %v670, %v670
    %v720 = vmul.f32 %v671, %v671
    %v721 = vmul.f32 %v672, %v672
    %v722 = vmul.f32 %v673, %v673
    %v723 = vmul.f32 %v674, %v674
    %v724 = vmul.f32 %v675, %v675
    %v725 = vmul.f32 %v676, %v676
    %v726 = vmul.f32 %v677, %v677
    %v727 = vmul.f32 %v678, %v678
    %v728 = vmul.f32 %v679, %v679
    %v729 = vmul.f32 %v680, %v680
    %v730 = vmul.f32 %v681, %v681
    %v731 = vmul.f32 %v682, %v682
    %v732 = vmul.f32 %v683, %v683
    %v733 = vmul.f32 %v684, %v684
    %v734 = vmul.f32 %v685, %v685
    %v735 = vmul.f32 %v686, %v686
    %v736 = vmul.f32 %v687, %v687
    %v737 = vmul.f32 %v688, %v688
    %v738 = vmul.f32 %v689, %v689
    %v739 = vmul.f32 %v690, %v690
    %v740 = vmul.f32 %v691, %v691
    %v741 = vmul.f32 %v692, %v692
    %v742 = vmul.f32 %v693, %v693
    %v743 = vmul.f32 %v694, %v694
    %v744 = vmul.f32 %v695, %v695
    %v745 = vmul.f32 %v696, %v696
    %v746 = vmul.f32 %v697, %v697
    %v747 = vmul.f32 %v698, %v698
    %v748 = vmul.f32 %v699, %v699
    %v749 = vadd.f32 %v700, %v701
    %v750 = vadd.f32 %v749, %v702
    %v751 = vadd.f32 %v750, %v703
    %v752 = vadd.f32 %v751, %v704
    %v753 = vadd.f32 %v752, %v705
    %v754 = vadd.f32 %v753, %v706
    %v755 = vadd.f32 %v754, %v707
    %v756 = vadd.f32 %v755, %v708
    %v757 = vadd.f32 %v756, %v709
    %v758 = vadd.f32 %v757, %v710
    %v759 = vadd.f32 %v758, %v711
    %v760 = vadd.f32 %v759, %v712
    %v761 = vadd.f32 %v760, %v713
    %v762 = vadd.f32 %v761, %v714
    %v763 = vadd.f32 %v762, %v715
    %v764 = vadd.f32 %v763, %v716
    %v765 = vadd.f32 %v764, %v717
    %v766 = vadd.f32 %v765, %v718
    %v767 = vadd.f32 %v766, %v719
    %v768 = vadd.f32 %v767, %v720
    %v769 = vadd.f32 %v768, %v721
    %v770 = vadd.f32 %v769, %v722
    %v771 = vadd.f32 %v770, %v723
    %v772 = vadd.f32 %v771, %v724
    %v773 = vadd.f32 %v772, %v725
    %v774 = vadd.f32 %v773, %v726
    %v775 = vadd.f32 %v774, %v727
    %v776 = vadd.f32 %v775, %v728
    %v777 = vadd.f32 %v776, %v729
    %v778 = vadd.f32 %v777, %v730
    %v779 = vadd.f32 %v778, %v731
    %v780 = vadd.f32 %v779, %v732
    %v781 = vadd.f32 %v780, %v733
    %v782 = vadd.f32 %v781, %v734
    %v783 = vadd.f32 %v782, %v735
    %v784 = vadd.f32 %v783, %v736
    %v785 = vadd.f32 %v784, %v737
    %v786 = vadd.f32 %v785, %v738
    %v787 = vadd.f32 %v786, %v739
    %v788 = vadd.f32 %v787, %v740
    %v789 = vadd.f32 %v788, %v741
    %v790 = vadd.f32 %v789, %v742
    %v791 = vadd.f32 %v790, %v743
    %v792 = vadd.f32 %v791, %v744
    %v793 = vadd.f32 %v792, %v745
    %v794 = vadd.f32 %v793, %v746
    %v795 = vadd.f32 %v794, %v747
    %v796 = vadd.f32 %v795, %v748
    %v797 = vrot.slane %v796, 4
    %v798 = vadd.f32 %v796, %v797
    %v799 = vrot.slane %v798, 2
    %v800 = vadd.f32 %v798, %v799
    %v801 = vrot.slane %v800, 1
    %v802 = vadd.f32 %v800, %v801
    %v803 = vmul.f32 %v802, %v649
    %v804 = vld [vmem:[#allocation4] sm:$0x1]
    %v805 = vadd.f32 %v803, 1e-05
    %v806 = vrsqrt.pop %v805
    %v807 = vmul.f32 %v804, %v806
    %v808 = vld [vmem:[#allocation6] sm:$0x1]
    %v809 = vmul.f32 %v650, %v807
    %v810 = vsub.f32 %v808, %v809
    %v812 = vlaneseq
    %v813 = vshrl.u32 %v812, 7
    %v814 = vsub.s32 0, %v813
    %v815 = vrot.slane %v807, %v814
    %v817 = vmul.f32 %v398, %v815
    %v818 = vmul.f32 %v401, %v815
    %v819 = vmul.f32 %v406, %v815
    %v820 = vmul.f32 %v409, %v815
    %v821 = vmul.f32 %v414, %v815
    %v822 = vmul.f32 %v417, %v815
    %v823 = vmul.f32 %v422, %v815
    %v824 = vmul.f32 %v425, %v815
    %v825 = vmul.f32 %v430, %v815
    %v826 = vmul.f32 %v433, %v815
    %v827 = vmul.f32 %v438, %v815
    %v828 = vmul.f32 %v441, %v815
    %v829 = vmul.f32 %v446, %v815
    %v830 = vmul.f32 %v449, %v815
    %v831 = vmul.f32 %v454, %v815
    %v832 = vmul.f32 %v457, %v815
    %v833 = vmul.f32 %v462, %v815
    %v834 = vmul.f32 %v465, %v815
    %v835 = vmul.f32 %v470, %v815
    %v836 = vmul.f32 %v473, %v815
    %v837 = vmul.f32 %v478, %v815
    %v838 = vmul.f32 %v481, %v815
    %v839 = vmul.f32 %v486, %v815
    %v840 = vmul.f32 %v489, %v815
    %v841 = vmul.f32 %v494, %v815
    %v842 = vmul.f32 %v497, %v815
    %v843 = vmul.f32 %v502, %v815
    %v844 = vmul.f32 %v505, %v815
    %v845 = vmul.f32 %v510, %v815
    %v846 = vmul.f32 %v513, %v815
    %v847 = vmul.f32 %v518, %v815
    %v848 = vmul.f32 %v521, %v815
    %v849 = vmul.f32 %v526, %v815
    %v850 = vmul.f32 %v529, %v815
    %v851 = vmul.f32 %v534, %v815
    %v852 = vmul.f32 %v537, %v815
    %v853 = vmul.f32 %v542, %v815
    %v854 = vmul.f32 %v545, %v815
    %v855 = vmul.f32 %v550, %v815
    %v856 = vmul.f32 %v553, %v815
    %v857 = vmul.f32 %v558, %v815
    %v858 = vmul.f32 %v561, %v815
    %v859 = vmul.f32 %v566, %v815
    %v860 = vmul.f32 %v569, %v815
    %v861 = vmul.f32 %v574, %v815
    %v862 = vmul.f32 %v577, %v815
    %v863 = vmul.f32 %v582, %v815
    %v864 = vmul.f32 %v585, %v815
    %v865 = vmul.f32 %v590, %v815
    %v867 = vlaneseq
    %v868 = vshrl.u32 %v867, 7
    %v869 = vsub.s32 0, %v868
    %v870 = vrot.slane %v810, %v869
    %v872 = vadd.f32 %v817, %v870
    %v873 = vadd.f32 %v818, %v870
    %v874 = vadd.f32 %v819, %v870
    %v875 = vadd.f32 %v820, %v870
    %v876 = vadd.f32 %v821, %v870
    %v877 = vadd.f32 %v822, %v870
    %v878 = vadd.f32 %v823, %v870
    %v879 = vadd.f32 %v824, %v870
    %v880 = vadd.f32 %v825, %v870
    %v881 = vadd.f32 %v826, %v870
    %v882 = vadd.f32 %v827, %v870
    %v883 = vadd.f32 %v828, %v870
    %v884 = vadd.f32 %v829, %v870
    %v885 = vadd.f32 %v830, %v870
    %v886 = vadd.f32 %v831, %v870
    %v887 = vadd.f32 %v832, %v870
    %v888 = vadd.f32 %v833, %v870
    %v889 = vadd.f32 %v834, %v870
    %v890 = vadd.f32 %v835, %v870
    %v891 = vadd.f32 %v836, %v870
    %v892 = vadd.f32 %v837, %v870
    %v893 = vadd.f32 %v838, %v870
    %v894 = vadd.f32 %v839, %v870
    %v895 = vadd.f32 %v840, %v870
    %v896 = vadd.f32 %v841, %v870
    %v897 = vadd.f32 %v842, %v870
    %v898 = vadd.f32 %v843, %v870
    %v899 = vadd.f32 %v844, %v870
    %v900 = vadd.f32 %v845, %v870
    %v901 = vadd.f32 %v846, %v870
    %v902 = vadd.f32 %v847, %v870
    %v903 = vadd.f32 %v848, %v870
    %v904 = vadd.f32 %v849, %v870
    %v905 = vadd.f32 %v850, %v870
    %v906 = vadd.f32 %v851, %v870
    %v907 = vadd.f32 %v852, %v870
    %v908 = vadd.f32 %v853, %v870
    %v909 = vadd.f32 %v854, %v870
    %v910 = vadd.f32 %v855, %v870
    %v911 = vadd.f32 %v856, %v870
    %v912 = vadd.f32 %v857, %v870
    %v913 = vadd.f32 %v858, %v870
    %v914 = vadd.f32 %v859, %v870
    %v915 = vadd.f32 %v860, %v870
    %v916 = vadd.f32 %v861, %v870
    %v917 = vadd.f32 %v862, %v870
    %v918 = vadd.f32 %v863, %v870
    %v919 = vadd.f32 %v864, %v870
    %v920 = vadd.f32 %v865, %v870
    %vm921 = vcmp.ge.f32.partialorder %v872, 0.0
    %vm922 = vcmp.ge.f32.partialorder %v873, 0.0
    %vm923 = vcmp.ge.f32.partialorder %v874, 0.0
    %vm924 = vcmp.ge.f32.partialorder %v875, 0.0
    %vm925 = vcmp.ge.f32.partialorder %v876, 0.0
    %vm926 = vcmp.ge.f32.partialorder %v877, 0.0
    %vm927 = vcmp.ge.f32.partialorder %v878, 0.0
    %vm928 = vcmp.ge.f32.partialorder %v879, 0.0
    %vm929 = vcmp.ge.f32.partialorder %v880, 0.0
    %vm930 = vcmp.ge.f32.partialorder %v881, 0.0
    %vm931 = vcmp.ge.f32.partialorder %v882, 0.0
    %vm932 = vcmp.ge.f32.partialorder %v883, 0.0
    %vm933 = vcmp.ge.f32.partialorder %v884, 0.0
    %vm934 = vcmp.ge.f32.partialorder %v885, 0.0
    %vm935 = vcmp.ge.f32.partialorder %v886, 0.0
    %vm936 = vcmp.ge.f32.partialorder %v887, 0.0
    %vm937 = vcmp.ge.f32.partialorder %v888, 0.0
    %vm938 = vcmp.ge.f32.partialorder %v889, 0.0
    %vm939 = vcmp.ge.f32.partialorder %v890, 0.0
    %vm940 = vcmp.ge.f32.partialorder %v891, 0.0
    %vm941 = vcmp.ge.f32.partialorder %v892, 0.0
    %vm942 = vcmp.ge.f32.partialorder %v893, 0.0
    %vm943 = vcmp.ge.f32.partialorder %v894, 0.0
    %vm944 = vcmp.ge.f32.partialorder %v895, 0.0
    %vm945 = vcmp.ge.f32.partialorder %v896, 0.0
    %vm946 = vcmp.ge.f32.partialorder %v897, 0.0
    %vm947 = vcmp.ge.f32.partialorder %v898, 0.0
    %vm948 = vcmp.ge.f32.partialorder %v899, 0.0
    %vm949 = vcmp.ge.f32.partialorder %v900, 0.0
    %vm950 = vcmp.ge.f32.partialorder %v901, 0.0
    %vm951 = vcmp.ge.f32.partialorder %v902, 0.0
    %vm952 = vcmp.ge.f32.partialorder %v903, 0.0
    %vm953 = vcmp.ge.f32.partialorder %v904, 0.0
    %vm954 = vcmp.ge.f32.partialorder %v905, 0.0
    %vm955 = vcmp.ge.f32.partialorder %v906, 0.0
    %vm956 = vcmp.ge.f32.partialorder %v907, 0.0
    %vm957 = vcmp.ge.f32.partialorder %v908, 0.0
    %vm958 = vcmp.ge.f32.partialorder %v909, 0.0
    %vm959 = vcmp.ge.f32.partialorder %v910, 0.0
    %vm960 = vcmp.ge.f32.partialorder %v911, 0.0
    %vm961 = vcmp.ge.f32.partialorder %v912, 0.0
    %vm962 = vcmp.ge.f32.partialorder %v913, 0.0
    %vm963 = vcmp.ge.f32.partialorder %v914, 0.0
    %vm964 = vcmp.ge.f32.partialorder %v915, 0.0
    %vm965 = vcmp.ge.f32.partialorder %v916, 0.0
    %vm966 = vcmp.ge.f32.partialorder %v917, 0.0
    %vm967 = vcmp.ge.f32.partialorder %v918, 0.0
    %vm968 = vcmp.ge.f32.partialorder %v919, 0.0
    %vm969 = vcmp.ge.f32.partialorder %v920, 0.0
    %v970 = vmul.f32 %v872, 0.1
    %v971 = vmul.f32 %v873, 0.1
    %v972 = vmul.f32 %v874, 0.1
    %v973 = vmul.f32 %v875, 0.1
    %v974 = vmul.f32 %v876, 0.1
    %v975 = vmul.f32 %v877, 0.1
    %v976 = vmul.f32 %v878, 0.1
    %v977 = vmul.f32 %v879, 0.1
    %v978 = vmul.f32 %v880, 0.1
    %v979 = vmul.f32 %v881, 0.1
    %v980 = vmul.f32 %v882, 0.1
    %v981 = vmul.f32 %v883, 0.1
    %v982 = vmul.f32 %v884, 0.1
    %v983 = vmul.f32 %v885, 0.1
    %v984 = vmul.f32 %v886, 0.1
    %v985 = vmul.f32 %v887, 0.1
    %v986 = vmul.f32 %v888, 0.1
    %v987 = vmul.f32 %v889, 0.1
    %v988 = vmul.f32 %v890, 0.1
    %v989 = vmul.f32 %v891, 0.1
    %v990 = vmul.f32 %v892, 0.1
    %v991 = vmul.f32 %v893, 0.1
    %v992 = vmul.f32 %v894, 0.1
    %v993 = vmul.f32 %v895, 0.1
    %v994 = vmul.f32 %v896, 0.1
    %v995 = vmul.f32 %v897, 0.1
    %v996 = vmul.f32 %v898, 0.1
    %v997 = vmul.f32 %v899, 0.1
    %v998 = vmul.f32 %v900, 0.1
    %v999 = vmul.f32 %v901, 0.1
    %v1000 = vmul.f32 %v902, 0.1
    %v1001 = vmul.f32 %v903, 0.1
    %v1002 = vmul.f32 %v904, 0.1
    %v1003 = vmul.f32 %v905, 0.1
    %v1004 = vmul.f32 %v906, 0.1
    %v1005 = vmul.f32 %v907, 0.1
    %v1006 = vmul.f32 %v908, 0.1
    %v1007 = vmul.f32 %v909, 0.1
    %v1008 = vmul.f32 %v910, 0.1
    %v1009 = vmul.f32 %v911, 0.1
    %v1010 = vmul.f32 %v912, 0.1
    %v1011 = vmul.f32 %v913, 0.1
    %v1012 = vmul.f32 %v914, 0.1
    %v1013 = vmul.f32 %v915, 0.1
    %v1014 = vmul.f32 %v916, 0.1
    %v1015 = vmul.f32 %v917, 0.1
    %v1016 = vmul.f32 %v918, 0.1
    %v1017 = vmul.f32 %v919, 0.1
    %v1018 = vmul.f32 %v920, 0.1
    %v1019 = vsel %vm921, %v872, %v970
    %v1020 = vsel %vm922, %v873, %v971
    %v1021 = vsel %vm923, %v874, %v972
    %v1022 = vsel %vm924, %v875, %v973
    %v1023 = vsel %vm925, %v876, %v974
    %v1024 = vsel %vm926, %v877, %v975
    %v1025 = vsel %vm927, %v878, %v976
    %v1026 = vsel %vm928, %v879, %v977
    %v1027 = vsel %vm929, %v880, %v978
    %v1028 = vsel %vm930, %v881, %v979
    %v1029 = vsel %vm931, %v882, %v980
    %v1030 = vsel %vm932, %v883, %v981
    %v1031 = vsel %vm933, %v884, %v982
    %v1032 = vsel %vm934, %v885, %v983
    %v1033 = vsel %vm935, %v886, %v984
    %v1034 = vsel %vm936, %v887, %v985
    %v1035 = vsel %vm937, %v888, %v986
    %v1036 = vsel %vm938, %v889, %v987
    %v1037 = vsel %vm939, %v890, %v988
    %v1038 = vsel %vm940, %v891, %v989
    %v1039 = vsel %vm941, %v892, %v990
    %v1040 = vsel %vm942, %v893, %v991
    %v1041 = vsel %vm943, %v894, %v992
    %v1042 = vsel %vm944, %v895, %v993
    %v1043 = vsel %vm945, %v896, %v994
    %v1044 = vsel %vm946, %v897, %v995
    %v1045 = vsel %vm947, %v898, %v996
    %v1046 = vsel %vm948, %v899, %v997
    %v1047 = vsel %vm949, %v900, %v998
    %v1048 = vsel %vm950, %v901, %v999
    %v1049 = vsel %vm951, %v902, %v1000
    %v1050 = vsel %vm952, %v903, %v1001
    %v1051 = vsel %vm953, %v904, %v1002
    %v1052 = vsel %vm954, %v905, %v1003
    %v1053 = vsel %vm955, %v906, %v1004
    %v1054 = vsel %vm956, %v907, %v1005
    %v1055 = vsel %vm957, %v908, %v1006
    %v1056 = vsel %vm958, %v909, %v1007
    %v1057 = vsel %vm959, %v910, %v1008
    %v1058 = vsel %vm960, %v911, %v1009
    %v1059 = vsel %vm961, %v912, %v1010
    %v1060 = vsel %vm962, %v913, %v1011
    %v1061 = vsel %vm963, %v914, %v1012
    %v1062 = vsel %vm964, %v915, %v1013
    %v1063 = vsel %vm965, %v916, %v1014
    %v1064 = vsel %vm966, %v917, %v1015
    %v1065 = vsel %vm967, %v918, %v1016
    %v1066 = vsel %vm968, %v919, %v1017
    %v1067 = vsel %vm969, %v920, %v1018
    %1068 = vst [vmem:[%s5] sm:$0xff] %v1019
    %1069 = vst [vmem:[%s5 + $0x8] sm:$0xff] %v1020
    %1070 = vst [vmem:[%s5 + $0x10] sm:$0xff] %v1021
    %1071 = vst [vmem:[%s5 + $0x18] sm:$0xff] %v1022
    %1072 = vst [vmem:[%s5 + $0x20] sm:$0xff] %v1023
    %1073 = vst [vmem:[%s5 + $0x28] sm:$0xff] %v1024
    %1074 = vst [vmem:[%s5 + $0x30] sm:$0xff] %v1025
    %1075 = vst [vmem:[%s5 + $0x38] sm:$0xff] %v1026
    %1076 = vst [vmem:[%s5 + $0x40] sm:$0xff] %v1027
    %1077 = vst [vmem:[%s5 + $0x48] sm:$0xff] %v1028
    %1078 = vst [vmem:[%s5 + $0x50] sm:$0xff] %v1029
    %1079 = vst [vmem:[%s5 + $0x58] sm:$0xff] %v1030
    %1080 = vst [vmem:[%s5 + $0x60] sm:$0xff] %v1031
    %1081 = vst [vmem:[%s5 + $0x68] sm:$0xff] %v1032
    %1082 = vst [vmem:[%s5 + $0x70] sm:$0xff] %v1033
    %1083 = vst [vmem:[%s5 + $0x78] sm:$0xff] %v1034
    %1084 = vst [vmem:[%s5 + $0x80] sm:$0xff] %v1035
    %1085 = vst [vmem:[%s5 + $0x88] sm:$0xff] %v1036
    %1086 = vst [vmem:[%s5 + $0x90] sm:$0xff] %v1037
    %1087 = vst [vmem:[%s5 + $0x98] sm:$0xff] %v1038
    %1088 = vst [vmem:[%s5 + $0xa0] sm:$0xff] %v1039
    %1089 = vst [vmem:[%s5 + $0xa8] sm:$0xff] %v1040
    %1090 = vst [vmem:[%s5 + $0xb0] sm:$0xff] %v1041
    %1091 = vst [vmem:[%s5 + $0xb8] sm:$0xff] %v1042
    %1092 = vst [vmem:[%s5 + $0xc0] sm:$0xff] %v1043
    %1093 = vst [vmem:[%s5 + $0xc8] sm:$0xff] %v1044
    %1094 = vst [vmem:[%s5 + $0xd0] sm:$0xff] %v1045
    %1095 = vst [vmem:[%s5 + $0xd8] sm:$0xff] %v1046
    %1096 = vst [vmem:[%s5 + $0xe0] sm:$0xff] %v1047
    %1097 = vst [vmem:[%s5 + $0xe8] sm:$0xff] %v1048
    %1098 = vst [vmem:[%s5 + $0xf0] sm:$0xff] %v1049
    %1099 = vst [vmem:[%s5 + $0xf8] sm:$0xff] %v1050
    %1100 = vst [vmem:[%s5 + $0x100] sm:$0xff] %v1051
    %1101 = vst [vmem:[%s5 + $0x108] sm:$0xff] %v1052
    %1102 = vst [vmem:[%s5 + $0x110] sm:$0xff] %v1053
    %1103 = vst [vmem:[%s5 + $0x118] sm:$0xff] %v1054
    %1104 = vst [vmem:[%s5 + $0x120] sm:$0xff] %v1055
    %1105 = vst [vmem:[%s5 + $0x128] sm:$0xff] %v1056
    %1106 = vst [vmem:[%s5 + $0x130] sm:$0xff] %v1057
    %1107 = vst [vmem:[%s5 + $0x138] sm:$0xff] %v1058
    %1108 = vst [vmem:[%s5 + $0x140] sm:$0xff] %v1059
    %1109 = vst [vmem:[%s5 + $0x148] sm:$0xff] %v1060
    %1110 = vst [vmem:[%s5 + $0x150] sm:$0xff] %v1061
    %1111 = vst [vmem:[%s5 + $0x158] sm:$0xff] %v1062
    %1112 = vst [vmem:[%s5 + $0x160] sm:$0xff] %v1063
    %1113 = vst [vmem:[%s5 + $0x168] sm:$0xff] %v1064
    %1114 = vst [vmem:[%s5 + $0x170] sm:$0xff] %v1065
    %1115 = vst [vmem:[%s5 + $0x178] sm:$0xff] %v1066
    %1116 = vst [vmem:[%s5 + $0x180] sm:$0xff] %v1067
    // Predicated region
    $region34: #{stretcher_forward.3} parent=1 // pred_check
      _
    $region35: #{stretcher_forward.3} parent=1 // pred_check_branch
      %1118 = sbr.rel (0) target = $region37
    $region36: #{stretcher_forward.3} parent=1 // pred_region
      _
    $region37: #{stretcher_forward.3} parent=1 // pred_fallthru
      _
    // Predicated region
    $region38: #{stretcher_forward.3} parent=1 // pred_check
      _
    $region39: #{stretcher_forward.3} parent=1 // pred_check_branch
      %1120 = sbr.rel (0) target = $region41
    $region40: #{stretcher_forward.3} parent=1 // pred_region
      _
    $region41: #{stretcher_forward.3} parent=1 // pred_fallthru
      _
    %1121 = vsyncpa [#allocation3], 1
    %1122 = vsyncpa [#allocation5], 1

// kernel: stretcher_forward.4
$region0: #{stretcher_forward.4}
  #allocation0 [shape = 'u32[]', space=smem, size = 0x4, offset = 0x4, fixed_abs, tag = 'smem constant byte address 0x4 - core index']
  #allocation1 [shape = 'u32[144,128]{1,0:T(1,128)}', space=vmem, size = 0x12000, scoped, tag = 'internal scratch']
  %s0 = inlined_call_operand.vmem [shape: bf16[98,2048], index: 0, kind: input, shape index: {}]
  %s1 = inlined_call_operand.hbm [shape: bf16[2048,128], index: 1, kind: input, shape index: {}]
  %s2 = inlined_call_operand.hbm [shape: f32[1,128], index: 2, kind: input, shape index: {}]
  %s3 = inlined_call_operand.hbm [shape: f32[1,128], index: 3, kind: input, shape index: {}]
  %s4 = inlined_call_operand.vmem [shape: f32[98,128], index: 4, kind: input, shape index: {}]
  %s5 = inlined_call_operand.vmem [shape: f32[98,128], index: 5, kind: output, shape index: {}]
  %s6 = sld [smem:[#allocation0]]
  $region42: #{stretcher_forward.4} parent=0
    _
  %s8 = ssub.s32 1, %s6
  %s9 = scalar_select 0, %s8, %s6
  $region1: #{stretcher_forward.4} parent=0
    #allocation2 [shape = 'u8[524288]{0}', space=vmem, size = 0x80000, scoped, tag = 'input window, operand 1, single buffered']
    #allocation3 [shape = 's32[1]{0}', space=sflag, size = 0x4, scoped, tag = 'scoped memory for stretcher_forward.4']
    #allocation4 [shape = 'u8[512]{0}', space=vmem, size = 0x400, scoped, tag = 'input window, operand 2, single buffered']
    #allocation5 [shape = 's32[1]{0}', space=sflag, size = 0x4, scoped, tag = 'scoped memory for stretcher_forward.4']
    #allocation6 [shape = 'u8[512]{0}', space=vmem, size = 0x400, scoped, tag = 'input window, operand 3, single buffered']
    %10 = vsyncpa [#allocation3], 0
    %11 = vsyncpa [#allocation5], 0
    // Predicated region
    $region2: #{stretcher_forward.4} parent=1 // pred_check
      _
    $region3: #{stretcher_forward.4} parent=1 // pred_check_branch
      %13 = sbr.rel (0) target = $region5
    $region4: #{stretcher_forward.4} parent=1 // pred_region
      _
    $region5: #{stretcher_forward.4} parent=1 // pred_fallthru
      _
    // Predicated region
    $region6: #{stretcher_forward.4} parent=1 // pred_check
      _
    $region7: #{stretcher_forward.4} parent=1 // pred_check_branch
      %15 = sbr.rel (0) target = $region9
    $region8: #{stretcher_forward.4} parent=1 // pred_region
      %s17 = ssub.s32 16384, 16384
      %18 = vsyncadd [#allocation3], %s17
      %s19 = sshll.u32 [#allocation2], 4
      %s20 = int_to_ptr.vmem [resolvable:$true] %s19
      %25 = dma.hbm_to_vmem [thread:$0]  %s1, 16384, %s20, [#allocation3], 64, 64, 4
    $region9: #{stretcher_forward.4} parent=1 // pred_fallthru
      _
    // Predicated region
    $region10: #{stretcher_forward.4} parent=1 // pred_check
      _
    $region11: #{stretcher_forward.4} parent=1 // pred_check_branch
      %27 = sbr.rel (0) target = $region13
    $region12: #{stretcher_forward.4} parent=1 // pred_region
      %s29 = ssub.s32 16, 16
      %30 = vsyncadd [#allocation5], %s29
      %s32 = sshll.u32 [#allocation4], 4
      %s33 = int_to_ptr.vmem [resolvable:$true] %s32
      %35 = dma.hbm_to_vmem [thread:$0]  %s2, 16, %s33, [#allocation5]
    $region13: #{stretcher_forward.4} parent=1 // pred_fallthru
      _
    // Predicated region
    $region14: #{stretcher_forward.4} parent=1 // pred_check
      _
    $region15: #{stretcher_forward.4} parent=1 // pred_check_branch
      %37 = sbr.rel (0) target = $region17
    $region16: #{stretcher_forward.4} parent=1 // pred_region
      %s39 = ssub.s32 16, 16
      %40 = vsyncadd [#allocation5], %s39
      %s42 = sshll.u32 [#allocation6], 4
      %s43 = int_to_ptr.vmem [resolvable:$true] %s42
      %45 = dma.hbm_to_vmem [thread:$0]  %s3, 16, %s43, [#allocation5]
    $region17: #{stretcher_forward.4} parent=1 // pred_fallthru
      _
    // Predicated region
    $region18: #{stretcher_forward.4} parent=1 // pred_check
      _
    $region19: #{stretcher_forward.4} parent=1 // pred_check_branch
      %47 = sbr.rel (0) target = $region21
    $region20: #{stretcher_forward.4} parent=1 // pred_region
      _
    $region21: #{stretcher_forward.4} parent=1 // pred_fallthru
      _
    // Predicated region
    $region22: #{stretcher_forward.4} parent=1 // pred_check
      _
    $region23: #{stretcher_forward.4} parent=1 // pred_check_branch
      %49 = sbr.rel (0) target = $region25
    $region24: #{stretcher_forward.4} parent=1 // pred_region
      %50 = dma.done [#allocation3], 16384
    $region25: #{stretcher_forward.4} parent=1 // pred_fallthru
      _
    // Predicated region
    $region26: #{stretcher_forward.4} parent=1 // pred_check
      _
    $region27: #{stretcher_forward.4} parent=1 // pred_check_branch
      %52 = sbr.rel (0) target = $region29
    $region28: #{stretcher_forward.4} parent=1 // pred_region
      %53 = dma.done [#allocation5], 16
    $region29: #{stretcher_forward.4} parent=1 // pred_fallthru
      _
    // Predicated region
    $region30: #{stretcher_forward.4} parent=1 // pred_check
      _
    $region31: #{stretcher_forward.4} parent=1 // pred_check_branch
      %55 = sbr.rel (0) target = $region33
    $region32: #{stretcher_forward.4} parent=1 // pred_region
      %56 = dma.done [#allocation5], 16
    $region33: #{stretcher_forward.4} parent=1 // pred_fallthru
      _
    %v58 = vld [vmem:[%s0] sm:$0xff]
    %v59 = vld [vmem:[%s0 + $0x8] sm:$0xff]
    %v60 = vld [vmem:[%s0 + $0x10] sm:$0xff]
    %v61 = vld [vmem:[%s0 + $0x18] sm:$0xff]
    %v62 = vld [vmem:[%s0 + $0x20] sm:$0xff]
    %v63 = vld [vmem:[%s0 + $0x28] sm:$0xff]
    %v64 = vld [vmem:[%s0 + $0x30] sm:$0xff]
    %v65 = vld [vmem:[%s0 + $0x38] sm:$0xff]
    %v66 = vld [vmem:[%s0 + $0x40] sm:$0xff]
    %v67 = vld [vmem:[%s0 + $0x48] sm:$0xff]
    %v68 = vld [vmem:[%s0 + $0x50] sm:$0xff]
    %v69 = vld [vmem:[%s0 + $0x58] sm:$0xff]
    %v70 = vld [vmem:[%s0 + $0x60] sm:$0xff]
    %v71 = vld [vmem:[%s0 + $0x68] sm:$0xff]
    %v72 = vld [vmem:[%s0 + $0x70] sm:$0xff]
    %v73 = vld [vmem:[%s0 + $0x78] sm:$0xff]
    %v74 = vld [vmem:[%s0 + $0x80] sm:$0xff]
    %v75 = vld [vmem:[%s0 + $0x88] sm:$0xff]
    %v76 = vld [vmem:[%s0 + $0x90] sm:$0xff]
    %v77 = vld [vmem:[%s0 + $0x98] sm:$0xff]
    %v78 = vld [vmem:[%s0 + $0xa0] sm:$0xff]
    %v79 = vld [vmem:[%s0 + $0xa8] sm:$0xff]
    %v80 = vld [vmem:[%s0 + $0xb0] sm:$0xff]
    %v81 = vld [vmem:[%s0 + $0xb8] sm:$0xff]
    %v82 = vld [vmem:[%s0 + $0xc0] sm:$0xff]
    %v83 = vld [vmem:[%s0 + $0xc8] sm:$0xff]
    %v84 = vld [vmem:[%s0 + $0xd0] sm:$0xff]
    %v85 = vld [vmem:[%s0 + $0xd8] sm:$0xff]
    %v86 = vld [vmem:[%s0 + $0xe0] sm:$0xff]
    %v87 = vld [vmem:[%s0 + $0xe8] sm:$0xff]
    %v88 = vld [vmem:[%s0 + $0xf0] sm:$0xff]
    %v89 = vld [vmem:[%s0 + $0xf8] sm:$0xff]
    %v90 = vld [vmem:[%s0 + $0x100] sm:$0xff]
    %v91 = vld [vmem:[%s0 + $0x108] sm:$0xff]
    %v92 = vld [vmem:[%s0 + $0x110] sm:$0xff]
    %v93 = vld [vmem:[%s0 + $0x118] sm:$0xff]
    %v94 = vld [vmem:[%s0 + $0x120] sm:$0xff]
    %v95 = vld [vmem:[%s0 + $0x128] sm:$0xff]
    %v96 = vld [vmem:[%s0 + $0x130] sm:$0xff]
    %v97 = vld [vmem:[%s0 + $0x138] sm:$0xff]
    %v98 = vld [vmem:[%s0 + $0x140] sm:$0xff]
    %v99 = vld [vmem:[%s0 + $0x148] sm:$0xff]
    %v100 = vld [vmem:[%s0 + $0x150] sm:$0xff]
    %v101 = vld [vmem:[%s0 + $0x158] sm:$0xff]
    %v102 = vld [vmem:[%s0 + $0x160] sm:$0xff]
    %v103 = vld [vmem:[%s0 + $0x168] sm:$0xff]
    %v104 = vld [vmem:[%s0 + $0x170] sm:$0xff]
    %v105 = vld [vmem:[%s0 + $0x178] sm:$0xff]
    %v106 = vld [vmem:[%s0 + $0x180] sm:$0xff]
    %v107 = vld [vmem:[%s0 + $0x188] sm:$0xff]
    %v108 = vld [vmem:[%s0 + $0x190] sm:$0xff]
    %v109 = vld [vmem:[%s0 + $0x198] sm:$0xff]
    %v110 = vld [vmem:[%s0 + $0x1a0] sm:$0xff]
    %v111 = vld [vmem:[%s0 + $0x1a8] sm:$0xff]
    %v112 = vld [vmem:[%s0 + $0x1b0] sm:$0xff]
    %v113 = vld [vmem:[%s0 + $0x1b8] sm:$0xff]
    %v114 = vld [vmem:[%s0 + $0x1c0] sm:$0xff]
    %v115 = vld [vmem:[%s0 + $0x1c8] sm:$0xff]
    %v116 = vld [vmem:[%s0 + $0x1d0] sm:$0xff]
    %v117 = vld [vmem:[%s0 + $0x1d8] sm:$0xff]
    %v118 = vld [vmem:[%s0 + $0x1e0] sm:$0xff]
    %v119 = vld [vmem:[%s0 + $0x1e8] sm:$0xff]
    %v120 = vld [vmem:[%s0 + $0x1f0] sm:$0xff]
    %v121 = vld [vmem:[%s0 + $0x1f8] sm:$0xff]
    %v122 = vld [vmem:[%s0 + $0x200] sm:$0xff]
    %v123 = vld [vmem:[%s0 + $0x208] sm:$0xff]
    %v124 = vld [vmem:[%s0 + $0x210] sm:$0xff]
    %v125 = vld [vmem:[%s0 + $0x218] sm:$0xff]
    %v126 = vld [vmem:[%s0 + $0x220] sm:$0xff]
    %v127 = vld [vmem:[%s0 + $0x228] sm:$0xff]
    %v128 = vld [vmem:[%s0 + $0x230] sm:$0xff]
    %v129 = vld [vmem:[%s0 + $0x238] sm:$0xff]
    %v130 = vld [vmem:[%s0 + $0x240] sm:$0xff]
    %v131 = vld [vmem:[%s0 + $0x248] sm:$0xff]
    %v132 = vld [vmem:[%s0 + $0x250] sm:$0xff]
    %v133 = vld [vmem:[%s0 + $0x258] sm:$0xff]
    %v134 = vld [vmem:[%s0 + $0x260] sm:$0xff]
    %v135 = vld [vmem:[%s0 + $0x268] sm:$0xff]
    %v136 = vld [vmem:[%s0 + $0x270] sm:$0xff]
    %v137 = vld [vmem:[%s0 + $0x278] sm:$0xff]
    %v138 = vld [vmem:[%s0 + $0x280] sm:$0xff]
    %v139 = vld [vmem:[%s0 + $0x288] sm:$0xff]
    %v140 = vld [vmem:[%s0 + $0x290] sm:$0xff]
    %v141 = vld [vmem:[%s0 + $0x298] sm:$0xff]
    %v142 = vld [vmem:[%s0 + $0x2a0] sm:$0xff]
    %v143 = vld [vmem:[%s0 + $0x2a8] sm:$0xff]
    %v144 = vld [vmem:[%s0 + $0x2b0] sm:$0xff]
    %v145 = vld [vmem:[%s0 + $0x2b8] sm:$0xff]
    %v146 = vld [vmem:[%s0 + $0x2c0] sm:$0xff]
    %v147 = vld [vmem:[%s0 + $0x2c8] sm:$0xff]
    %v148 = vld [vmem:[%s0 + $0x2d0] sm:$0xff]
    %v149 = vld [vmem:[%s0 + $0x2d8] sm:$0xff]
    %v150 = vld [vmem:[%s0 + $0x2e0] sm:$0xff]
    %v151 = vld [vmem:[%s0 + $0x2e8] sm:$0xff]
    %v152 = vld [vmem:[%s0 + $0x2f0] sm:$0xff]
    %v153 = vld [vmem:[%s0 + $0x2f8] sm:$0xff]
    %v154 = vld [vmem:[%s0 + $0x300] sm:$0x11]
    %v155 = vld [vmem:[%s0 + $0x308] sm:$0x11]
    %v156 = vld [vmem:[%s0 + $0x310] sm:$0x11]
    %v157 = vld [vmem:[%s0 + $0x318] sm:$0x11]
    %v158 = vld [vmem:[%s0 + $0x320] sm:$0x11]
    %v159 = vld [vmem:[%s0 + $0x328] sm:$0x11]
    %v160 = vld [vmem:[%s0 + $0x330] sm:$0x11]
    %v161 = vld [vmem:[%s0 + $0x338] sm:$0x11]
    %v162 = vld [vmem:[#allocation2] sm:$0xf]
    %v163 = vld [vmem:[#allocation2 + $0x4] sm:$0xf]
    %v164 = vld [vmem:[#allocation2 + $0x8] sm:$0xf]
    %v165 = vld [vmem:[#allocation2 + $0xc] sm:$0xf]
    %v166 = vld [vmem:[#allocation2 + $0x10] sm:$0xf]
    %v167 = vld [vmem:[#allocation2 + $0x14] sm:$0xf]
    %v168 = vld [vmem:[#allocation2 + $0x18] sm:$0xf]
    %v169 = vld [vmem:[#allocation2 + $0x1c] sm:$0xf]
    %v170 = vld [vmem:[#allocation2 + $0x20] sm:$0xf]
    %v171 = vld [vmem:[#allocation2 + $0x24] sm:$0xf]
    %v172 = vld [vmem:[#allocation2 + $0x28] sm:$0xf]
    %v173 = vld [vmem:[#allocation2 + $0x2c] sm:$0xf]
    %v174 = vld [vmem:[#allocation2 + $0x30] sm:$0xf]
    %v175 = vld [vmem:[#allocation2 + $0x34] sm:$0xf]
    %v176 = vld [vmem:[#allocation2 + $0x38] sm:$0xf]
    %v177 = vld [vmem:[#allocation2 + $0x3c] sm:$0xf]
    %v178 = vld [vmem:[#allocation2 + $0x40] sm:$0xf]
    %v179 = vld [vmem:[#allocation2 + $0x44] sm:$0xf]
    %v180 = vld [vmem:[#allocation2 + $0x48] sm:$0xf]
    %v181 = vld [vmem:[#allocation2 + $0x4c] sm:$0xf]
    %v182 = vld [vmem:[#allocation2 + $0x50] sm:$0xf]
    %v183 = vld [vmem:[#allocation2 + $0x54] sm:$0xf]
    %v184 = vld [vmem:[#allocation2 + $0x58] sm:$0xf]
    %v185 = vld [vmem:[#allocation2 + $0x5c] sm:$0xf]
    %v186 = vld [vmem:[#allocation2 + $0x60] sm:$0xf]
    %v187 = vld [vmem:[#allocation2 + $0x64] sm:$0xf]
    %v188 = vld [vmem:[#allocation2 + $0x68] sm:$0xf]
    %v189 = vld [vmem:[#allocation2 + $0x6c] sm:$0xf]
    %v190 = vld [vmem:[#allocation2 + $0x70] sm:$0xf]
    %v191 = vld [vmem:[#allocation2 + $0x74] sm:$0xf]
    %v192 = vld [vmem:[#allocation2 + $0x78] sm:$0xf]
    %v193 = vld [vmem:[#allocation2 + $0x7c] sm:$0xf]
    %v194 = vld [vmem:[#allocation2 + $0x80] sm:$0xf]
    %v195 = vld [vmem:[#allocation2 + $0x84] sm:$0xf]
    %v196 = vld [vmem:[#allocation2 + $0x88] sm:$0xf]
    %v197 = vld [vmem:[#allocation2 + $0x8c] sm:$0xf]
    %v198 = vld [vmem:[#allocation2 + $0x90] sm:$0xf]
    %v199 = vld [vmem:[#allocation2 + $0x94] sm:$0xf]
    %v200 = vld [vmem:[#allocation2 + $0x98] sm:$0xf]
    %v201 = vld [vmem:[#allocation2 + $0x9c] sm:$0xf]
    %v202 = vld [vmem:[#allocation2 + $0xa0] sm:$0xf]
    %v203 = vld [vmem:[#allocation2 + $0xa4] sm:$0xf]
    %v204 = vld [vmem:[#allocation2 + $0xa8] sm:$0xf]
    %v205 = vld [vmem:[#allocation2 + $0xac] sm:$0xf]
    %v206 = vld [vmem:[#allocation2 + $0xb0] sm:$0xf]
    %v207 = vld [vmem:[#allocation2 + $0xb4] sm:$0xf]
    %v208 = vld [vmem:[#allocation2 + $0xb8] sm:$0xf]
    %v209 = vld [vmem:[#allocation2 + $0xbc] sm:$0xf]
    %v210 = vld [vmem:[#allocation2 + $0xc0] sm:$0xf]
    %v211 = vld [vmem:[#allocation2 + $0xc4] sm:$0xf]
    %v212 = vld [vmem:[#allocation2 + $0xc8] sm:$0xf]
    %v213 = vld [vmem:[#allocation2 + $0xcc] sm:$0xf]
    %v214 = vld [vmem:[#allocation2 + $0xd0] sm:$0xf]
    %v215 = vld [vmem:[#allocation2 + $0xd4] sm:$0xf]
    %v216 = vld [vmem:[#allocation2 + $0xd8] sm:$0xf]
    %v217 = vld [vmem:[#allocation2 + $0xdc] sm:$0xf]
    %v218 = vld [vmem:[#allocation2 + $0xe0] sm:$0xf]
    %v219 = vld [vmem:[#allocation2 + $0xe4] sm:$0xf]
    %v220 = vld [vmem:[#allocation2 + $0xe8] sm:$0xf]
    %v221 = vld [vmem:[#allocation2 + $0xec] sm:$0xf]
    %v222 = vld [vmem:[#allocation2 + $0xf0] sm:$0xf]
    %v223 = vld [vmem:[#allocation2 + $0xf4] sm:$0xf]
    %v224 = vld [vmem:[#allocation2 + $0xf8] sm:$0xf]
    %v225 = vld [vmem:[#allocation2 + $0xfc] sm:$0xf]
    %v226 = vld [vmem:[#allocation2 + $0x100] sm:$0xf]
    %v227 = vld [vmem:[#allocation2 + $0x104] sm:$0xf]
    %v228 = vld [vmem:[#allocation2 + $0x108] sm:$0xf]
    %v229 = vld [vmem:[#allocation2 + $0x10c] sm:$0xf]
    %v230 = vld [vmem:[#allocation2 + $0x110] sm:$0xf]
    %v231 = vld [vmem:[#allocation2 + $0x114] sm:$0xf]
    %v232 = vld [vmem:[#allocation2 + $0x118] sm:$0xf]
    %v233 = vld [vmem:[#allocation2 + $0x11c] sm:$0xf]
    %v234 = vld [vmem:[#allocation2 + $0x120] sm:$0xf]
    %v235 = vld [vmem:[#allocation2 + $0x124] sm:$0xf]
    %v236 = vld [vmem:[#allocation2 + $0x128] sm:$0xf]
    %v237 = vld [vmem:[#allocation2 + $0x12c] sm:$0xf]
    %v238 = vld [vmem:[#allocation2 + $0x130] sm:$0xf]
    %v239 = vld [vmem:[#allocation2 + $0x134] sm:$0xf]
    %v240 = vld [vmem:[#allocation2 + $0x138] sm:$0xf]
    %v241 = vld [vmem:[#allocation2 + $0x13c] sm:$0xf]
    %v242 = vld [vmem:[#allocation2 + $0x140] sm:$0xf]
    %v243 = vld [vmem:[#allocation2 + $0x144] sm:$0xf]
    %v244 = vld [vmem:[#allocation2 + $0x148] sm:$0xf]
    %v245 = vld [vmem:[#allocation2 + $0x14c] sm:$0xf]
    %v246 = vld [vmem:[#allocation2 + $0x150] sm:$0xf]
    %v247 = vld [vmem:[#allocation2 + $0x154] sm:$0xf]
    %v248 = vld [vmem:[#allocation2 + $0x158] sm:$0xf]
    %v249 = vld [vmem:[#allocation2 + $0x15c] sm:$0xf]
    %v250 = vld [vmem:[#allocation2 + $0x160] sm:$0xf]
    %v251 = vld [vmem:[#allocation2 + $0x164] sm:$0xf]
    %v252 = vld [vmem:[#allocation2 + $0x168] sm:$0xf]
    %v253 = vld [vmem:[#allocation2 + $0x16c] sm:$0xf]
    %v254 = vld [vmem:[#allocation2 + $0x170] sm:$0xf]
    %v255 = vld [vmem:[#allocation2 + $0x174] sm:$0xf]
    %v256 = vld [vmem:[#allocation2 + $0x178] sm:$0xf]
    %v257 = vld [vmem:[#allocation2 + $0x17c] sm:$0xf]
    %v258 = vld [vmem:[#allocation2 + $0x180] sm:$0xf]
    %v259 = vld [vmem:[#allocation2 + $0x184] sm:$0xf]
    %v260 = vld [vmem:[#allocation2 + $0x188] sm:$0xf]
    %v261 = vld [vmem:[#allocation2 + $0x18c] sm:$0xf]
    %v262 = vld [vmem:[#allocation2 + $0x190] sm:$0xf]
    %v263 = vld [vmem:[#allocation2 + $0x194] sm:$0xf]
    %v264 = vld [vmem:[#allocation2 + $0x198] sm:$0xf]
    %v265 = vld [vmem:[#allocation2 + $0x19c] sm:$0xf]
    %v266 = vld [vmem:[#allocation2 + $0x1a0] sm:$0xf]
    %v267 = vld [vmem:[#allocation2 + $0x1a4] sm:$0xf]
    %v268 = vld [vmem:[#allocation2 + $0x1a8] sm:$0xf]
    %v269 = vld [vmem:[#allocation2 + $0x1ac] sm:$0xf]
    %v270 = vld [vmem:[#allocation2 + $0x1b0] sm:$0xf]
    %v271 = vld [vmem:[#allocation2 + $0x1b4] sm:$0xf]
    %v272 = vld [vmem:[#allocation2 + $0x1b8] sm:$0xf]
    %v273 = vld [vmem:[#allocation2 + $0x1bc] sm:$0xf]
    %v274 = vld [vmem:[#allocation2 + $0x1c0] sm:$0xf]
    %v275 = vld [vmem:[#allocation2 + $0x1c4] sm:$0xf]
    %v276 = vld [vmem:[#allocation2 + $0x1c8] sm:$0xf]
    %v277 = vld [vmem:[#allocation2 + $0x1cc] sm:$0xf]
    %v278 = vld [vmem:[#allocation2 + $0x1d0] sm:$0xf]
    %v279 = vld [vmem:[#allocation2 + $0x1d4] sm:$0xf]
    %v280 = vld [vmem:[#allocation2 + $0x1d8] sm:$0xf]
    %v281 = vld [vmem:[#allocation2 + $0x1dc] sm:$0xf]
    %v282 = vld [vmem:[#allocation2 + $0x1e0] sm:$0xf]
    %v283 = vld [vmem:[#allocation2 + $0x1e4] sm:$0xf]
    %v284 = vld [vmem:[#allocation2 + $0x1e8] sm:$0xf]
    %v285 = vld [vmem:[#allocation2 + $0x1ec] sm:$0xf]
    %v286 = vld [vmem:[#allocation2 + $0x1f0] sm:$0xf]
    %v287 = vld [vmem:[#allocation2 + $0x1f4] sm:$0xf]
    %v288 = vld [vmem:[#allocation2 + $0x1f8] sm:$0xf]
    %v289 = vld [vmem:[#allocation2 + $0x1fc] sm:$0xf]
    %v290 = vld [vmem:[#allocation2 + $0x200] sm:$0xf]
    %v291 = vld [vmem:[#allocation2 + $0x204] sm:$0xf]
    %v292 = vld [vmem:[#allocation2 + $0x208] sm:$0xf]
    %v293 = vld [vmem:[#allocation2 + $0x20c] sm:$0xf]
    %v294 = vld [vmem:[#allocation2 + $0x210] sm:$0xf]
    %v295 = vld [vmem:[#allocation2 + $0x214] sm:$0xf]
    %v296 = vld [vmem:[#allocation2 + $0x218] sm:$0xf]
    %v297 = vld [vmem:[#allocation2 + $0x21c] sm:$0xf]
    %v298 = vld [vmem:[#allocation2 + $0x220] sm:$0xf]
    %v299 = vld [vmem:[#allocation2 + $0x224] sm:$0xf]
    %v300 = vld [vmem:[#allocation2 + $0x228] sm:$0xf]
    %v301 = vld [vmem:[#allocation2 + $0x22c] sm:$0xf]
    %v302 = vld [vmem:[#allocation2 + $0x230] sm:$0xf]
    %v303 = vld [vmem:[#allocation2 + $0x234] sm:$0xf]
    %v304 = vld [vmem:[#allocation2 + $0x238] sm:$0xf]
    %v305 = vld [vmem:[#allocation2 + $0x23c] sm:$0xf]
    %v306 = vld [vmem:[#allocation2 + $0x240] sm:$0xf]
    %v307 = vld [vmem:[#allocation2 + $0x244] sm:$0xf]
    %v308 = vld [vmem:[#allocation2 + $0x248] sm:$0xf]
    %v309 = vld [vmem:[#allocation2 + $0x24c] sm:$0xf]
    %v310 = vld [vmem:[#allocation2 + $0x250] sm:$0xf]
    %v311 = vld [vmem:[#allocation2 + $0x254] sm:$0xf]
    %v312 = vld [vmem:[#allocation2 + $0x258] sm:$0xf]
    %v313 = vld [vmem:[#allocation2 + $0x25c] sm:$0xf]
    %v314 = vld [vmem:[#allocation2 + $0x260] sm:$0xf]
    %v315 = vld [vmem:[#allocation2 + $0x264] sm:$0xf]
    %v316 = vld [vmem:[#allocation2 + $0x268] sm:$0xf]
    %v317 = vld [vmem:[#allocation2 + $0x26c] sm:$0xf]
    %v318 = vld [vmem:[#allocation2 + $0x270] sm:$0xf]
    %v319 = vld [vmem:[#allocation2 + $0x274] sm:$0xf]
    %v320 = vld [vmem:[#allocation2 + $0x278] sm:$0xf]
    %v321 = vld [vmem:[#allocation2 + $0x27c] sm:$0xf]
    %v322 = vld [vmem:[#allocation2 + $0x280] sm:$0xf]
    %v323 = vld [vmem:[#allocation2 + $0x284] sm:$0xf]
    %v324 = vld [vmem:[#allocation2 + $0x288] sm:$0xf]
    %v325 = vld [vmem:[#allocation2 + $0x28c] sm:$0xf]
    %v326 = vld [vmem:[#allocation2 + $0x290] sm:$0xf]
    %v327 = vld [vmem:[#allocation2 + $0x294] sm:$0xf]
    %v328 = vld [vmem:[#allocation2 + $0x298] sm:$0xf]
    %v329 = vld [vmem:[#allocation2 + $0x29c] sm:$0xf]
    %v330 = vld [vmem:[#allocation2 + $0x2a0] sm:$0xf]
    %v331 = vld [vmem:[#allocation2 + $0x2a4] sm:$0xf]
    %v332 = vld [vmem:[#allocation2 + $0x2a8] sm:$0xf]
    %v333 = vld [vmem:[#allocation2 + $0x2ac] sm:$0xf]
    %v334 = vld [vmem:[#allocation2 + $0x2b0] sm:$0xf]
    %v335 = vld [vmem:[#allocation2 + $0x2b4] sm:$0xf]
    %v336 = vld [vmem:[#allocation2 + $0x2b8] sm:$0xf]
    %v337 = vld [vmem:[#allocation2 + $0x2bc] sm:$0xf]
    %v338 = vld [vmem:[#allocation2 + $0x2c0] sm:$0xf]
    %v339 = vld [vmem:[#allocation2 + $0x2c4] sm:$0xf]
    %v340 = vld [vmem:[#allocation2 + $0x2c8] sm:$0xf]
    %v341 = vld [vmem:[#allocation2 + $0x2cc] sm:$0xf]
    %v342 = vld [vmem:[#allocation2 + $0x2d0] sm:$0xf]
    %v343 = vld [vmem:[#allocation2 + $0x2d4] sm:$0xf]
    %v344 = vld [vmem:[#allocation2 + $0x2d8] sm:$0xf]
    %v345 = vld [vmem:[#allocation2 + $0x2dc] sm:$0xf]
    %v346 = vld [vmem:[#allocation2 + $0x2e0] sm:$0xf]
    %v347 = vld [vmem:[#allocation2 + $0x2e4] sm:$0xf]
    %v348 = vld [vmem:[#allocation2 + $0x2e8] sm:$0xf]
    %v349 = vld [vmem:[#allocation2 + $0x2ec] sm:$0xf]
    %v350 = vld [vmem:[#allocation2 + $0x2f0] sm:$0xf]
    %v351 = vld [vmem:[#allocation2 + $0x2f4] sm:$0xf]
    %v352 = vld [vmem:[#allocation2 + $0x2f8] sm:$0xf]
    %v353 = vld [vmem:[#allocation2 + $0x2fc] sm:$0xf]
    %v354 = vld [vmem:[#allocation2 + $0x300] sm:$0xf]
    %v355 = vld [vmem:[#allocation2 + $0x304] sm:$0xf]
    %v356 = vld [vmem:[#allocation2 + $0x308] sm:$0xf]
    %v357 = vld [vmem:[#allocation2 + $0x30c] sm:$0xf]
    %v358 = vld [vmem:[#allocation2 + $0x310] sm:$0xf]
    %v359 = vld [vmem:[#allocation2 + $0x314] sm:$0xf]
    %v360 = vld [vmem:[#allocation2 + $0x318] sm:$0xf]
    %v361 = vld [vmem:[#allocation2 + $0x31c] sm:$0xf]
    %v362 = vld [vmem:[#allocation2 + $0x320] sm:$0xf]
    %v363 = vld [vmem:[#allocation2 + $0x324] sm:$0xf]
    %v364 = vld [vmem:[#allocation2 + $0x328] sm:$0xf]
    %v365 = vld [vmem:[#allocation2 + $0x32c] sm:$0xf]
    %v366 = vld [vmem:[#allocation2 + $0x330] sm:$0xf]
    %v367 = vld [vmem:[#allocation2 + $0x334] sm:$0xf]
    %v368 = vld [vmem:[#allocation2 + $0x338] sm:$0xf]
    %v369 = vld [vmem:[#allocation2 + $0x33c] sm:$0xf]
    %v370 = vld [vmem:[#allocation2 + $0x340] sm:$0xf]
    %v371 = vld [vmem:[#allocation2 + $0x344] sm:$0xf]
    %v372 = vld [vmem:[#allocation2 + $0x348] sm:$0xf]
    %v373 = vld [vmem:[#allocation2 + $0x34c] sm:$0xf]
    %v374 = vld [vmem:[#allocation2 + $0x350] sm:$0xf]
    %v375 = vld [vmem:[#allocation2 + $0x354] sm:$0xf]
    %v376 = vld [vmem:[#allocation2 + $0x358] sm:$0xf]
    %v377 = vld [vmem:[#allocation2 + $0x35c] sm:$0xf]
    %v378 = vld [vmem:[#allocation2 + $0x360] sm:$0xf]
    %v379 = vld [vmem:[#allocation2 + $0x364] sm:$0xf]
    %v380 = vld [vmem:[#allocation2 + $0x368] sm:$0xf]
    %v381 = vld [vmem:[#allocation2 + $0x36c] sm:$0xf]
    %v382 = vld [vmem:[#allocation2 + $0x370] sm:$0xf]
    %v383 = vld [vmem:[#allocation2 + $0x374] sm:$0xf]
    %v384 = vld [vmem:[#allocation2 + $0x378] sm:$0xf]
    %v385 = vld [vmem:[#allocation2 + $0x37c] sm:$0xf]
    %v386 = vld [vmem:[#allocation2 + $0x380] sm:$0xf]
    %v387 = vld [vmem:[#allocation2 + $0x384] sm:$0xf]
    %v388 = vld [vmem:[#allocation2 + $0x388] sm:$0xf]
    %v389 = vld [vmem:[#allocation2 + $0x38c] sm:$0xf]
    %v390 = vld [vmem:[#allocation2 + $0x390] sm:$0xf]
    %v391 = vld [vmem:[#allocation2 + $0x394] sm:$0xf]
    %v392 = vld [vmem:[#allocation2 + $0x398] sm:$0xf]
    %v393 = vld [vmem:[#allocation2 + $0x39c] sm:$0xf]
    %v394 = vld [vmem:[#allocation2 + $0x3a0] sm:$0xf]
    %v395 = vld [vmem:[#allocation2 + $0x3a4] sm:$0xf]
    %v396 = vld [vmem:[#allocation2 + $0x3a8] sm:$0xf]
    %v397 = vld [vmem:[#allocation2 + $0x3ac] sm:$0xf]
    %v398 = vld [vmem:[#allocation2 + $0x3b0] sm:$0xf]
    %v399 = vld [vmem:[#allocation2 + $0x3b4] sm:$0xf]
    %v400 = vld [vmem:[#allocation2 + $0x3b8] sm:$0xf]
    %v401 = vld [vmem:[#allocation2 + $0x3bc] sm:$0xf]
    %v402 = vld [vmem:[#allocation2 + $0x3c0] sm:$0xf]
    %v403 = vld [vmem:[#allocation2 + $0x3c4] sm:$0xf]
    %v404 = vld [vmem:[#allocation2 + $0x3c8] sm:$0xf]
    %v405 = vld [vmem:[#allocation2 + $0x3cc] sm:$0xf]
    %v406 = vld [vmem:[#allocation2 + $0x3d0] sm:$0xf]
    %v407 = vld [vmem:[#allocation2 + $0x3d4] sm:$0xf]
    %v408 = vld [vmem:[#allocation2 + $0x3d8] sm:$0xf]
    %v409 = vld [vmem:[#allocation2 + $0x3dc] sm:$0xf]
    %v410 = vld [vmem:[#allocation2 + $0x3e0] sm:$0xf]
    %v411 = vld [vmem:[#allocation2 + $0x3e4] sm:$0xf]
    %v412 = vld [vmem:[#allocation2 + $0x3e8] sm:$0xf]
    %v413 = vld [vmem:[#allocation2 + $0x3ec] sm:$0xf]
    %v414 = vld [vmem:[#allocation2 + $0x3f0] sm:$0xf]
    %v415 = vld [vmem:[#allocation2 + $0x3f4] sm:$0xf]
    %v416 = vld [vmem:[#allocation2 + $0x3f8] sm:$0xf]
    %v417 = vld [vmem:[#allocation2 + $0x3fc] sm:$0xf]
    %v418 = vld [vmem:[%s4] sm:$0xff]
    %v419 = vld [vmem:[%s4 + $0x8] sm:$0xff]
    %v420 = vld [vmem:[%s4 + $0x10] sm:$0xff]
    %v421 = vld [vmem:[%s4 + $0x18] sm:$0xff]
    %v422 = vld [vmem:[%s4 + $0x20] sm:$0xff]
    %v423 = vld [vmem:[%s4 + $0x28] sm:$0xff]
    %v424 = vld [vmem:[%s4 + $0x30] sm:$0xff]
    %v425 = vld [vmem:[%s4 + $0x38] sm:$0xff]
    %v426 = vld [vmem:[%s4 + $0x40] sm:$0xff]
    %v427 = vld [vmem:[%s4 + $0x48] sm:$0xff]
    %v428 = vld [vmem:[%s4 + $0x50] sm:$0xff]
    %v429 = vld [vmem:[%s4 + $0x58] sm:$0xff]
    %v430 = vld [vmem:[%s4 + $0x60] sm:$0x3]
    %v535 = vunpack.c.l.b16 %v58
    %v536 = vunpack.c.h.b16 %v58
    %v537 = vunpack.c.l.b16 %v59
    %v538 = vunpack.c.h.b16 %v59
    %v539 = vunpack.c.l.b16 %v60
    %v540 = vunpack.c.h.b16 %v60
    %v541 = vunpack.c.l.b16 %v61
    %v542 = vunpack.c.h.b16 %v61
    %v543 = vunpack.c.l.b16 %v62
    %v544 = vunpack.c.h.b16 %v62
    %v545 = vunpack.c.l.b16 %v63
    %v546 = vunpack.c.h.b16 %v63
    %v547 = vunpack.c.l.b16 %v64
    %v548 = vunpack.c.h.b16 %v64
    %v549 = vunpack.c.l.b16 %v65
    %v550 = vunpack.c.h.b16 %v65
    %v551 = vunpack.c.l.b16 %v66
    %v552 = vunpack.c.h.b16 %v66
    %v553 = vunpack.c.l.b16 %v67
    %v554 = vunpack.c.h.b16 %v67
    %v555 = vunpack.c.l.b16 %v68
    %v556 = vunpack.c.h.b16 %v68
    %v557 = vunpack.c.l.b16 %v69
    %v558 = vunpack.c.h.b16 %v69
    %v559 = vunpack.c.l.b16 %v70
    %v560 = vunpack.c.h.b16 %v70
    %v561 = vunpack.c.l.b16 %v71
    %v562 = vunpack.c.h.b16 %v71
    %v563 = vunpack.c.l.b16 %v72
    %v564 = vunpack.c.h.b16 %v72
    %v565 = vunpack.c.l.b16 %v73
    %v566 = vunpack.c.h.b16 %v73
    %v567 = vunpack.c.l.b16 %v74
    %v568 = vunpack.c.h.b16 %v74
    %v569 = vunpack.c.l.b16 %v75
    %v570 = vunpack.c.h.b16 %v75
    %v571 = vunpack.c.l.b16 %v76
    %v572 = vunpack.c.h.b16 %v76
    %v573 = vunpack.c.l.b16 %v77
    %v574 = vunpack.c.h.b16 %v77
    %v575 = vunpack.c.l.b16 %v78
    %v576 = vunpack.c.h.b16 %v78
    %v577 = vunpack.c.l.b16 %v79
    %v578 = vunpack.c.h.b16 %v79
    %v579 = vunpack.c.l.b16 %v80
    %v580 = vunpack.c.h.b16 %v80
    %v581 = vunpack.c.l.b16 %v81
    %v582 = vunpack.c.h.b16 %v81
    %v583 = vunpack.c.l.b16 %v82
    %v584 = vunpack.c.h.b16 %v82
    %v585 = vunpack.c.l.b16 %v83
    %v586 = vunpack.c.h.b16 %v83
    %v587 = vunpack.c.l.b16 %v84
    %v588 = vunpack.c.h.b16 %v84
    %v589 = vunpack.c.l.b16 %v85
    %v590 = vunpack.c.h.b16 %v85
    %v591 = vunpack.c.l.b16 %v86
    %v592 = vunpack.c.h.b16 %v86
    %v593 = vunpack.c.l.b16 %v87
    %v594 = vunpack.c.h.b16 %v87
    %v595 = vunpack.c.l.b16 %v88
    %v596 = vunpack.c.h.b16 %v88
    %v597 = vunpack.c.l.b16 %v89
    %v598 = vunpack.c.h.b16 %v89
    %v599 = vunpack.c.l.b16 %v90
    %v600 = vunpack.c.h.b16 %v90
    %v601 = vunpack.c.l.b16 %v91
    %v602 = vunpack.c.h.b16 %v91
    %v603 = vunpack.c.l.b16 %v92
    %v604 = vunpack.c.h.b16 %v92
    %v605 = vunpack.c.l.b16 %v93
    %v606 = vunpack.c.h.b16 %v93
    %v607 = vunpack.c.l.b16 %v94
    %v608 = vunpack.c.h.b16 %v94
    %v609 = vunpack.c.l.b16 %v95
    %v610 = vunpack.c.h.b16 %v95
    %v611 = vunpack.c.l.b16 %v96
    %v612 = vunpack.c.h.b16 %v96
    %v613 = vunpack.c.l.b16 %v97
    %v614 = vunpack.c.h.b16 %v97
    %v615 = vunpack.c.l.b16 %v98
    %v616 = vunpack.c.h.b16 %v98
    %v617 = vunpack.c.l.b16 %v99
    %v618 = vunpack.c.h.b16 %v99
    %v619 = vunpack.c.l.b16 %v100
    %v620 = vunpack.c.h.b16 %v100
    %v621 = vunpack.c.l.b16 %v101
    %v622 = vunpack.c.h.b16 %v101
    %v623 = vunpack.c.l.b16 %v102
    %v624 = vunpack.c.h.b16 %v102
    %v625 = vunpack.c.l.b16 %v103
    %v626 = vunpack.c.h.b16 %v103
    %v627 = vunpack.c.l.b16 %v104
    %v628 = vunpack.c.h.b16 %v104
    %v629 = vunpack.c.l.b16 %v105
    %v630 = vunpack.c.h.b16 %v105
    %v631 = vunpack.c.l.b16 %v106
    %v632 = vunpack.c.h.b16 %v106
    %v633 = vunpack.c.l.b16 %v107
    %v634 = vunpack.c.h.b16 %v107
    %v635 = vunpack.c.l.b16 %v108
    %v636 = vunpack.c.h.b16 %v108
    %v637 = vunpack.c.l.b16 %v109
    %v638 = vunpack.c.h.b16 %v109
    %v639 = vunpack.c.l.b16 %v110
    %v640 = vunpack.c.h.b16 %v110
    %v641 = vunpack.c.l.b16 %v111
    %v642 = vunpack.c.h.b16 %v111
    %v643 = vunpack.c.l.b16 %v112
    %v644 = vunpack.c.h.b16 %v112
    %v645 = vunpack.c.l.b16 %v113
    %v646 = vunpack.c.h.b16 %v113
    %v647 = vunpack.c.l.b16 %v114
    %v648 = vunpack.c.h.b16 %v114
    %v649 = vunpack.c.l.b16 %v115
    %v650 = vunpack.c.h.b16 %v115
    %v651 = vunpack.c.l.b16 %v116
    %v652 = vunpack.c.h.b16 %v116
    %v653 = vunpack.c.l.b16 %v117
    %v654 = vunpack.c.h.b16 %v117
    %v655 = vunpack.c.l.b16 %v118
    %v656 = vunpack.c.h.b16 %v118
    %v657 = vunpack.c.l.b16 %v119
    %v658 = vunpack.c.h.b16 %v119
    %v659 = vunpack.c.l.b16 %v120
    %v660 = vunpack.c.h.b16 %v120
    %v661 = vunpack.c.l.b16 %v121
    %v662 = vunpack.c.h.b16 %v121
    %v663 = vunpack.c.l.b16 %v122
    %v664 = vunpack.c.h.b16 %v122
    %v665 = vunpack.c.l.b16 %v123
    %v666 = vunpack.c.h.b16 %v123
    %v667 = vunpack.c.l.b16 %v124
    %v668 = vunpack.c.h.b16 %v124
    %v669 = vunpack.c.l.b16 %v125
    %v670 = vunpack.c.h.b16 %v125
    %v671 = vunpack.c.l.b16 %v126
    %v672 = vunpack.c.h.b16 %v126
    %v673 = vunpack.c.l.b16 %v127
    %v674 = vunpack.c.h.b16 %v127
    %v675 = vunpack.c.l.b16 %v128
    %v676 = vunpack.c.h.b16 %v128
    %v677 = vunpack.c.l.b16 %v129
    %v678 = vunpack.c.h.b16 %v129
    %v679 = vunpack.c.l.b16 %v130
    %v680 = vunpack.c.h.b16 %v130
    %v681 = vunpack.c.l.b16 %v131
    %v682 = vunpack.c.h.b16 %v131
    %v683 = vunpack.c.l.b16 %v132
    %v684 = vunpack.c.h.b16 %v132
    %v685 = vunpack.c.l.b16 %v133
    %v686 = vunpack.c.h.b16 %v133
    %v687 = vunpack.c.l.b16 %v134
    %v688 = vunpack.c.h.b16 %v134
    %v689 = vunpack.c.l.b16 %v135
    %v690 = vunpack.c.h.b16 %v135
    %v691 = vunpack.c.l.b16 %v136
    %v692 = vunpack.c.h.b16 %v136
    %v693 = vunpack.c.l.b16 %v137
    %v694 = vunpack.c.h.b16 %v137
    %v695 = vunpack.c.l.b16 %v138
    %v696 = vunpack.c.h.b16 %v138
    %v697 = vunpack.c.l.b16 %v139
    %v698 = vunpack.c.h.b16 %v139
    %v699 = vunpack.c.l.b16 %v140
    %v700 = vunpack.c.h.b16 %v140
    %v701 = vunpack.c.l.b16 %v141
    %v702 = vunpack.c.h.b16 %v141
    %v703 = vunpack.c.l.b16 %v142
    %v704 = vunpack.c.h.b16 %v142
    %v705 = vunpack.c.l.b16 %v143
    %v706 = vunpack.c.h.b16 %v143
    %v707 = vunpack.c.l.b16 %v144
    %v708 = vunpack.c.h.b16 %v144
    %v709 = vunpack.c.l.b16 %v145
    %v710 = vunpack.c.h.b16 %v145
    %v711 = vunpack.c.l.b16 %v146
    %v712 = vunpack.c.h.b16 %v146
    %v713 = vunpack.c.l.b16 %v147
    %v714 = vunpack.c.h.b16 %v147
    %v715 = vunpack.c.l.b16 %v148
    %v716 = vunpack.c.h.b16 %v148
    %v717 = vunpack.c.l.b16 %v149
    %v718 = vunpack.c.h.b16 %v149
    %v719 = vunpack.c.l.b16 %v150
    %v720 = vunpack.c.h.b16 %v150
    %v721 = vunpack.c.l.b16 %v151
    %v722 = vunpack.c.h.b16 %v151
    %v723 = vunpack.c.l.b16 %v152
    %v724 = vunpack.c.h.b16 %v152
    %v725 = vunpack.c.l.b16 %v153
    %v726 = vunpack.c.h.b16 %v153
    %v727 = vunpack.c.l.b16 %v154
    %v728 = vunpack.c.h.b16 %v154
    %v729 = vunpack.c.l.b16 %v155
    %v730 = vunpack.c.h.b16 %v155
    %v731 = vunpack.c.l.b16 %v156
    %v732 = vunpack.c.h.b16 %v156
    %v733 = vunpack.c.l.b16 %v157
    %v734 = vunpack.c.h.b16 %v157
    %v735 = vunpack.c.l.b16 %v158
    %v736 = vunpack.c.h.b16 %v158
    %v737 = vunpack.c.l.b16 %v159
    %v738 = vunpack.c.h.b16 %v159
    %v739 = vunpack.c.l.b16 %v160
    %v740 = vunpack.c.h.b16 %v160
    %v741 = vunpack.c.l.b16 %v161
    %v742 = vunpack.c.h.b16 %v161
    %v743 = vpack.c.b16 %v551, %v535
    %v744 = vpack.c.b16 %v552, %v536
    %v745 = vpack.c.b16 %v553, %v537
    %v746 = vpack.c.b16 %v554, %v538
    %v747 = vpack.c.b16 %v555, %v539
    %v748 = vpack.c.b16 %v556, %v540
    %v749 = vpack.c.b16 %v557, %v541
    %v750 = vpack.c.b16 %v558, %v542
    %v751 = vpack.c.b16 %v559, %v543
    %v752 = vpack.c.b16 %v560, %v544
    %v753 = vpack.c.b16 %v561, %v545
    %v754 = vpack.c.b16 %v562, %v546
    %v755 = vpack.c.b16 %v563, %v547
    %v756 = vpack.c.b16 %v564, %v548
    %v757 = vpack.c.b16 %v565, %v549
    %v758 = vpack.c.b16 %v566, %v550
    %v759 = vpack.c.b16 %v583, %v567
    %v760 = vpack.c.b16 %v584, %v568
    %v761 = vpack.c.b16 %v585, %v569
    %v762 = vpack.c.b16 %v586, %v570
    %v763 = vpack.c.b16 %v587, %v571
    %v764 = vpack.c.b16 %v588, %v572
    %v765 = vpack.c.b16 %v589, %v573
    %v766 = vpack.c.b16 %v590, %v574
    %v767 = vpack.c.b16 %v591, %v575
    %v768 = vpack.c.b16 %v592, %v576
    %v769 = vpack.c.b16 %v593, %v577
    %v770 = vpack.c.b16 %v594, %v578
    %v771 = vpack.c.b16 %v595, %v579
    %v772 = vpack.c.b16 %v596, %v580
    %v773 = vpack.c.b16 %v597, %v581
    %v774 = vpack.c.b16 %v598, %v582
    %v775 = vpack.c.b16 %v615, %v599
    %v776 = vpack.c.b16 %v616, %v600
    %v777 = vpack.c.b16 %v617, %v601
    %v778 = vpack.c.b16 %v618, %v602
    %v779 = vpack.c.b16 %v619, %v603
    %v780 = vpack.c.b16 %v620, %v604
    %v781 = vpack.c.b16 %v621, %v605
    %v782 = vpack.c.b16 %v622, %v606
    %v783 = vpack.c.b16 %v623, %v607
    %v784 = vpack.c.b16 %v624, %v608
    %v785 = vpack.c.b16 %v625, %v609
    %v786 = vpack.c.b16 %v626, %v610
    %v787 = vpack.c.b16 %v627, %v611
    %v788 = vpack.c.b16 %v628, %v612
    %v789 = vpack.c.b16 %v629, %v613
    %v790 = vpack.c.b16 %v630, %v614
    %v791 = vpack.c.b16 %v647, %v631
    %v792 = vpack.c.b16 %v648, %v632
    %v793 = vpack.c.b16 %v649, %v633
    %v794 = vpack.c.b16 %v650, %v634
    %v795 = vpack.c.b16 %v651, %v635
    %v796 = vpack.c.b16 %v652, %v636
    %v797 = vpack.c.b16 %v653, %v637
    %v798 = vpack.c.b16 %v654, %v638
    %v799 = vpack.c.b16 %v655, %v639
    %v800 = vpack.c.b16 %v656, %v640
    %v801 = vpack.c.b16 %v657, %v641
    %v802 = vpack.c.b16 %v658, %v642
    %v803 = vpack.c.b16 %v659, %v643
    %v804 = vpack.c.b16 %v660, %v644
    %v805 = vpack.c.b16 %v661, %v645
    %v806 = vpack.c.b16 %v662, %v646
    %v807 = vpack.c.b16 %v679, %v663
    %v808 = vpack.c.b16 %v680, %v664
    %v809 = vpack.c.b16 %v681, %v665
    %v810 = vpack.c.b16 %v682, %v666
    %v811 = vpack.c.b16 %v683, %v667
    %v812 = vpack.c.b16 %v684, %v668
    %v813 = vpack.c.b16 %v685, %v669
    %v814 = vpack.c.b16 %v686, %v670
    %v815 = vpack.c.b16 %v687, %v671
    %v816 = vpack.c.b16 %v688, %v672
    %v817 = vpack.c.b16 %v689, %v673
    %v818 = vpack.c.b16 %v690, %v674
    %v819 = vpack.c.b16 %v691, %v675
    %v820 = vpack.c.b16 %v692, %v676
    %v821 = vpack.c.b16 %v693, %v677
    %v822 = vpack.c.b16 %v694, %v678
    %v823 = vpack.c.b16 %v711, %v695
    %v824 = vpack.c.b16 %v712, %v696
    %v825 = vpack.c.b16 %v713, %v697
    %v826 = vpack.c.b16 %v714, %v698
    %v827 = vpack.c.b16 %v715, %v699
    %v828 = vpack.c.b16 %v716, %v700
    %v829 = vpack.c.b16 %v717, %v701
    %v830 = vpack.c.b16 %v718, %v702
    %v831 = vpack.c.b16 %v719, %v703
    %v832 = vpack.c.b16 %v720, %v704
    %v833 = vpack.c.b16 %v721, %v705
    %v834 = vpack.c.b16 %v722, %v706
    %v835 = vpack.c.b16 %v723, %v707
    %v836 = vpack.c.b16 %v724, %v708
    %v837 = vpack.c.b16 %v725, %v709
    %v838 = vpack.c.b16 %v726, %v710
    %v839 = vpack.c.b16 %v727, %v727
    %v840 = vpack.c.b16 %v728, %v728
    %v841 = vpack.c.b16 %v729, %v729
    %v842 = vpack.c.b16 %v730, %v730
    %v843 = vpack.c.b16 %v731, %v731
    %v844 = vpack.c.b16 %v732, %v732
    %v845 = vpack.c.b16 %v733, %v733
    %v846 = vpack.c.b16 %v734, %v734
    %v847 = vpack.c.b16 %v735, %v735
    %v848 = vpack.c.b16 %v736, %v736
    %v849 = vpack.c.b16 %v737, %v737
    %v850 = vpack.c.b16 %v738, %v738
    %v851 = vpack.c.b16 %v739, %v739
    %v852 = vpack.c.b16 %v740, %v740
    %v853 = vpack.c.b16 %v741, %v741
    %v854 = vpack.c.b16 %v742, %v742
    %v1223 = vunpack.c.l.b16 %v162
    %v1224 = vunpack.c.l.b16 %v163
    %v1225 = vunpack.c.l.b16 %v164
    %v1226 = vunpack.c.l.b16 %v165
    %v1227 = vunpack.c.l.b16 %v166
    %v1228 = vunpack.c.l.b16 %v167
    %v1229 = vunpack.c.l.b16 %v168
    %v1230 = vunpack.c.l.b16 %v169
    %v1231 = vunpack.c.l.b16 %v170
    %v1232 = vunpack.c.l.b16 %v171
    %v1233 = vunpack.c.l.b16 %v172
    %v1234 = vunpack.c.l.b16 %v173
    %v1235 = vunpack.c.l.b16 %v174
    %v1236 = vunpack.c.l.b16 %v175
    %v1237 = vunpack.c.l.b16 %v176
    %v1238 = vunpack.c.l.b16 %v177
    %v1239 = vunpack.c.l.b16 %v178
    %v1240 = vunpack.c.l.b16 %v179
    %v1241 = vunpack.c.l.b16 %v180
    %v1242 = vunpack.c.l.b16 %v181
    %v1243 = vunpack.c.l.b16 %v182
    %v1244 = vunpack.c.l.b16 %v183
    %v1245 = vunpack.c.l.b16 %v184
    %v1246 = vunpack.c.l.b16 %v185
    %v1247 = vunpack.c.l.b16 %v186
    %v1248 = vunpack.c.l.b16 %v187
    %v1249 = vunpack.c.l.b16 %v188
    %v1250 = vunpack.c.l.b16 %v189
    %v1251 = vunpack.c.l.b16 %v190
    %v1252 = vunpack.c.l.b16 %v191
    %v1253 = vunpack.c.l.b16 %v192
    %v1254 = vunpack.c.l.b16 %v193
    %v1255 = vunpack.c.l.b16 %v194
    %v1256 = vunpack.c.l.b16 %v195
    %v1257 = vunpack.c.l.b16 %v196
    %v1258 = vunpack.c.l.b16 %v197
    %v1259 = vunpack.c.l.b16 %v198
    %v1260 = vunpack.c.l.b16 %v199
    %v1261 = vunpack.c.l.b16 %v200
    %v1262 = vunpack.c.l.b16 %v201
    %v1263 = vunpack.c.l.b16 %v202
    %v1264 = vunpack.c.l.b16 %v203
    %v1265 = vunpack.c.l.b16 %v204
    %v1266 = vunpack.c.l.b16 %v205
    %v1267 = vunpack.c.l.b16 %v206
    %v1268 = vunpack.c.l.b16 %v207
    %v1269 = vunpack.c.l.b16 %v208
    %v1270 = vunpack.c.l.b16 %v209
    %v1271 = vunpack.c.l.b16 %v210
    %v1272 = vunpack.c.l.b16 %v211
    %v1273 = vunpack.c.l.b16 %v212
    %v1274 = vunpack.c.l.b16 %v213
    %v1275 = vunpack.c.l.b16 %v214
    %v1276 = vunpack.c.l.b16 %v215
    %v1277 = vunpack.c.l.b16 %v216
    %v1278 = vunpack.c.l.b16 %v217
    %v1279 = vunpack.c.l.b16 %v218
    %v1280 = vunpack.c.l.b16 %v219
    %v1281 = vunpack.c.l.b16 %v220
    %v1282 = vunpack.c.l.b16 %v221
    %v1283 = vunpack.c.l.b16 %v222
    %v1284 = vunpack.c.l.b16 %v223
    %v1285 = vunpack.c.l.b16 %v224
    %v1286 = vunpack.c.l.b16 %v225
    %v1287 = vunpack.c.l.b16 %v226
    %v1288 = vunpack.c.l.b16 %v227
    %v1289 = vunpack.c.l.b16 %v228
    %v1290 = vunpack.c.l.b16 %v229
    %v1291 = vunpack.c.l.b16 %v230
    %v1292 = vunpack.c.l.b16 %v231
    %v1293 = vunpack.c.l.b16 %v232
    %v1294 = vunpack.c.l.b16 %v233
    %v1295 = vunpack.c.l.b16 %v234
    %v1296 = vunpack.c.l.b16 %v235
    %v1297 = vunpack.c.l.b16 %v236
    %v1298 = vunpack.c.l.b16 %v237
    %v1299 = vunpack.c.l.b16 %v238
    %v1300 = vunpack.c.l.b16 %v239
    %v1301 = vunpack.c.l.b16 %v240
    %v1302 = vunpack.c.l.b16 %v241
    %v1303 = vunpack.c.l.b16 %v242
    %v1304 = vunpack.c.l.b16 %v243
    %v1305 = vunpack.c.l.b16 %v244
    %v1306 = vunpack.c.l.b16 %v245
    %v1307 = vunpack.c.l.b16 %v246
    %v1308 = vunpack.c.l.b16 %v247
    %v1309 = vunpack.c.l.b16 %v248
    %v1310 = vunpack.c.l.b16 %v249
    %v1311 = vunpack.c.l.b16 %v250
    %v1312 = vunpack.c.l.b16 %v251
    %v1313 = vunpack.c.l.b16 %v252
    %v1314 = vunpack.c.l.b16 %v253
    %v1315 = vunpack.c.l.b16 %v254
    %v1316 = vunpack.c.l.b16 %v255
    %v1317 = vunpack.c.l.b16 %v256
    %v1318 = vunpack.c.l.b16 %v257
    %v1319 = vunpack.c.l.b16 %v258
    %v1320 = vunpack.c.l.b16 %v259
    %v1321 = vunpack.c.l.b16 %v260
    %v1322 = vunpack.c.l.b16 %v261
    %v1323 = vunpack.c.l.b16 %v262
    %v1324 = vunpack.c.l.b16 %v263
    %v1325 = vunpack.c.l.b16 %v264
    %v1326 = vunpack.c.l.b16 %v265
    %v1327 = vunpack.c.l.b16 %v266
    %v1328 = vunpack.c.l.b16 %v267
    %v1329 = vunpack.c.l.b16 %v268
    %v1330 = vunpack.c.l.b16 %v269
    %v1331 = vunpack.c.l.b16 %v270
    %v1332 = vunpack.c.l.b16 %v271
    %v1333 = vunpack.c.l.b16 %v272
    %v1334 = vunpack.c.l.b16 %v273
    %v1335 = vunpack.c.l.b16 %v274
    %v1336 = vunpack.c.l.b16 %v275
    %v1337 = vunpack.c.l.b16 %v276
    %v1338 = vunpack.c.l.b16 %v277
    %v1339 = vunpack.c.l.b16 %v278
    %v1340 = vunpack.c.l.b16 %v279
    %v1341 = vunpack.c.l.b16 %v280
    %v1342 = vunpack.c.l.b16 %v281
    %v1343 = vunpack.c.l.b16 %v282
    %v1344 = vunpack.c.l.b16 %v283
    %v1345 = vunpack.c.l.b16 %v284
    %v1346 = vunpack.c.l.b16 %v285
    %v1347 = vunpack.c.l.b16 %v286
    %v1348 = vunpack.c.l.b16 %v287
    %v1349 = vunpack.c.l.b16 %v288
    %v1350 = vunpack.c.l.b16 %v289
    %v1351 = vunpack.c.l.b16 %v290
    %v1352 = vunpack.c.l.b16 %v291
    %v1353 = vunpack.c.l.b16 %v292
    %v1354 = vunpack.c.l.b16 %v293
    %v1355 = vunpack.c.l.b16 %v294
    %v1356 = vunpack.c.l.b16 %v295
    %v1357 = vunpack.c.l.b16 %v296
    %v1358 = vunpack.c.l.b16 %v297
    %v1359 = vunpack.c.l.b16 %v298
    %v1360 = vunpack.c.l.b16 %v299
    %v1361 = vunpack.c.l.b16 %v300
    %v1362 = vunpack.c.l.b16 %v301
    %v1363 = vunpack.c.l.b16 %v302
    %v1364 = vunpack.c.l.b16 %v303
    %v1365 = vunpack.c.l.b16 %v304
    %v1366 = vunpack.c.l.b16 %v305
    %v1367 = vunpack.c.l.b16 %v306
    %v1368 = vunpack.c.l.b16 %v307
    %v1369 = vunpack.c.l.b16 %v308
    %v1370 = vunpack.c.l.b16 %v309
    %v1371 = vunpack.c.l.b16 %v310
    %v1372 = vunpack.c.l.b16 %v311
    %v1373 = vunpack.c.l.b16 %v312
    %v1374 = vunpack.c.l.b16 %v313
    %v1375 = vunpack.c.l.b16 %v314
    %v1376 = vunpack.c.l.b16 %v315
    %v1377 = vunpack.c.l.b16 %v316
    %v1378 = vunpack.c.l.b16 %v317
    %v1379 = vunpack.c.l.b16 %v318
    %v1380 = vunpack.c.l.b16 %v319
    %v1381 = vunpack.c.l.b16 %v320
    %v1382 = vunpack.c.l.b16 %v321
    %v1383 = vunpack.c.l.b16 %v322
    %v1384 = vunpack.c.l.b16 %v323
    %v1385 = vunpack.c.l.b16 %v324
    %v1386 = vunpack.c.l.b16 %v325
    %v1387 = vunpack.c.l.b16 %v326
    %v1388 = vunpack.c.l.b16 %v327
    %v1389 = vunpack.c.l.b16 %v328
    %v1390 = vunpack.c.l.b16 %v329
    %v1391 = vunpack.c.l.b16 %v330
    %v1392 = vunpack.c.l.b16 %v331
    %v1393 = vunpack.c.l.b16 %v332
    %v1394 = vunpack.c.l.b16 %v333
    %v1395 = vunpack.c.l.b16 %v334
    %v1396 = vunpack.c.l.b16 %v335
    %v1397 = vunpack.c.l.b16 %v336
    %v1398 = vunpack.c.l.b16 %v337
    %v1399 = vunpack.c.l.b16 %v338
    %v1400 = vunpack.c.l.b16 %v339
    %v1401 = vunpack.c.l.b16 %v340
    %v1402 = vunpack.c.l.b16 %v341
    %v1403 = vunpack.c.l.b16 %v342
    %v1404 = vunpack.c.l.b16 %v343
    %v1405 = vunpack.c.l.b16 %v344
    %v1406 = vunpack.c.l.b16 %v345
    %v1407 = vunpack.c.l.b16 %v346
    %v1408 = vunpack.c.l.b16 %v347
    %v1409 = vunpack.c.l.b16 %v348
    %v1410 = vunpack.c.l.b16 %v349
    %v1411 = vunpack.c.l.b16 %v350
    %v1412 = vunpack.c.l.b16 %v351
    %v1413 = vunpack.c.l.b16 %v352
    %v1414 = vunpack.c.l.b16 %v353
    %v1415 = vunpack.c.l.b16 %v354
    %v1416 = vunpack.c.l.b16 %v355
    %v1417 = vunpack.c.l.b16 %v356
    %v1418 = vunpack.c.l.b16 %v357
    %v1419 = vunpack.c.l.b16 %v358
    %v1420 = vunpack.c.l.b16 %v359
    %v1421 = vunpack.c.l.b16 %v360
    %v1422 = vunpack.c.l.b16 %v361
    %v1423 = vunpack.c.l.b16 %v362
    %v1424 = vunpack.c.l.b16 %v363
    %v1425 = vunpack.c.l.b16 %v364
    %v1426 = vunpack.c.l.b16 %v365
    %v1427 = vunpack.c.l.b16 %v366
    %v1428 = vunpack.c.l.b16 %v367
    %v1429 = vunpack.c.l.b16 %v368
    %v1430 = vunpack.c.l.b16 %v369
    %v1431 = vunpack.c.l.b16 %v370
    %v1432 = vunpack.c.l.b16 %v371
    %v1433 = vunpack.c.l.b16 %v372
    %v1434 = vunpack.c.l.b16 %v373
    %v1435 = vunpack.c.l.b16 %v374
    %v1436 = vunpack.c.l.b16 %v375
    %v1437 = vunpack.c.l.b16 %v376
    %v1438 = vunpack.c.l.b16 %v377
    %v1439 = vunpack.c.l.b16 %v378
    %v1440 = vunpack.c.l.b16 %v379
    %v1441 = vunpack.c.l.b16 %v380
    %v1442 = vunpack.c.l.b16 %v381
    %v1443 = vunpack.c.l.b16 %v382
    %v1444 = vunpack.c.l.b16 %v383
    %v1445 = vunpack.c.l.b16 %v384
    %v1446 = vunpack.c.l.b16 %v385
    %v1447 = vunpack.c.l.b16 %v386
    %v1448 = vunpack.c.l.b16 %v387
    %v1449 = vunpack.c.l.b16 %v388
    %v1450 = vunpack.c.l.b16 %v389
    %v1451 = vunpack.c.l.b16 %v390
    %v1452 = vunpack.c.l.b16 %v391
    %v1453 = vunpack.c.l.b16 %v392
    %v1454 = vunpack.c.l.b16 %v393
    %v1455 = vunpack.c.l.b16 %v394
    %v1456 = vunpack.c.l.b16 %v395
    %v1457 = vunpack.c.l.b16 %v396
    %v1458 = vunpack.c.l.b16 %v397
    %v1459 = vunpack.c.l.b16 %v398
    %v1460 = vunpack.c.l.b16 %v399
    %v1461 = vunpack.c.l.b16 %v400
    %v1462 = vunpack.c.l.b16 %v401
    %v1463 = vunpack.c.l.b16 %v402
    %v1464 = vunpack.c.l.b16 %v403
    %v1465 = vunpack.c.l.b16 %v404
    %v1466 = vunpack.c.l.b16 %v405
    %v1467 = vunpack.c.l.b16 %v406
    %v1468 = vunpack.c.l.b16 %v407
    %v1469 = vunpack.c.l.b16 %v408
    %v1470 = vunpack.c.l.b16 %v409
    %v1471 = vunpack.c.l.b16 %v410
    %v1472 = vunpack.c.l.b16 %v411
    %v1473 = vunpack.c.l.b16 %v412
    %v1474 = vunpack.c.l.b16 %v413
    %v1475 = vunpack.c.l.b16 %v414
    %v1476 = vunpack.c.l.b16 %v415
    %v1477 = vunpack.c.l.b16 %v416
    %v1478 = vunpack.c.l.b16 %v417
    %v1479 = vpack.c.b16 %v1224, %v1223
    %v1480 = vpack.c.b16 %v1226, %v1225
    %v1481 = vpack.c.b16 %v1228, %v1227
    %v1482 = vpack.c.b16 %v1230, %v1229
    %v1483 = vpack.c.b16 %v1232, %v1231
    %v1484 = vpack.c.b16 %v1234, %v1233
    %v1485 = vpack.c.b16 %v1236, %v1235
    %v1486 = vpack.c.b16 %v1238, %v1237
    %v1487 = vpack.c.b16 %v1240, %v1239
    %v1488 = vpack.c.b16 %v1242, %v1241
    %v1489 = vpack.c.b16 %v1244, %v1243
    %v1490 = vpack.c.b16 %v1246, %v1245
    %v1491 = vpack.c.b16 %v1248, %v1247
    %v1492 = vpack.c.b16 %v1250, %v1249
    %v1493 = vpack.c.b16 %v1252, %v1251
    %v1494 = vpack.c.b16 %v1254, %v1253
    %v1495 = vpack.c.b16 %v1256, %v1255
    %v1496 = vpack.c.b16 %v1258, %v1257
    %v1497 = vpack.c.b16 %v1260, %v1259
    %v1498 = vpack.c.b16 %v1262, %v1261
    %v1499 = vpack.c.b16 %v1264, %v1263
    %v1500 = vpack.c.b16 %v1266, %v1265
    %v1501 = vpack.c.b16 %v1268, %v1267
    %v1502 = vpack.c.b16 %v1270, %v1269
    %v1503 = vpack.c.b16 %v1272, %v1271
    %v1504 = vpack.c.b16 %v1274, %v1273
    %v1505 = vpack.c.b16 %v1276, %v1275
    %v1506 = vpack.c.b16 %v1278, %v1277
    %v1507 = vpack.c.b16 %v1280, %v1279
    %v1508 = vpack.c.b16 %v1282, %v1281
    %v1509 = vpack.c.b16 %v1284, %v1283
    %v1510 = vpack.c.b16 %v1286, %v1285
    %v1511 = vpack.c.b16 %v1288, %v1287
    %v1512 = vpack.c.b16 %v1290, %v1289
    %v1513 = vpack.c.b16 %v1292, %v1291
    %v1514 = vpack.c.b16 %v1294, %v1293
    %v1515 = vpack.c.b16 %v1296, %v1295
    %v1516 = vpack.c.b16 %v1298, %v1297
    %v1517 = vpack.c.b16 %v1300, %v1299
    %v1518 = vpack.c.b16 %v1302, %v1301
    %v1519 = vpack.c.b16 %v1304, %v1303
    %v1520 = vpack.c.b16 %v1306, %v1305
    %v1521 = vpack.c.b16 %v1308, %v1307
    %v1522 = vpack.c.b16 %v1310, %v1309
    %v1523 = vpack.c.b16 %v1312, %v1311
    %v1524 = vpack.c.b16 %v1314, %v1313
    %v1525 = vpack.c.b16 %v1316, %v1315
    %v1526 = vpack.c.b16 %v1318, %v1317
    %v1527 = vpack.c.b16 %v1320, %v1319
    %v1528 = vpack.c.b16 %v1322, %v1321
    %v1529 = vpack.c.b16 %v1324, %v1323
    %v1530 = vpack.c.b16 %v1326, %v1325
    %v1531 = vpack.c.b16 %v1328, %v1327
    %v1532 = vpack.c.b16 %v1330, %v1329
    %v1533 = vpack.c.b16 %v1332, %v1331
    %v1534 = vpack.c.b16 %v1334, %v1333
    %v1535 = vpack.c.b16 %v1336, %v1335
    %v1536 = vpack.c.b16 %v1338, %v1337
    %v1537 = vpack.c.b16 %v1340, %v1339
    %v1538 = vpack.c.b16 %v1342, %v1341
    %v1539 = vpack.c.b16 %v1344, %v1343
    %v1540 = vpack.c.b16 %v1346, %v1345
    %v1541 = vpack.c.b16 %v1348, %v1347
    %v1542 = vpack.c.b16 %v1350, %v1349
    %v1543 = vpack.c.b16 %v1352, %v1351
    %v1544 = vpack.c.b16 %v1354, %v1353
    %v1545 = vpack.c.b16 %v1356, %v1355
    %v1546 = vpack.c.b16 %v1358, %v1357
    %v1547 = vpack.c.b16 %v1360, %v1359
    %v1548 = vpack.c.b16 %v1362, %v1361
    %v1549 = vpack.c.b16 %v1364, %v1363
    %v1550 = vpack.c.b16 %v1366, %v1365
    %v1551 = vpack.c.b16 %v1368, %v1367
    %v1552 = vpack.c.b16 %v1370, %v1369
    %v1553 = vpack.c.b16 %v1372, %v1371
    %v1554 = vpack.c.b16 %v1374, %v1373
    %v1555 = vpack.c.b16 %v1376, %v1375
    %v1556 = vpack.c.b16 %v1378, %v1377
    %v1557 = vpack.c.b16 %v1380, %v1379
    %v1558 = vpack.c.b16 %v1382, %v1381
    %v1559 = vpack.c.b16 %v1384, %v1383
    %v1560 = vpack.c.b16 %v1386, %v1385
    %v1561 = vpack.c.b16 %v1388, %v1387
    %v1562 = vpack.c.b16 %v1390, %v1389
    %v1563 = vpack.c.b16 %v1392, %v1391
    %v1564 = vpack.c.b16 %v1394, %v1393
    %v1565 = vpack.c.b16 %v1396, %v1395
    %v1566 = vpack.c.b16 %v1398, %v1397
    %v1567 = vpack.c.b16 %v1400, %v1399
    %v1568 = vpack.c.b16 %v1402, %v1401
    %v1569 = vpack.c.b16 %v1404, %v1403
    %v1570 = vpack.c.b16 %v1406, %v1405
    %v1571 = vpack.c.b16 %v1408, %v1407
    %v1572 = vpack.c.b16 %v1410, %v1409
    %v1573 = vpack.c.b16 %v1412, %v1411
    %v1574 = vpack.c.b16 %v1414, %v1413
    %v1575 = vpack.c.b16 %v1416, %v1415
    %v1576 = vpack.c.b16 %v1418, %v1417
    %v1577 = vpack.c.b16 %v1420, %v1419
    %v1578 = vpack.c.b16 %v1422, %v1421
    %v1579 = vpack.c.b16 %v1424, %v1423
    %v1580 = vpack.c.b16 %v1426, %v1425
    %v1581 = vpack.c.b16 %v1428, %v1427
    %v1582 = vpack.c.b16 %v1430, %v1429
    %v1583 = vpack.c.b16 %v1432, %v1431
    %v1584 = vpack.c.b16 %v1434, %v1433
    %v1585 = vpack.c.b16 %v1436, %v1435
    %v1586 = vpack.c.b16 %v1438, %v1437
    %v1587 = vpack.c.b16 %v1440, %v1439
    %v1588 = vpack.c.b16 %v1442, %v1441
    %v1589 = vpack.c.b16 %v1444, %v1443
    %v1590 = vpack.c.b16 %v1446, %v1445
    %v1591 = vpack.c.b16 %v1448, %v1447
    %v1592 = vpack.c.b16 %v1450, %v1449
    %v1593 = vpack.c.b16 %v1452, %v1451
    %v1594 = vpack.c.b16 %v1454, %v1453
    %v1595 = vpack.c.b16 %v1456, %v1455
    %v1596 = vpack.c.b16 %v1458, %v1457
    %v1597 = vpack.c.b16 %v1460, %v1459
    %v1598 = vpack.c.b16 %v1462, %v1461
    %v1599 = vpack.c.b16 %v1464, %v1463
    %v1600 = vpack.c.b16 %v1466, %v1465
    %v1601 = vpack.c.b16 %v1468, %v1467
    %v1602 = vpack.c.b16 %v1470, %v1469
    %v1603 = vpack.c.b16 %v1472, %v1471
    %v1604 = vpack.c.b16 %v1474, %v1473
    %v1605 = vpack.c.b16 %v1476, %v1475
    %v1606 = vpack.c.b16 %v1478, %v1477
    %1735 = vmatprep.subr.bf16.mxu0 0
    %1736 = vmatpush1.bf16.msra.mxu0 %v1479
    %1737 = vmatprep.subr.bf16.mxu0 0
    %1738 = vmatpush1.bf16.msra.mxu0 %v1480
    %1739 = vmatprep.subr.bf16.mxu0 0
    %1740 = vmatpush1.bf16.msra.mxu0 %v1481
    %1741 = vmatprep.subr.bf16.mxu0 0
    %1742 = vmatpush1.bf16.msra.mxu0 %v1482
    %1743 = vmatprep.subr.bf16.mxu0 0
    %1744 = vmatpush1.bf16.msra.mxu0 %v1483
    %1745 = vmatprep.subr.bf16.mxu0 0
    %1746 = vmatpush1.bf16.msra.mxu0 %v1484
    %1747 = vmatprep.subr.bf16.mxu0 0
    %1748 = vmatpush1.bf16.msra.mxu0 %v1485
    %1749 = vmatprep.subr.bf16.mxu0 0
    %1750 = vmatpush1.bf16.msra.mxu0 %v1486
    %1751 = vmatprep.subr.bf16.mxu0 0
    %1752 = vmatpush1.bf16.msra.mxu0 %v1487
    %1753 = vmatprep.subr.bf16.mxu0 0
    %1754 = vmatpush1.bf16.msra.mxu0 %v1488
    %1755 = vmatprep.subr.bf16.mxu0 0
    %1756 = vmatpush1.bf16.msra.mxu0 %v1489
    %1757 = vmatprep.subr.bf16.mxu0 0
    %1758 = vmatpush1.bf16.msra.mxu0 %v1490
    %1759 = vmatprep.subr.bf16.mxu0 0
    %1760 = vmatpush1.bf16.msra.mxu0 %v1491
    %1761 = vmatprep.subr.bf16.mxu0 0
    %1762 = vmatpush1.bf16.msra.mxu0 %v1492
    %1763 = vmatprep.subr.bf16.mxu0 0
    %1764 = vmatpush1.bf16.msra.mxu0 %v1493
    %1765 = vmatprep.subr.bf16.mxu0 0
    %1766 = vmatpush1.bf16.msra.mxu0 %v1494
    %1767 = vmatprep.mubr.bf16.mxu0 %v744
    %1768 = vmatmul.mubr.bf16.gmra.mrb[0].mxu0 %v743
    %v1769 = vpop.f32.mrb[0].mxu0
    %v1770 = vadd.f32 %v418, %v1769
    %v1771 = vpop.f32.mrb[0].mxu0
    %v1772 = vpop.f32.mrb[0].mxu0
    %v1773 = vadd.f32 %v419, %v1772
    %v1774 = vpop.f32.mrb[0].mxu0
    %1775 = vmatprep.mubr.bf16.mxu0 %v760
    %1776 = vmatmul.mubr.bf16.gmra.mrb[0].mxu0 %v759
    %v1777 = vpop.f32.mrb[0].mxu0
    %v1778 = vadd.f32 %v420, %v1777
    %v1779 = vpop.f32.mrb[0].mxu0
    %v1780 = vpop.f32.mrb[0].mxu0
    %v1781 = vadd.f32 %v421, %v1780
    %v1782 = vpop.f32.mrb[0].mxu0
    %1783 = vmatprep.mubr.bf16.mxu0 %v776
    %1784 = vmatmul.mubr.bf16.gmra.mrb[0].mxu0 %v775
    %v1785 = vpop.f32.mrb[0].mxu0
    %v1786 = vadd.f32 %v422, %v1785
    %v1787 = vpop.f32.mrb[0].mxu0
    %v1788 = vpop.f32.mrb[0].mxu0
    %v1789 = vadd.f32 %v423, %v1788
    %v1790 = vpop.f32.mrb[0].mxu0
    %1791 = vmatprep.mubr.bf16.mxu0 %v792
    %1792 = vmatmul.mubr.bf16.gmra.mrb[0].mxu0 %v791
    %v1793 = vpop.f32.mrb[0].mxu0
    %v1794 = vadd.f32 %v424, %v1793
    %v1795 = vpop.f32.mrb[0].mxu0
    %v1796 = vpop.f32.mrb[0].mxu0
    %v1797 = vadd.f32 %v425, %v1796
    %v1798 = vpop.f32.mrb[0].mxu0
    %1799 = vmatprep.mubr.bf16.mxu0 %v808
    %1800 = vmatmul.mubr.bf16.gmra.mrb[0].mxu0 %v807
    %v1801 = vpop.f32.mrb[0].mxu0
    %v1802 = vadd.f32 %v426, %v1801
    %v1803 = vpop.f32.mrb[0].mxu0
    %v1804 = vpop.f32.mrb[0].mxu0
    %v1805 = vadd.f32 %v427, %v1804
    %v1806 = vpop.f32.mrb[0].mxu0
    %1807 = vmatprep.mubr.bf16.mxu0 %v824
    %1808 = vmatmul.mubr.bf16.gmra.mrb[0].mxu0 %v823
    %v1809 = vpop.f32.mrb[0].mxu0
    %v1810 = vadd.f32 %v428, %v1809
    %v1811 = vpop.f32.mrb[0].mxu0
    %v1812 = vpop.f32.mrb[0].mxu0
    %v1813 = vadd.f32 %v429, %v1812
    %v1814 = vpop.f32.mrb[0].mxu0
    %1815 = vmatprep.mubr.bf16.mxu0 %v840
    %1816 = vmatmul.mubr.bf16.gmra.mrb[0].mxu0 %v839
    %v1817 = vpop.f32.mrb[0].mxu0
    %v1818 = vadd.f32 %v430, %v1817
    %v1819 = vpop.f32.mrb[0].mxu0
    %v1820 = vpop.f32.mrb[0].mxu0
    %v1821 = vpop.f32.mrb[0].mxu0
    %1822 = vdwg.mxu0
    %1823 = vmatprep.subr.bf16.mxu0 0
    %1824 = vmatpush1.bf16.msra.mxu0 %v1495
    %1825 = vmatprep.subr.bf16.mxu0 0
    %1826 = vmatpush1.bf16.msra.mxu0 %v1496
    %1827 = vmatprep.subr.bf16.mxu0 0
    %1828 = vmatpush1.bf16.msra.mxu0 %v1497
    %1829 = vmatprep.subr.bf16.mxu0 0
    %1830 = vmatpush1.bf16.msra.mxu0 %v1498
    %1831 = vmatprep.subr.bf16.mxu0 0
    %1832 = vmatpush1.bf16.msra.mxu0 %v1499
    %1833 = vmatprep.subr.bf16.mxu0 0
    %1834 = vmatpush1.bf16.msra.mxu0 %v1500
    %1835 = vmatprep.subr.bf16.mxu0 0
    %1836 = vmatpush1.bf16.msra.mxu0 %v1501
    %1837 = vmatprep.subr.bf16.mxu0 0
    %1838 = vmatpush1.bf16.msra.mxu0 %v1502
    %1839 = vmatprep.subr.bf16.mxu0 0
    %1840 = vmatpush1.bf16.msra.mxu0 %v1503
    %1841 = vmatprep.subr.bf16.mxu0 0
    %1842 = vmatpush1.bf16.msra.mxu0 %v1504
    %1843 = vmatprep.subr.bf16.mxu0 0
    %1844 = vmatpush1.bf16.msra.mxu0 %v1505
    %1845 = vmatprep.subr.bf16.mxu0 0
    %1846 = vmatpush1.bf16.msra.mxu0 %v1506
    %1847 = vmatprep.subr.bf16.mxu0 0
    %1848 = vmatpush1.bf16.msra.mxu0 %v1507
    %1849 = vmatprep.subr.bf16.mxu0 0
    %1850 = vmatpush1.bf16.msra.mxu0 %v1508
    %1851 = vmatprep.subr.bf16.mxu0 0
    %1852 = vmatpush1.bf16.msra.mxu0 %v1509
    %1853 = vmatprep.subr.bf16.mxu0 0
    %1854 = vmatpush1.bf16.msra.mxu0 %v1510
    %1855 = vmatprep.mubr.bf16.mxu0 %v746
    %1856 = vmatmul.mubr.bf16.gmra.mrb[0].mxu0 %v745
    %v1857 = vpop.f32.mrb[0].mxu0
    %v1858 = vadd.f32 %v1770, %v1857
    %v1859 = vpop.f32.mrb[0].mxu0
    %v1860 = vpop.f32.mrb[0].mxu0
    %v1861 = vadd.f32 %v1773, %v1860
    %v1862 = vpop.f32.mrb[0].mxu0
    %1863 = vmatprep.mubr.bf16.mxu0 %v762
    %1864 = vmatmul.mubr.bf16.gmra.mrb[0].mxu0 %v761
    %v1865 = vpop.f32.mrb[0].mxu0
    %v1866 = vadd.f32 %v1778, %v1865
    %v1867 = vpop.f32.mrb[0].mxu0
    %v1868 = vpop.f32.mrb[0].mxu0
    %v1869 = vadd.f32 %v1781, %v1868
    %v1870 = vpop.f32.mrb[0].mxu0
    %1871 = vmatprep.mubr.bf16.mxu0 %v778
    %1872 = vmatmul.mubr.bf16.gmra.mrb[0].mxu0 %v777
    %v1873 = vpop.f32.mrb[0].mxu0
    %v1874 = vadd.f32 %v1786, %v1873
    %v1875 = vpop.f32.mrb[0].mxu0
    %v1876 = vpop.f32.mrb[0].mxu0
    %v1877 = vadd.f32 %v1789, %v1876
    %v1878 = vpop.f32.mrb[0].mxu0
    %1879 = vmatprep.mubr.bf16.mxu0 %v794
    %1880 = vmatmul.mubr.bf16.gmra.mrb[0].mxu0 %v793
    %v1881 = vpop.f32.mrb[0].mxu0
    %v1882 = vadd.f32 %v1794, %v1881
    %v1883 = vpop.f32.mrb[0].mxu0
    %v1884 = vpop.f32.mrb[0].mxu0
    %v1885 = vadd.f32 %v1797, %v1884
    %v1886 = vpop.f32.mrb[0].mxu0
    %1887 = vmatprep.mubr.bf16.mxu0 %v810
    %1888 = vmatmul.mubr.bf16.gmra.mrb[0].mxu0 %v809
    %v1889 = vpop.f32.mrb[0].mxu0
    %v1890 = vadd.f32 %v1802, %v1889
    %v1891 = vpop.f32.mrb[0].mxu0
    %v1892 = vpop.f32.mrb[0].mxu0
    %v1893 = vadd.f32 %v1805, %v1892
    %v1894 = vpop.f32.mrb[0].mxu0
    %1895 = vmatprep.mubr.bf16.mxu0 %v826
    %1896 = vmatmul.mubr.bf16.gmra.mrb[0].mxu0 %v825
    %v1897 = vpop.f32.mrb[0].mxu0
    %v1898 = vadd.f32 %v1810, %v1897
    %v1899 = vpop.f32.mrb[0].mxu0
    %v1900 = vpop.f32.mrb[0].mxu0
    %v1901 = vadd.f32 %v1813, %v1900
    %v1902 = vpop.f32.mrb[0].mxu0
    %1903 = vmatprep.mubr.bf16.mxu0 %v842
    %1904 = vmatmul.mubr.bf16.gmra.mrb[0].mxu0 %v841
    %v1905 = vpop.f32.mrb[0].mxu0
    %v1906 = vadd.f32 %v1818, %v1905
    %v1907 = vpop.f32.mrb[0].mxu0
    %v1908 = vpop.f32.mrb[0].mxu0
    %v1909 = vpop.f32.mrb[0].mxu0
    %1910 = vdwg.mxu0
    %1911 = vmatprep.subr.bf16.mxu0 0
    %1912 = vmatpush1.bf16.msra.mxu0 %v1511
    %1913 = vmatprep.subr.bf16.mxu0 0
    %1914 = vmatpush1.bf16.msra.mxu0 %v1512
    %1915 = vmatprep.subr.bf16.mxu0 0
    %1916 = vmatpush1.bf16.msra.mxu0 %v1513
    %1917 = vmatprep.subr.bf16.mxu0 0
    %1918 = vmatpush1.bf16.msra.mxu0 %v1514
    %1919 = vmatprep.subr.bf16.mxu0 0
    %1920 = vmatpush1.bf16.msra.mxu0 %v1515
    %1921 = vmatprep.subr.bf16.mxu0 0
    %1922 = vmatpush1.bf16.msra.mxu0 %v1516
    %1923 = vmatprep.subr.bf16.mxu0 0
    %1924 = vmatpush1.bf16.msra.mxu0 %v1517
    %1925 = vmatprep.subr.bf16.mxu0 0
    %1926 = vmatpush1.bf16.msra.mxu0 %v1518
    %1927 = vmatprep.subr.bf16.mxu0 0
    %1928 = vmatpush1.bf16.msra.mxu0 %v1519
    %1929 = vmatprep.subr.bf16.mxu0 0
    %1930 = vmatpush1.bf16.msra.mxu0 %v1520
    %1931 = vmatprep.subr.bf16.mxu0 0
    %1932 = vmatpush1.bf16.msra.mxu0 %v1521
    %1933 = vmatprep.subr.bf16.mxu0 0
    %1934 = vmatpush1.bf16.msra.mxu0 %v1522
    %1935 = vmatprep.subr.bf16.mxu0 0
    %1936 = vmatpush1.bf16.msra.mxu0 %v1523
    %1937 = vmatprep.subr.bf16.mxu0 0
    %1938 = vmatpush1.bf16.msra.mxu0 %v1524
    %1939 = vmatprep.subr.bf16.mxu0 0
    %1940 = vmatpush1.bf16.msra.mxu0 %v1525
    %1941 = vmatprep.subr.bf16.mxu0 0
    %1942 = vmatpush1.bf16.msra.mxu0 %v1526
    %1943 = vmatprep.mubr.bf16.mxu0 %v748
    %1944 = vmatmul.mubr.bf16.gmra.mrb[0].mxu0 %v747
    %v1945 = vpop.f32.mrb[0].mxu0
    %v1946 = vadd.f32 %v1858, %v1945
    %v1947 = vpop.f32.mrb[0].mxu0
    %v1948 = vpop.f32.mrb[0].mxu0
    %v1949 = vadd.f32 %v1861, %v1948
    %v1950 = vpop.f32.mrb[0].mxu0
    %1951 = vmatprep.mubr.bf16.mxu0 %v764
    %1952 = vmatmul.mubr.bf16.gmra.mrb[0].mxu0 %v763
    %v1953 = vpop.f32.mrb[0].mxu0
    %v1954 = vadd.f32 %v1866, %v1953
    %v1955 = vpop.f32.mrb[0].mxu0
    %v1956 = vpop.f32.mrb[0].mxu0
    %v1957 = vadd.f32 %v1869, %v1956
    %v1958 = vpop.f32.mrb[0].mxu0
    %1959 = vmatprep.mubr.bf16.mxu0 %v780
    %1960 = vmatmul.mubr.bf16.gmra.mrb[0].mxu0 %v779
    %v1961 = vpop.f32.mrb[0].mxu0
    %v1962 = vadd.f32 %v1874, %v1961
    %v1963 = vpop.f32.mrb[0].mxu0
    %v1964 = vpop.f32.mrb[0].mxu0
    %v1965 = vadd.f32 %v1877, %v1964
    %v1966 = vpop.f32.mrb[0].mxu0
    %1967 = vmatprep.mubr.bf16.mxu0 %v796
    %1968 = vmatmul.mubr.bf16.gmra.mrb[0].mxu0 %v795
    %v1969 = vpop.f32.mrb[0].mxu0
    %v1970 = vadd.f32 %v1882, %v1969
    %v1971 = vpop.f32.mrb[0].mxu0
    %v1972 = vpop.f32.mrb[0].mxu0
    %v1973 = vadd.f32 %v1885, %v1972
    %v1974 = vpop.f32.mrb[0].mxu0
    %1975 = vmatprep.mubr.bf16.mxu0 %v812
    %1976 = vmatmul.mubr.bf16.gmra.mrb[0].mxu0 %v811
    %v1977 = vpop.f32.mrb[0].mxu0
    %v1978 = vadd.f32 %v1890, %v1977
    %v1979 = vpop.f32.mrb[0].mxu0
    %v1980 = vpop.f32.mrb[0].mxu0
    %v1981 = vadd.f32 %v1893, %v1980
    %v1982 = vpop.f32.mrb[0].mxu0
    %1983 = vmatprep.mubr.bf16.mxu0 %v828
    %1984 = vmatmul.mubr.bf16.gmra.mrb[0].mxu0 %v827
    %v1985 = vpop.f32.mrb[0].mxu0
    %v1986 = vadd.f32 %v1898, %v1985
    %v1987 = vpop.f32.mrb[0].mxu0
    %v1988 = vpop.f32.mrb[0].mxu0
    %v1989 = vadd.f32 %v1901, %v1988
    %v1990 = vpop.f32.mrb[0].mxu0
    %1991 = vmatprep.mubr.bf16.mxu0 %v844
    %1992 = vmatmul.mubr.bf16.gmra.mrb[0].mxu0 %v843
    %v1993 = vpop.f32.mrb[0].mxu0
    %v1994 = vadd.f32 %v1906, %v1993
    %v1995 = vpop.f32.mrb[0].mxu0
    %v1996 = vpop.f32.mrb[0].mxu0
    %v1997 = vpop.f32.mrb[0].mxu0
    %1998 = vdwg.mxu0
    %1999 = vmatprep.subr.bf16.mxu0 0
    %2000 = vmatpush1.bf16.msra.mxu0 %v1527
    %2001 = vmatprep.subr.bf16.mxu0 0
    %2002 = vmatpush1.bf16.msra.mxu0 %v1528
    %2003 = vmatprep.subr.bf16.mxu0 0
    %2004 = vmatpush1.bf16.msra.mxu0 %v1529
    %2005 = vmatprep.subr.bf16.mxu0 0
    %2006 = vmatpush1.bf16.msra.mxu0 %v1530
    %2007 = vmatprep.subr.bf16.mxu0 0
    %2008 = vmatpush1.bf16.msra.mxu0 %v1531
    %2009 = vmatprep.subr.bf16.mxu0 0
    %2010 = vmatpush1.bf16.msra.mxu0 %v1532
    %2011 = vmatprep.subr.bf16.mxu0 0
    %2012 = vmatpush1.bf16.msra.mxu0 %v1533
    %2013 = vmatprep.subr.bf16.mxu0 0
    %2014 = vmatpush1.bf16.msra.mxu0 %v1534
    %2015 = vmatprep.subr.bf16.mxu0 0
    %2016 = vmatpush1.bf16.msra.mxu0 %v1535
    %2017 = vmatprep.subr.bf16.mxu0 0
    %2018 = vmatpush1.bf16.msra.mxu0 %v1536
    %2019 = vmatprep.subr.bf16.mxu0 0
    %2020 = vmatpush1.bf16.msra.mxu0 %v1537
    %2021 = vmatprep.subr.bf16.mxu0 0
    %2022 = vmatpush1.bf16.msra.mxu0 %v1538
    %2023 = vmatprep.subr.bf16.mxu0 0
    %2024 = vmatpush1.bf16.msra.mxu0 %v1539
    %2025 = vmatprep.subr.bf16.mxu0 0
    %2026 = vmatpush1.bf16.msra.mxu0 %v1540
    %2027 = vmatprep.subr.bf16.mxu0 0
    %2028 = vmatpush1.bf16.msra.mxu0 %v1541
    %2029 = vmatprep.subr.bf16.mxu0 0
    %2030 = vmatpush1.bf16.msra.mxu0 %v1542
    %2031 = vmatprep.mubr.bf16.mxu0 %v750
    %2032 = vmatmul.mubr.bf16.gmra.mrb[0].mxu0 %v749
    %v2033 = vpop.f32.mrb[0].mxu0
    %v2034 = vadd.f32 %v1946, %v2033
    %v2035 = vpop.f32.mrb[0].mxu0
    %v2036 = vpop.f32.mrb[0].mxu0
    %v2037 = vadd.f32 %v1949, %v2036
    %v2038 = vpop.f32.mrb[0].mxu0
    %2039 = vmatprep.mubr.bf16.mxu0 %v766
    %2040 = vmatmul.mubr.bf16.gmra.mrb[0].mxu0 %v765
    %v2041 = vpop.f32.mrb[0].mxu0
    %v2042 = vadd.f32 %v1954, %v2041
    %v2043 = vpop.f32.mrb[0].mxu0
    %v2044 = vpop.f32.mrb[0].mxu0
    %v2045 = vadd.f32 %v1957, %v2044
    %v2046 = vpop.f32.mrb[0].mxu0
    %2047 = vmatprep.mubr.bf16.mxu0 %v782
    %2048 = vmatmul.mubr.bf16.gmra.mrb[0].mxu0 %v781
    %v2049 = vpop.f32.mrb[0].mxu0
    %v2050 = vadd.f32 %v1962, %v2049
    %v2051 = vpop.f32.mrb[0].mxu0
    %v2052 = vpop.f32.mrb[0].mxu0
    %v2053 = vadd.f32 %v1965, %v2052
    %v2054 = vpop.f32.mrb[0].mxu0
    %2055 = vmatprep.mubr.bf16.mxu0 %v798
    %2056 = vmatmul.mubr.bf16.gmra.mrb[0].mxu0 %v797
    %v2057 = vpop.f32.mrb[0].mxu0
    %v2058 = vadd.f32 %v1970, %v2057
    %v2059 = vpop.f32.mrb[0].mxu0
    %v2060 = vpop.f32.mrb[0].mxu0
    %v2061 = vadd.f32 %v1973, %v2060
    %v2062 = vpop.f32.mrb[0].mxu0
    %2063 = vmatprep.mubr.bf16.mxu0 %v814
    %2064 = vmatmul.mubr.bf16.gmra.mrb[0].mxu0 %v813
    %v2065 = vpop.f32.mrb[0].mxu0
    %v2066 = vadd.f32 %v1978, %v2065
    %v2067 = vpop.f32.mrb[0].mxu0
    %v2068 = vpop.f32.mrb[0].mxu0
    %v2069 = vadd.f32 %v1981, %v2068
    %v2070 = vpop.f32.mrb[0].mxu0
    %2071 = vmatprep.mubr.bf16.mxu0 %v830
    %2072 = vmatmul.mubr.bf16.gmra.mrb[0].mxu0 %v829
    %v2073 = vpop.f32.mrb[0].mxu0
    %v2074 = vadd.f32 %v1986, %v2073
    %v2075 = vpop.f32.mrb[0].mxu0
    %v2076 = vpop.f32.mrb[0].mxu0
    %v2077 = vadd.f32 %v1989, %v2076
    %v2078 = vpop.f32.mrb[0].mxu0
    %2079 = vmatprep.mubr.bf16.mxu0 %v846
    %2080 = vmatmul.mubr.bf16.gmra.mrb[0].mxu0 %v845
    %v2081 = vpop.f32.mrb[0].mxu0
    %v2082 = vadd.f32 %v1994, %v2081
    %v2083 = vpop.f32.mrb[0].mxu0
    %v2084 = vpop.f32.mrb[0].mxu0
    %v2085 = vpop.f32.mrb[0].mxu0
    %2086 = vdwg.mxu0
    %2087 = vmatprep.subr.bf16.mxu0 0
    %2088 = vmatpush1.bf16.msra.mxu0 %v1543
    %2089 = vmatprep.subr.bf16.mxu0 0
    %2090 = vmatpush1.bf16.msra.mxu0 %v1544
    %2091 = vmatprep.subr.bf16.mxu0 0
    %2092 = vmatpush1.bf16.msra.mxu0 %v1545
    %2093 = vmatprep.subr.bf16.mxu0 0
    %2094 = vmatpush1.bf16.msra.mxu0 %v1546
    %2095 = vmatprep.subr.bf16.mxu0 0
    %2096 = vmatpush1.bf16.msra.mxu0 %v1547
    %2097 = vmatprep.subr.bf16.mxu0 0
    %2098 = vmatpush1.bf16.msra.mxu0 %v1548
    %2099 = vmatprep.subr.bf16.mxu0 0
    %2100 = vmatpush1.bf16.msra.mxu0 %v1549
    %2101 = vmatprep.subr.bf16.mxu0 0
    %2102 = vmatpush1.bf16.msra.mxu0 %v1550
    %2103 = vmatprep.subr.bf16.mxu0 0
    %2104 = vmatpush1.bf16.msra.mxu0 %v1551
    %2105 = vmatprep.subr.bf16.mxu0 0
    %2106 = vmatpush1.bf16.msra.mxu0 %v1552
    %2107 = vmatprep.subr.bf16.mxu0 0
    %2108 = vmatpush1.bf16.msra.mxu0 %v1553
    %2109 = vmatprep.subr.bf16.mxu0 0
    %2110 = vmatpush1.bf16.msra.mxu0 %v1554
    %2111 = vmatprep.subr.bf16.mxu0 0
    %2112 = vmatpush1.bf16.msra.mxu0 %v1555
    %2113 = vmatprep.subr.bf16.mxu0 0
    %2114 = vmatpush1.bf16.msra.mxu0 %v1556
    %2115 = vmatprep.subr.bf16.mxu0 0
    %2116 = vmatpush1.bf16.msra.mxu0 %v1557
    %2117 = vmatprep.subr.bf16.mxu0 0
    %2118 = vmatpush1.bf16.msra.mxu0 %v1558
    %2119 = vmatprep.mubr.bf16.mxu0 %v752
    %2120 = vmatmul.mubr.bf16.gmra.mrb[0].mxu0 %v751
    %v2121 = vpop.f32.mrb[0].mxu0
    %v2122 = vadd.f32 %v2034, %v2121
    %v2123 = vpop.f32.mrb[0].mxu0
    %v2124 = vpop.f32.mrb[0].mxu0
    %v2125 = vadd.f32 %v2037, %v2124
    %v2126 = vpop.f32.mrb[0].mxu0
    %2127 = vmatprep.mubr.bf16.mxu0 %v768
    %2128 = vmatmul.mubr.bf16.gmra.mrb[0].mxu0 %v767
    %v2129 = vpop.f32.mrb[0].mxu0
    %v2130 = vadd.f32 %v2042, %v2129
    %v2131 = vpop.f32.mrb[0].mxu0
    %v2132 = vpop.f32.mrb[0].mxu0
    %v2133 = vadd.f32 %v2045, %v2132
    %v2134 = vpop.f32.mrb[0].mxu0
    %2135 = vmatprep.mubr.bf16.mxu0 %v784
    %2136 = vmatmul.mubr.bf16.gmra.mrb[0].mxu0 %v783
    %v2137 = vpop.f32.mrb[0].mxu0
    %v2138 = vadd.f32 %v2050, %v2137
    %v2139 = vpop.f32.mrb[0].mxu0
    %v2140 = vpop.f32.mrb[0].mxu0
    %v2141 = vadd.f32 %v2053, %v2140
    %v2142 = vpop.f32.mrb[0].mxu0
    %2143 = vmatprep.mubr.bf16.mxu0 %v800
    %2144 = vmatmul.mubr.bf16.gmra.mrb[0].mxu0 %v799
    %v2145 = vpop.f32.mrb[0].mxu0
    %v2146 = vadd.f32 %v2058, %v2145
    %v2147 = vpop.f32.mrb[0].mxu0
    %v2148 = vpop.f32.mrb[0].mxu0
    %v2149 = vadd.f32 %v2061, %v2148
    %v2150 = vpop.f32.mrb[0].mxu0
    %2151 = vmatprep.mubr.bf16.mxu0 %v816
    %2152 = vmatmul.mubr.bf16.gmra.mrb[0].mxu0 %v815
    %v2153 = vpop.f32.mrb[0].mxu0
    %v2154 = vadd.f32 %v2066, %v2153
    %v2155 = vpop.f32.mrb[0].mxu0
    %v2156 = vpop.f32.mrb[0].mxu0
    %v2157 = vadd.f32 %v2069, %v2156
    %v2158 = vpop.f32.mrb[0].mxu0
    %2159 = vmatprep.mubr.bf16.mxu0 %v832
    %2160 = vmatmul.mubr.bf16.gmra.mrb[0].mxu0 %v831
    %v2161 = vpop.f32.mrb[0].mxu0
    %v2162 = vadd.f32 %v2074, %v2161
    %v2163 = vpop.f32.mrb[0].mxu0
    %v2164 = vpop.f32.mrb[0].mxu0
    %v2165 = vadd.f32 %v2077, %v2164
    %v2166 = vpop.f32.mrb[0].mxu0
    %2167 = vmatprep.mubr.bf16.mxu0 %v848
    %2168 = vmatmul.mubr.bf16.gmra.mrb[0].mxu0 %v847
    %v2169 = vpop.f32.mrb[0].mxu0
    %v2170 = vadd.f32 %v2082, %v2169
    %v2171 = vpop.f32.mrb[0].mxu0
    %v2172 = vpop.f32.mrb[0].mxu0
    %v2173 = vpop.f32.mrb[0].mxu0
    %2174 = vdwg.mxu0
    %2175 = vmatprep.subr.bf16.mxu0 0
    %2176 = vmatpush1.bf16.msra.mxu0 %v1559
    %2177 = vmatprep.subr.bf16.mxu0 0
    %2178 = vmatpush1.bf16.msra.mxu0 %v1560
    %2179 = vmatprep.subr.bf16.mxu0 0
    %2180 = vmatpush1.bf16.msra.mxu0 %v1561
    %2181 = vmatprep.subr.bf16.mxu0 0
    %2182 = vmatpush1.bf16.msra.mxu0 %v1562
    %2183 = vmatprep.subr.bf16.mxu0 0
    %2184 = vmatpush1.bf16.msra.mxu0 %v1563
    %2185 = vmatprep.subr.bf16.mxu0 0
    %2186 = vmatpush1.bf16.msra.mxu0 %v1564
    %2187 = vmatprep.subr.bf16.mxu0 0
    %2188 = vmatpush1.bf16.msra.mxu0 %v1565
    %2189 = vmatprep.subr.bf16.mxu0 0
    %2190 = vmatpush1.bf16.msra.mxu0 %v1566
    %2191 = vmatprep.subr.bf16.mxu0 0
    %2192 = vmatpush1.bf16.msra.mxu0 %v1567
    %2193 = vmatprep.subr.bf16.mxu0 0
    %2194 = vmatpush1.bf16.msra.mxu0 %v1568
    %2195 = vmatprep.subr.bf16.mxu0 0
    %2196 = vmatpush1.bf16.msra.mxu0 %v1569
    %2197 = vmatprep.subr.bf16.mxu0 0
    %2198 = vmatpush1.bf16.msra.mxu0 %v1570
    %2199 = vmatprep.subr.bf16.mxu0 0
    %2200 = vmatpush1.bf16.msra.mxu0 %v1571
    %2201 = vmatprep.subr.bf16.mxu0 0
    %2202 = vmatpush1.bf16.msra.mxu0 %v1572
    %2203 = vmatprep.subr.bf16.mxu0 0
    %2204 = vmatpush1.bf16.msra.mxu0 %v1573
    %2205 = vmatprep.subr.bf16.mxu0 0
    %2206 = vmatpush1.bf16.msra.mxu0 %v1574
    %2207 = vmatprep.mubr.bf16.mxu0 %v754
    %2208 = vmatmul.mubr.bf16.gmra.mrb[0].mxu0 %v753
    %v2209 = vpop.f32.mrb[0].mxu0
    %v2210 = vadd.f32 %v2122, %v2209
    %v2211 = vpop.f32.mrb[0].mxu0
    %v2212 = vpop.f32.mrb[0].mxu0
    %v2213 = vadd.f32 %v2125, %v2212
    %v2214 = vpop.f32.mrb[0].mxu0
    %2215 = vmatprep.mubr.bf16.mxu0 %v770
    %2216 = vmatmul.mubr.bf16.gmra.mrb[0].mxu0 %v769
    %v2217 = vpop.f32.mrb[0].mxu0
    %v2218 = vadd.f32 %v2130, %v2217
    %v2219 = vpop.f32.mrb[0].mxu0
    %v2220 = vpop.f32.mrb[0].mxu0
    %v2221 = vadd.f32 %v2133, %v2220
    %v2222 = vpop.f32.mrb[0].mxu0
    %2223 = vmatprep.mubr.bf16.mxu0 %v786
    %2224 = vmatmul.mubr.bf16.gmra.mrb[0].mxu0 %v785
    %v2225 = vpop.f32.mrb[0].mxu0
    %v2226 = vadd.f32 %v2138, %v2225
    %v2227 = vpop.f32.mrb[0].mxu0
    %v2228 = vpop.f32.mrb[0].mxu0
    %v2229 = vadd.f32 %v2141, %v2228
    %v2230 = vpop.f32.mrb[0].mxu0
    %2231 = vmatprep.mubr.bf16.mxu0 %v802
    %2232 = vmatmul.mubr.bf16.gmra.mrb[0].mxu0 %v801
    %v2233 = vpop.f32.mrb[0].mxu0
    %v2234 = vadd.f32 %v2146, %v2233
    %v2235 = vpop.f32.mrb[0].mxu0
    %v2236 = vpop.f32.mrb[0].mxu0
    %v2237 = vadd.f32 %v2149, %v2236
    %v2238 = vpop.f32.mrb[0].mxu0
    %2239 = vmatprep.mubr.bf16.mxu0 %v818
    %2240 = vmatmul.mubr.bf16.gmra.mrb[0].mxu0 %v817
    %v2241 = vpop.f32.mrb[0].mxu0
    %v2242 = vadd.f32 %v2154, %v2241
    %v2243 = vpop.f32.mrb[0].mxu0
    %v2244 = vpop.f32.mrb[0].mxu0
    %v2245 = vadd.f32 %v2157, %v2244
    %v2246 = vpop.f32.mrb[0].mxu0
    %2247 = vmatprep.mubr.bf16.mxu0 %v834
    %2248 = vmatmul.mubr.bf16.gmra.mrb[0].mxu0 %v833
    %v2249 = vpop.f32.mrb[0].mxu0
    %v2250 = vadd.f32 %v2162, %v2249
    %v2251 = vpop.f32.mrb[0].mxu0
    %v2252 = vpop.f32.mrb[0].mxu0
    %v2253 = vadd.f32 %v2165, %v2252
    %v2254 = vpop.f32.mrb[0].mxu0
    %2255 = vmatprep.mubr.bf16.mxu0 %v850
    %2256 = vmatmul.mubr.bf16.gmra.mrb[0].mxu0 %v849
    %v2257 = vpop.f32.mrb[0].mxu0
    %v2258 = vadd.f32 %v2170, %v2257
    %v2259 = vpop.f32.mrb[0].mxu0
    %v2260 = vpop.f32.mrb[0].mxu0
    %v2261 = vpop.f32.mrb[0].mxu0
    %2262 = vdwg.mxu0
    %2263 = vmatprep.subr.bf16.mxu0 0
    %2264 = vmatpush1.bf16.msra.mxu0 %v1575
    %2265 = vmatprep.subr.bf16.mxu0 0
    %2266 = vmatpush1.bf16.msra.mxu0 %v1576
    %2267 = vmatprep.subr.bf16.mxu0 0
    %2268 = vmatpush1.bf16.msra.mxu0 %v1577
    %2269 = vmatprep.subr.bf16.mxu0 0
    %2270 = vmatpush1.bf16.msra.mxu0 %v1578
    %2271 = vmatprep.subr.bf16.mxu0 0
    %2272 = vmatpush1.bf16.msra.mxu0 %v1579
    %2273 = vmatprep.subr.bf16.mxu0 0
    %2274 = vmatpush1.bf16.msra.mxu0 %v1580
    %2275 = vmatprep.subr.bf16.mxu0 0
    %2276 = vmatpush1.bf16.msra.mxu0 %v1581
    %2277 = vmatprep.subr.bf16.mxu0 0
    %2278 = vmatpush1.bf16.msra.mxu0 %v1582
    %2279 = vmatprep.subr.bf16.mxu0 0
    %2280 = vmatpush1.bf16.msra.mxu0 %v1583
    %2281 = vmatprep.subr.bf16.mxu0 0
    %2282 = vmatpush1.bf16.msra.mxu0 %v1584
    %2283 = vmatprep.subr.bf16.mxu0 0
    %2284 = vmatpush1.bf16.msra.mxu0 %v1585
    %2285 = vmatprep.subr.bf16.mxu0 0
    %2286 = vmatpush1.bf16.msra.mxu0 %v1586
    %2287 = vmatprep.subr.bf16.mxu0 0
    %2288 = vmatpush1.bf16.msra.mxu0 %v1587
    %2289 = vmatprep.subr.bf16.mxu0 0
    %2290 = vmatpush1.bf16.msra.mxu0 %v1588
    %2291 = vmatprep.subr.bf16.mxu0 0
    %2292 = vmatpush1.bf16.msra.mxu0 %v1589
    %2293 = vmatprep.subr.bf16.mxu0 0
    %2294 = vmatpush1.bf16.msra.mxu0 %v1590
    %2295 = vmatprep.mubr.bf16.mxu0 %v756
    %2296 = vmatmul.mubr.bf16.gmra.mrb[0].mxu0 %v755
    %v2297 = vpop.f32.mrb[0].mxu0
    %v2298 = vadd.f32 %v2210, %v2297
    %v2299 = vpop.f32.mrb[0].mxu0
    %v2300 = vpop.f32.mrb[0].mxu0
    %v2301 = vadd.f32 %v2213, %v2300
    %v2302 = vpop.f32.mrb[0].mxu0
    %2303 = vmatprep.mubr.bf16.mxu0 %v772
    %2304 = vmatmul.mubr.bf16.gmra.mrb[0].mxu0 %v771
    %v2305 = vpop.f32.mrb[0].mxu0
    %v2306 = vadd.f32 %v2218, %v2305
    %v2307 = vpop.f32.mrb[0].mxu0
    %v2308 = vpop.f32.mrb[0].mxu0
    %v2309 = vadd.f32 %v2221, %v2308
    %v2310 = vpop.f32.mrb[0].mxu0
    %2311 = vmatprep.mubr.bf16.mxu0 %v788
    %2312 = vmatmul.mubr.bf16.gmra.mrb[0].mxu0 %v787
    %v2313 = vpop.f32.mrb[0].mxu0
    %v2314 = vadd.f32 %v2226, %v2313
    %v2315 = vpop.f32.mrb[0].mxu0
    %v2316 = vpop.f32.mrb[0].mxu0
    %v2317 = vadd.f32 %v2229, %v2316
    %v2318 = vpop.f32.mrb[0].mxu0
    %2319 = vmatprep.mubr.bf16.mxu0 %v804
    %2320 = vmatmul.mubr.bf16.gmra.mrb[0].mxu0 %v803
    %v2321 = vpop.f32.mrb[0].mxu0
    %v2322 = vadd.f32 %v2234, %v2321
    %v2323 = vpop.f32.mrb[0].mxu0
    %v2324 = vpop.f32.mrb[0].mxu0
    %v2325 = vadd.f32 %v2237, %v2324
    %v2326 = vpop.f32.mrb[0].mxu0
    %2327 = vmatprep.mubr.bf16.mxu0 %v820
    %2328 = vmatmul.mubr.bf16.gmra.mrb[0].mxu0 %v819
    %v2329 = vpop.f32.mrb[0].mxu0
    %v2330 = vadd.f32 %v2242, %v2329
    %v2331 = vpop.f32.mrb[0].mxu0
    %v2332 = vpop.f32.mrb[0].mxu0
    %v2333 = vadd.f32 %v2245, %v2332
    %v2334 = vpop.f32.mrb[0].mxu0
    %2335 = vmatprep.mubr.bf16.mxu0 %v836
    %2336 = vmatmul.mubr.bf16.gmra.mrb[0].mxu0 %v835
    %v2337 = vpop.f32.mrb[0].mxu0
    %v2338 = vadd.f32 %v2250, %v2337
    %v2339 = vpop.f32.mrb[0].mxu0
    %v2340 = vpop.f32.mrb[0].mxu0
    %v2341 = vadd.f32 %v2253, %v2340
    %v2342 = vpop.f32.mrb[0].mxu0
    %2343 = vmatprep.mubr.bf16.mxu0 %v852
    %2344 = vmatmul.mubr.bf16.gmra.mrb[0].mxu0 %v851
    %v2345 = vpop.f32.mrb[0].mxu0
    %v2346 = vadd.f32 %v2258, %v2345
    %v2347 = vpop.f32.mrb[0].mxu0
    %v2348 = vpop.f32.mrb[0].mxu0
    %v2349 = vpop.f32.mrb[0].mxu0
    %2350 = vdwg.mxu0
    %2351 = vmatprep.subr.bf16.mxu0 0
    %2352 = vmatpush1.bf16.msra.mxu0 %v1591
    %2353 = vmatprep.subr.bf16.mxu0 0
    %2354 = vmatpush1.bf16.msra.mxu0 %v1592
    %2355 = vmatprep.subr.bf16.mxu0 0
    %2356 = vmatpush1.bf16.msra.mxu0 %v1593
    %2357 = vmatprep.subr.bf16.mxu0 0
    %2358 = vmatpush1.bf16.msra.mxu0 %v1594
    %2359 = vmatprep.subr.bf16.mxu0 0
    %2360 = vmatpush1.bf16.msra.mxu0 %v1595
    %2361 = vmatprep.subr.bf16.mxu0 0
    %2362 = vmatpush1.bf16.msra.mxu0 %v1596
    %2363 = vmatprep.subr.bf16.mxu0 0
    %2364 = vmatpush1.bf16.msra.mxu0 %v1597
    %2365 = vmatprep.subr.bf16.mxu0 0
    %2366 = vmatpush1.bf16.msra.mxu0 %v1598
    %2367 = vmatprep.subr.bf16.mxu0 0
    %2368 = vmatpush1.bf16.msra.mxu0 %v1599
    %2369 = vmatprep.subr.bf16.mxu0 0
    %2370 = vmatpush1.bf16.msra.mxu0 %v1600
    %2371 = vmatprep.subr.bf16.mxu0 0
    %2372 = vmatpush1.bf16.msra.mxu0 %v1601
    %2373 = vmatprep.subr.bf16.mxu0 0
    %2374 = vmatpush1.bf16.msra.mxu0 %v1602
    %2375 = vmatprep.subr.bf16.mxu0 0
    %2376 = vmatpush1.bf16.msra.mxu0 %v1603
    %2377 = vmatprep.subr.bf16.mxu0 0
    %2378 = vmatpush1.bf16.msra.mxu0 %v1604
    %2379 = vmatprep.subr.bf16.mxu0 0
    %2380 = vmatpush1.bf16.msra.mxu0 %v1605
    %2381 = vmatprep.subr.bf16.mxu0 0
    %2382 = vmatpush1.bf16.msra.mxu0 %v1606
    %2383 = vmatprep.mubr.bf16.mxu0 %v758
    %2384 = vmatmul.mubr.bf16.gmra.mrb[0].mxu0 %v757
    %v2385 = vpop.f32.mrb[0].mxu0
    %v2386 = vadd.f32 %v2298, %v2385
    %v2387 = vpop.f32.mrb[0].mxu0
    %v2388 = vpop.f32.mrb[0].mxu0
    %v2389 = vadd.f32 %v2301, %v2388
    %v2390 = vpop.f32.mrb[0].mxu0
    %2391 = vmatprep.mubr.bf16.mxu0 %v774
    %2392 = vmatmul.mubr.bf16.gmra.mrb[0].mxu0 %v773
    %v2393 = vpop.f32.mrb[0].mxu0
    %v2394 = vadd.f32 %v2306, %v2393
    %v2395 = vpop.f32.mrb[0].mxu0
    %v2396 = vpop.f32.mrb[0].mxu0
    %v2397 = vadd.f32 %v2309, %v2396
    %v2398 = vpop.f32.mrb[0].mxu0
    %2399 = vmatprep.mubr.bf16.mxu0 %v790
    %2400 = vmatmul.mubr.bf16.gmra.mrb[0].mxu0 %v789
    %v2401 = vpop.f32.mrb[0].mxu0
    %v2402 = vadd.f32 %v2314, %v2401
    %v2403 = vpop.f32.mrb[0].mxu0
    %v2404 = vpop.f32.mrb[0].mxu0
    %v2405 = vadd.f32 %v2317, %v2404
    %v2406 = vpop.f32.mrb[0].mxu0
    %2407 = vmatprep.mubr.bf16.mxu0 %v806
    %2408 = vmatmul.mubr.bf16.gmra.mrb[0].mxu0 %v805
    %v2409 = vpop.f32.mrb[0].mxu0
    %v2410 = vadd.f32 %v2322, %v2409
    %v2411 = vpop.f32.mrb[0].mxu0
    %v2412 = vpop.f32.mrb[0].mxu0
    %v2413 = vadd.f32 %v2325, %v2412
    %v2414 = vpop.f32.mrb[0].mxu0
    %2415 = vmatprep.mubr.bf16.mxu0 %v822
    %2416 = vmatmul.mubr.bf16.gmra.mrb[0].mxu0 %v821
    %v2417 = vpop.f32.mrb[0].mxu0
    %v2418 = vadd.f32 %v2330, %v2417
    %v2419 = vpop.f32.mrb[0].mxu0
    %v2420 = vpop.f32.mrb[0].mxu0
    %v2421 = vadd.f32 %v2333, %v2420
    %v2422 = vpop.f32.mrb[0].mxu0
    %2423 = vmatprep.mubr.bf16.mxu0 %v838
    %2424 = vmatmul.mubr.bf16.gmra.mrb[0].mxu0 %v837
    %v2425 = vpop.f32.mrb[0].mxu0
    %v2426 = vadd.f32 %v2338, %v2425
    %v2427 = vpop.f32.mrb[0].mxu0
    %v2428 = vpop.f32.mrb[0].mxu0
    %v2429 = vadd.f32 %v2341, %v2428
    %v2430 = vpop.f32.mrb[0].mxu0
    %2431 = vmatprep.mubr.bf16.mxu0 %v854
    %2432 = vmatmul.mubr.bf16.gmra.mrb[0].mxu0 %v853
    %v2433 = vpop.f32.mrb[0].mxu0
    %v2434 = vadd.f32 %v2346, %v2433
    %v2435 = vpop.f32.mrb[0].mxu0
    %v2436 = vpop.f32.mrb[0].mxu0
    %v2437 = vpop.f32.mrb[0].mxu0
    %2438 = vdwg.mxu0
    %v2439 = vadd.f32 %v2386, %v2389
    %v2440 = vadd.f32 %v2439, %v2394
    %v2441 = vadd.f32 %v2440, %v2397
    %v2442 = vadd.f32 %v2441, %v2402
    %v2443 = vadd.f32 %v2442, %v2405
    %v2444 = vadd.f32 %v2443, %v2410
    %v2445 = vadd.f32 %v2444, %v2413
    %v2446 = vadd.f32 %v2445, %v2418
    %v2447 = vadd.f32 %v2446, %v2421
    %v2448 = vadd.f32 %v2447, %v2426
    %v2449 = vadd.f32 %v2448, %v2429
    %vm2450 = vcmask 1041408
    %v2451 = vsel %vm2450, %v2434, 0.0
    %v2452 = vadd.f32 %v2449, %v2451
    %v2453 = vrot.slane %v2452, 4
    %v2454 = vadd.f32 %v2452, %v2453
    %v2455 = vrot.slane %v2454, 2
    %v2456 = vadd.f32 %v2454, %v2455
    %v2457 = vrot.slane %v2456, 1
    %v2458 = vadd.f32 %v2456, %v2457
    %v2459 = vrcp.pop 98.0
    %v2460 = vmul.f32 %v2458, %v2459
    %v2461 = vsub.f32 %v2386, %v2460
    %v2462 = vsub.f32 %v2389, %v2460
    %v2463 = vsub.f32 %v2394, %v2460
    %v2464 = vsub.f32 %v2397, %v2460
    %v2465 = vsub.f32 %v2402, %v2460
    %v2466 = vsub.f32 %v2405, %v2460
    %v2467 = vsub.f32 %v2410, %v2460
    %v2468 = vsub.f32 %v2413, %v2460
    %v2469 = vsub.f32 %v2418, %v2460
    %v2470 = vsub.f32 %v2421, %v2460
    %v2471 = vsub.f32 %v2426, %v2460
    %v2472 = vsub.f32 %v2429, %v2460
    %v2473 = vsub.f32 %v2434, %v2460
    %v2474 = vmul.f32 %v2461, %v2461
    %v2475 = vmul.f32 %v2462, %v2462
    %v2476 = vmul.f32 %v2463, %v2463
    %v2477 = vmul.f32 %v2464, %v2464
    %v2478 = vmul.f32 %v2465, %v2465
    %v2479 = vmul.f32 %v2466, %v2466
    %v2480 = vmul.f32 %v2467, %v2467
    %v2481 = vmul.f32 %v2468, %v2468
    %v2482 = vmul.f32 %v2469, %v2469
    %v2483 = vmul.f32 %v2470, %v2470
    %v2484 = vmul.f32 %v2471, %v2471
    %v2485 = vmul.f32 %v2472, %v2472
    %v2486 = vmul.f32 %v2473, %v2473
    %v2487 = vadd.f32 %v2474, %v2475
    %v2488 = vadd.f32 %v2487, %v2476
    %v2489 = vadd.f32 %v2488, %v2477
    %v2490 = vadd.f32 %v2489, %v2478
    %v2491 = vadd.f32 %v2490, %v2479
    %v2492 = vadd.f32 %v2491, %v2480
    %v2493 = vadd.f32 %v2492, %v2481
    %v2494 = vadd.f32 %v2493, %v2482
    %v2495 = vadd.f32 %v2494, %v2483
    %v2496 = vadd.f32 %v2495, %v2484
    %v2497 = vadd.f32 %v2496, %v2485
    %v2498 = vsel %vm2450, %v2486, 0.0
    %v2499 = vadd.f32 %v2497, %v2498
    %v2500 = vrot.slane %v2499, 4
    %v2501 = vadd.f32 %v2499, %v2500
    %v2502 = vrot.slane %v2501, 2
    %v2503 = vadd.f32 %v2501, %v2502
    %v2504 = vrot.slane %v2503, 1
    %v2505 = vadd.f32 %v2503, %v2504
    %v2506 = vmul.f32 %v2505, %v2459
    %v2507 = vld [vmem:[#allocation4] sm:$0x1]
    %v2508 = vadd.f32 %v2506, 1e-05
    %v2509 = vrsqrt.pop %v2508
    %v2510 = vmul.f32 %v2507, %v2509
    %v2511 = vld [vmem:[#allocation6] sm:$0x1]
    %v2512 = vmul.f32 %v2460, %v2510
    %v2513 = vsub.f32 %v2511, %v2512
    %v2515 = vlaneseq
    %v2516 = vshrl.u32 %v2515, 7
    %v2517 = vsub.s32 0, %v2516
    %v2518 = vrot.slane %v2510, %v2517
    %v2520 = vmul.f32 %v2386, %v2518
    %v2521 = vmul.f32 %v2389, %v2518
    %v2522 = vmul.f32 %v2394, %v2518
    %v2523 = vmul.f32 %v2397, %v2518
    %v2524 = vmul.f32 %v2402, %v2518
    %v2525 = vmul.f32 %v2405, %v2518
    %v2526 = vmul.f32 %v2410, %v2518
    %v2527 = vmul.f32 %v2413, %v2518
    %v2528 = vmul.f32 %v2418, %v2518
    %v2529 = vmul.f32 %v2421, %v2518
    %v2530 = vmul.f32 %v2426, %v2518
    %v2531 = vmul.f32 %v2429, %v2518
    %v2532 = vmul.f32 %v2434, %v2518
    %v2534 = vlaneseq
    %v2535 = vshrl.u32 %v2534, 7
    %v2536 = vsub.s32 0, %v2535
    %v2537 = vrot.slane %v2513, %v2536
    %v2539 = vadd.f32 %v2520, %v2537
    %v2540 = vadd.f32 %v2521, %v2537
    %v2541 = vadd.f32 %v2522, %v2537
    %v2542 = vadd.f32 %v2523, %v2537
    %v2543 = vadd.f32 %v2524, %v2537
    %v2544 = vadd.f32 %v2525, %v2537
    %v2545 = vadd.f32 %v2526, %v2537
    %v2546 = vadd.f32 %v2527, %v2537
    %v2547 = vadd.f32 %v2528, %v2537
    %v2548 = vadd.f32 %v2529, %v2537
    %v2549 = vadd.f32 %v2530, %v2537
    %v2550 = vadd.f32 %v2531, %v2537
    %v2551 = vadd.f32 %v2532, %v2537
    %vm2552 = vcmp.ge.f32.partialorder %v2539, 0.0
    %vm2553 = vcmp.ge.f32.partialorder %v2540, 0.0
    %vm2554 = vcmp.ge.f32.partialorder %v2541, 0.0
    %vm2555 = vcmp.ge.f32.partialorder %v2542, 0.0
    %vm2556 = vcmp.ge.f32.partialorder %v2543, 0.0
    %vm2557 = vcmp.ge.f32.partialorder %v2544, 0.0
    %vm2558 = vcmp.ge.f32.partialorder %v2545, 0.0
    %vm2559 = vcmp.ge.f32.partialorder %v2546, 0.0
    %vm2560 = vcmp.ge.f32.partialorder %v2547, 0.0
    %vm2561 = vcmp.ge.f32.partialorder %v2548, 0.0
    %vm2562 = vcmp.ge.f32.partialorder %v2549, 0.0
    %vm2563 = vcmp.ge.f32.partialorder %v2550, 0.0
    %vm2564 = vcmp.ge.f32.partialorder %v2551, 0.0
    %v2565 = vmul.f32 %v2539, 0.1
    %v2566 = vmul.f32 %v2540, 0.1
    %v2567 = vmul.f32 %v2541, 0.1
    %v2568 = vmul.f32 %v2542, 0.1
    %v2569 = vmul.f32 %v2543, 0.1
    %v2570 = vmul.f32 %v2544, 0.1
    %v2571 = vmul.f32 %v2545, 0.1
    %v2572 = vmul.f32 %v2546, 0.1
    %v2573 = vmul.f32 %v2547, 0.1
    %v2574 = vmul.f32 %v2548, 0.1
    %v2575 = vmul.f32 %v2549, 0.1
    %v2576 = vmul.f32 %v2550, 0.1
    %v2577 = vmul.f32 %v2551, 0.1
    %v2578 = vsel %vm2552, %v2539, %v2565
    %v2579 = vsel %vm2553, %v2540, %v2566
    %v2580 = vsel %vm2554, %v2541, %v2567
    %v2581 = vsel %vm2555, %v2542, %v2568
    %v2582 = vsel %vm2556, %v2543, %v2569
    %v2583 = vsel %vm2557, %v2544, %v2570
    %v2584 = vsel %vm2558, %v2545, %v2571
    %v2585 = vsel %vm2559, %v2546, %v2572
    %v2586 = vsel %vm2560, %v2547, %v2573
    %v2587 = vsel %vm2561, %v2548, %v2574
    %v2588 = vsel %vm2562, %v2549, %v2575
    %v2589 = vsel %vm2563, %v2550, %v2576
    %v2590 = vsel %vm2564, %v2551, %v2577
    %2591 = vst [vmem:[%s5] sm:$0xff] %v2578
    %2592 = vst [vmem:[%s5 + $0x8] sm:$0xff] %v2579
    %2593 = vst [vmem:[%s5 + $0x10] sm:$0xff] %v2580
    %2594 = vst [vmem:[%s5 + $0x18] sm:$0xff] %v2581
    %2595 = vst [vmem:[%s5 + $0x20] sm:$0xff] %v2582
    %2596 = vst [vmem:[%s5 + $0x28] sm:$0xff] %v2583
    %2597 = vst [vmem:[%s5 + $0x30] sm:$0xff] %v2584
    %2598 = vst [vmem:[%s5 + $0x38] sm:$0xff] %v2585
    %2599 = vst [vmem:[%s5 + $0x40] sm:$0xff] %v2586
    %2600 = vst [vmem:[%s5 + $0x48] sm:$0xff] %v2587
    %2601 = vst [vmem:[%s5 + $0x50] sm:$0xff] %v2588
    %2602 = vst [vmem:[%s5 + $0x58] sm:$0xff] %v2589
    %2603 = vst [vmem:[%s5 + $0x60] sm:$0x3] %v2590
    // Predicated region
    $region34: #{stretcher_forward.4} parent=1 // pred_check
      _
    $region35: #{stretcher_forward.4} parent=1 // pred_check_branch
      %2605 = sbr.rel (0) target = $region37
    $region36: #{stretcher_forward.4} parent=1 // pred_region
      _
    $region37: #{stretcher_forward.4} parent=1 // pred_fallthru
      _
    // Predicated region
    $region38: #{stretcher_forward.4} parent=1 // pred_check
      _
    $region39: #{stretcher_forward.4} parent=1 // pred_check_branch
      %2607 = sbr.rel (0) target = $region41
    $region40: #{stretcher_forward.4} parent=1 // pred_region
      _
    $region41: #{stretcher_forward.4} parent=1 // pred_fallthru
      _
    %2608 = vsyncpa [#allocation3], 1
    %2609 = vsyncpa [#allocation5], 1

// kernel: stretcher_forward.5
$region0: #{stretcher_forward.5}
  #allocation0 [shape = 'u32[]', space=smem, size = 0x4, offset = 0x4, fixed_abs, tag = 'smem constant byte address 0x4 - core index']
  #allocation1 [shape = 'u32[144,128]{1,0:T(1,128)}', space=vmem, size = 0x12000, scoped, tag = 'internal scratch']
  %s0 = inlined_call_operand.vmem [shape: bf16[2,6272], index: 0, kind: input, shape index: {}]
  %s1 = inlined_call_operand.hbm [shape: bf16[6272,1024], index: 1, kind: input, shape index: {}]
  %s2 = inlined_call_operand.hbm [shape: f32[1,1024], index: 2, kind: input, shape index: {}]
  %s3 = inlined_call_operand.hbm [shape: f32[1,1024], index: 3, kind: input, shape index: {}]
  %s4 = inlined_call_operand.vmem [shape: f32[2,1024], index: 4, kind: input, shape index: {}]
  %s5 = inlined_call_operand.vmem [shape: f32[2,1024], index: 5, kind: output, shape index: {}]
  %s6 = sld [smem:[#allocation0]]
  $region73: #{stretcher_forward.5} parent=0
    _
  %s8 = ssub.s32 1, %s6
  %s9 = scalar_select 0, %s8, %s6
  $region1: #{stretcher_forward.5} parent=0
    #allocation2 [shape = 'u8[917504]{0}', space=vmem, size = 0xe0000, scoped, tag = 'input window, operand 1']
    #allocation3 [shape = 's32[2]{0}', space=sflag, size = 0x8, scoped, tag = 'scoped memory for stretcher_forward.5']
    #allocation4 [shape = 'u8[2048]{0}', space=vmem, size = 0x800, scoped, tag = 'input window, operand 2']
    #allocation5 [shape = 's32[2]{0}', space=sflag, size = 0x8, scoped, tag = 'scoped memory for stretcher_forward.5']
    #allocation6 [shape = 'u8[2048]{0}', space=vmem, size = 0x800, scoped, tag = 'input window, operand 3']
    %10 = vsyncpa [#allocation3], 0
    %s11 = scalar_lea.sflag [#allocation3], 1
    %12 = vsyncpa %s11, 0
    %13 = vsyncpa [#allocation5], 0
    %s14 = scalar_lea.sflag [#allocation5], 1
    %15 = vsyncpa %s14, 0
    loop: start=0, step=1, limit=30
    $region2: #{stretcher_forward.5} parent=1 // loop_pre_header
      _
    $region3: #{stretcher_forward.5} parent=1 // loop_header
      %s17 = sphi 0, %s21
      %p18 = scmp.ge.s32.totalorder %s17, 30
      %s24 = sphi 0, %s36
      %s25 = sphi 0, %s32
      %s26 = sphi 0, %s24
      %s27 = sphi 0, %s25
      %s28 = sphi 0, %s26
      %s29 = sphi 0, %s27
      %s39 = sphi 0, %s41
      %s42 = sphi 0, %s39
      %s43 = sphi 0, %s42
      %s59 = sphi 0, %s43
      %s67 = sphi 0, %s69
      %s70 = sphi 0, %s67
      %s71 = sphi 0, %s70
      %s87 = sphi 0, %s71
      %s93 = sphi 0, %s95
      %s96 = sphi 0, %s93
      %s97 = sphi 0, %s96
      %s113 = sphi 0, %s97
      %s119 = sphi 0, %s121
      %s122 = sphi 0, %s119
      %s123 = sphi 0, %s122
      %s139 = sphi 0, %s123
      %s145 = sphi 0, %s147
      %s148 = sphi 0, %s145
      %s149 = sphi 0, %s148
      %s165 = sphi 0, %s149
      %s171 = sphi 0, %s173
      %s174 = sphi 0, %s171
      %s175 = sphi 0, %s174
      %s191 = sphi 0, %s175
    $region4: #{stretcher_forward.5} parent=1 // loop_header_branch
      %20 = sbr.rel (%p18) target = $region8
    $region5: #{stretcher_forward.5} parent=1 // loop_body
      %s22 = ssub.s32 %s17, 1
      %s23 = ssub.s32 %s17, 2
      %s30 = sadd.s32 1, %s25
      %p31 = scmp.ge.s32.totalorder %s30, 7
      %s32 = scalar_select %p31, 0, %s30
      %s33 = sadd.s32 1, %s24
      %s34 = scalar_select %p31, %s33, %s24
      %p35 = scmp.ge.s32.totalorder %s34, 4
      %s36 = scalar_select %p35, 0, %s34
      %s37 = ssub.s32 %s25, %s32
      %p38 = scmp.eq.s32.totalorder %s37, 0
      %s40 = sadd.s32 %s39, 1
      %s41 = scalar_select %p38, %s39, %s40
      %p44 = pneg %p38
      %p45 = scmp.eq.s32.totalorder %s17, 27
      %p46 = por %p44, %p45
      %p47 = scmp.ne.s32.totalorder %s39, %s42
      %p48 = scmp.eq.s32.totalorder %s17, 0
      %p49 = por %p47, %p48
      %p50 = scmp.ne.s32.totalorder %s39, %s42
      %p51 = scmp.eq.s32.totalorder %s22, 27
      %p52 = por %p50, %p51
      %p53 = scmp.ne.s32.totalorder %s42, %s43
      %p54 = scmp.eq.s32.totalorder %s22, 0
      %p55 = por %p53, %p54
      %p56 = scmp.ne.s32.totalorder %s42, %s43
      %p57 = scmp.eq.s32.totalorder %s23, 27
      %p58 = por %p56, %p57
      %p60 = scmp.ne.s32.totalorder %s43, %s59
      %p61 = scmp.eq.s32.totalorder %s23, 0
      %p62 = por %p60, %p61
      %s63 = ssub.s32 %s25, %s32
      %s64 = ssub.s32 %s24, %s36
      %s65 = sor.u32 %s63, %s64
      %p66 = scmp.eq.s32.totalorder %s65, 0
      %s68 = sadd.s32 %s67, 1
      %s69 = scalar_select %p66, %s67, %s68
      %p72 = pneg %p66
      %p73 = scmp.eq.s32.totalorder %s17, 27
      %p74 = por %p72, %p73
      %p75 = scmp.ne.s32.totalorder %s67, %s70
      %p76 = scmp.eq.s32.totalorder %s17, 0
      %p77 = por %p75, %p76
      %p78 = scmp.ne.s32.totalorder %s67, %s70
      %p79 = scmp.eq.s32.totalorder %s22, 27
      %p80 = por %p78, %p79
      %p81 = scmp.ne.s32.totalorder %s70, %s71
      %p82 = scmp.eq.s32.totalorder %s22, 0
      %p83 = por %p81, %p82
      %p84 = scmp.ne.s32.totalorder %s70, %s71
      %p85 = scmp.eq.s32.totalorder %s23, 27
      %p86 = por %p84, %p85
      %p88 = scmp.ne.s32.totalorder %s71, %s87
      %p89 = scmp.eq.s32.totalorder %s23, 0
      %p90 = por %p88, %p89
      %s91 = ssub.s32 %s24, %s36
      %p92 = scmp.eq.s32.totalorder %s91, 0
      %s94 = sadd.s32 %s93, 1
      %s95 = scalar_select %p92, %s93, %s94
      %p98 = pneg %p92
      %p99 = scmp.eq.s32.totalorder %s17, 27
      %p100 = por %p98, %p99
      %p101 = scmp.ne.s32.totalorder %s93, %s96
      %p102 = scmp.eq.s32.totalorder %s17, 0
      %p103 = por %p101, %p102
      %p104 = scmp.ne.s32.totalorder %s93, %s96
      %p105 = scmp.eq.s32.totalorder %s22, 27
      %p106 = por %p104, %p105
      %p107 = scmp.ne.s32.totalorder %s96, %s97
      %p108 = scmp.eq.s32.totalorder %s22, 0
      %p109 = por %p107, %p108
      %p110 = scmp.ne.s32.totalorder %s96, %s97
      %p111 = scmp.eq.s32.totalorder %s23, 27
      %p112 = por %p110, %p111
      %p114 = scmp.ne.s32.totalorder %s97, %s113
      %p115 = scmp.eq.s32.totalorder %s23, 0
      %p116 = por %p114, %p115
      %s117 = ssub.s32 %s24, %s36
      %p118 = scmp.eq.s32.totalorder %s117, 0
      %s120 = sadd.s32 %s119, 1
      %s121 = scalar_select %p118, %s119, %s120
      %p124 = pneg %p118
      %p125 = scmp.eq.s32.totalorder %s17, 27
      %p126 = por %p124, %p125
      %p127 = scmp.ne.s32.totalorder %s119, %s122
      %p128 = scmp.eq.s32.totalorder %s17, 0
      %p129 = por %p127, %p128
      %p130 = scmp.ne.s32.totalorder %s119, %s122
      %p131 = scmp.eq.s32.totalorder %s22, 27
      %p132 = por %p130, %p131
      %p133 = scmp.ne.s32.totalorder %s122, %s123
      %p134 = scmp.eq.s32.totalorder %s22, 0
      %p135 = por %p133, %p134
      %p136 = scmp.ne.s32.totalorder %s122, %s123
      %p137 = scmp.eq.s32.totalorder %s23, 27
      %p138 = por %p136, %p137
      %p140 = scmp.ne.s32.totalorder %s123, %s139
      %p141 = scmp.eq.s32.totalorder %s23, 0
      %p142 = por %p140, %p141
      %s143 = ssub.s32 %s24, %s36
      %p144 = scmp.eq.s32.totalorder %s143, 0
      %s146 = sadd.s32 %s145, 1
      %s147 = scalar_select %p144, %s145, %s146
      %p150 = pneg %p144
      %p151 = scmp.eq.s32.totalorder %s17, 27
      %p152 = por %p150, %p151
      %p153 = scmp.ne.s32.totalorder %s145, %s148
      %p154 = scmp.eq.s32.totalorder %s17, 0
      %p155 = por %p153, %p154
      %p156 = scmp.ne.s32.totalorder %s145, %s148
      %p157 = scmp.eq.s32.totalorder %s22, 27
      %p158 = por %p156, %p157
      %p159 = scmp.ne.s32.totalorder %s148, %s149
      %p160 = scmp.eq.s32.totalorder %s22, 0
      %p161 = por %p159, %p160
      %p162 = scmp.ne.s32.totalorder %s148, %s149
      %p163 = scmp.eq.s32.totalorder %s23, 27
      %p164 = por %p162, %p163
      %p166 = scmp.ne.s32.totalorder %s149, %s165
      %p167 = scmp.eq.s32.totalorder %s23, 0
      %p168 = por %p166, %p167
      %s169 = ssub.s32 %s24, %s36
      %p170 = scmp.eq.s32.totalorder %s169, 0
      %s172 = sadd.s32 %s171, 1
      %s173 = scalar_select %p170, %s171, %s172
      %p176 = pneg %p170
      %p177 = scmp.eq.s32.totalorder %s17, 27
      %p178 = por %p176, %p177
      %p179 = scmp.ne.s32.totalorder %s171, %s174
      %p180 = scmp.eq.s32.totalorder %s17, 0
      %p181 = por %p179, %p180
      %p182 = scmp.ne.s32.totalorder %s171, %s174
      %p183 = scmp.eq.s32.totalorder %s22, 27
      %p184 = por %p182, %p183
      %p185 = scmp.ne.s32.totalorder %s174, %s175
      %p186 = scmp.eq.s32.totalorder %s22, 0
      %p187 = por %p185, %p186
      %p188 = scmp.ne.s32.totalorder %s174, %s175
      %p189 = scmp.eq.s32.totalorder %s23, 27
      %p190 = por %p188, %p189
      %p192 = scmp.ne.s32.totalorder %s175, %s191
      %p193 = scmp.eq.s32.totalorder %s23, 0
      %p194 = por %p192, %p193
      %p195 = scmp.le.s32.totalorder 1, %s17
      %p196 = scmp.lt.s32.totalorder %s17, 29
      %p197 = pnand %p195, %p196
      %p198 = pneg %p197
      // Predicated region
      $region9: #{stretcher_forward.5} parent=5 // pred_check
        _
      $region10: #{stretcher_forward.5} parent=5 // pred_check_branch
        %200 = sbr.rel (%p197) target = $region12
      $region11: #{stretcher_forward.5} parent=5 // pred_region
        %s201 = ssub.s32 %s17, 1
      $region12: #{stretcher_forward.5} parent=5 // pred_fallthru
        _
      %p202 = scmp.lt.s32.totalorder %s17, 28
      // Predicated region
      $region13: #{stretcher_forward.5} parent=5 // pred_check
        %p203 = pneg %p202
      $region14: #{stretcher_forward.5} parent=5 // pred_check_branch
        %205 = sbr.rel (%p203) target = $region16
      $region15: #{stretcher_forward.5} parent=5 // pred_region
        // Predicated region
        $region17: #{stretcher_forward.5} parent=15 // pred_check
          %p206 = pneg %p49
        $region18: #{stretcher_forward.5} parent=15 // pred_check_branch
          %208 = sbr.rel (%p206) target = $region20
        $region19: #{stretcher_forward.5} parent=15 // pred_region
          %s209 = smul.u32 7, %s25
          %p210 = scmp.lt.s32.totalorder %s209, 48
          %s211 = scalar_select %p210, %s209, 48
          %s212 = scalar_lea.vmem %s0, %s211
          %s213 = smul.u32 7, %s25
        $region20: #{stretcher_forward.5} parent=15 // pred_fallthru
          _
        // Predicated region
        $region21: #{stretcher_forward.5} parent=15 // pred_check
          %p214 = pneg %p77
        $region22: #{stretcher_forward.5} parent=15 // pred_check_branch
          %216 = sbr.rel (%p214) target = $region24
        $region23: #{stretcher_forward.5} parent=15 // pred_region
          %s217 = sand.u32 %s67, 1
          %s218 = scalar_lea.sflag [#allocation3], %s217
          %s219 = sand.u32 %s67, 1
          %s220 = smul.addr %s219, 896
          %s221 = scalar_lea.vmem [#allocation2], %s220
          %s222 = smul.u32 112, %s25
          %s223 = smul.u32 2, %s24
          %s225 = ssub.s32 14336, 14336
          %226 = vsyncadd %s218, %s225
          %s227 = smul.addr %s222, 8
          %s228 = sadd.s32 %s223, %s227
          %s229 = smul.addr %s228, 64
          %s230 = scalar_lea.hbm %s1, %s229
          %s231 = sshll.u32 %s221, 4
          %s232 = int_to_ptr.vmem [resolvable:$true] %s231
          %237 = dma.hbm_to_vmem [thread:$0]  %s230, 14336, %s232, %s218, 512, 128, 8
        $region24: #{stretcher_forward.5} parent=15 // pred_fallthru
          _
        // Predicated region
        $region25: #{stretcher_forward.5} parent=15 // pred_check
          %p238 = pneg %p103
        $region26: #{stretcher_forward.5} parent=15 // pred_check_branch
          %240 = sbr.rel (%p238) target = $region28
        $region27: #{stretcher_forward.5} parent=15 // pred_region
          %s241 = sand.u32 %s17, 1
          %s242 = scalar_lea.sflag [#allocation5], %s241
          %s243 = sand.u32 %s93, 1
          %s244 = smul.addr %s243, 2
          %s245 = scalar_lea.vmem [#allocation4], %s244
          %s246 = smul.u32 2, %s24
          %s248 = ssub.s32 32, 32
          %249 = vsyncadd %s242, %s248
          %s250 = smul.addr %s246, 16
          %s251 = scalar_lea.hbm %s2, %s250
          %s253 = sshll.u32 %s245, 4
          %s254 = int_to_ptr.vmem [resolvable:$true] %s253
          %256 = dma.hbm_to_vmem [thread:$0]  %s251, 32, %s254, %s242
        $region28: #{stretcher_forward.5} parent=15 // pred_fallthru
          _
        // Predicated region
        $region29: #{stretcher_forward.5} parent=15 // pred_check
          %p257 = pneg %p129
        $region30: #{stretcher_forward.5} parent=15 // pred_check_branch
          %259 = sbr.rel (%p257) target = $region32
        $region31: #{stretcher_forward.5} parent=15 // pred_region
          %s260 = sand.u32 %s17, 1
          %s261 = scalar_lea.sflag [#allocation5], %s260
          %s262 = sand.u32 %s119, 1
          %s263 = smul.addr %s262, 2
          %s264 = scalar_lea.vmem [#allocation6], %s263
          %s265 = smul.u32 2, %s24
          %s267 = ssub.s32 32, 32
          %268 = vsyncadd %s261, %s267
          %s269 = smul.addr %s265, 16
          %s270 = scalar_lea.hbm %s3, %s269
          %s272 = sshll.u32 %s264, 4
          %s273 = int_to_ptr.vmem [resolvable:$true] %s272
          %275 = dma.hbm_to_vmem [thread:$0]  %s270, 32, %s273, %s261
        $region32: #{stretcher_forward.5} parent=15 // pred_fallthru
          _
        // Predicated region
        $region33: #{stretcher_forward.5} parent=15 // pred_check
          %p276 = pneg %p155
        $region34: #{stretcher_forward.5} parent=15 // pred_check_branch
          %278 = sbr.rel (%p276) target = $region36
        $region35: #{stretcher_forward.5} parent=15 // pred_region
          %s279 = smul.u32 2, %s24
          %p280 = scmp.lt.s32.totalorder %s279, 7
          %s281 = scalar_select %p280, %s279, 7
          %s282 = smul.addr %s281, 2
          %s283 = scalar_lea.vmem %s4, %s282
          %s284 = smul.u32 2, %s24
        $region36: #{stretcher_forward.5} parent=15 // pred_fallthru
          _
      $region16: #{stretcher_forward.5} parent=5 // pred_fallthru
        _
      %p285 = scmp.le.s32.totalorder 1, %s17
      %p286 = scmp.lt.s32.totalorder %s17, 29
      %p287 = pnand %p285, %p286
      %p288 = pneg %p287
      // Predicated region
      $region37: #{stretcher_forward.5} parent=5 // pred_check
        _
      $region38: #{stretcher_forward.5} parent=5 // pred_check_branch
        %290 = sbr.rel (%p287) target = $region40
      $region39: #{stretcher_forward.5} parent=5 // pred_region
        %s291 = ssub.s32 %s17, 1
        %s292 = sand.u32 %s70, 1
        %s293 = scalar_lea.sflag [#allocation3], %s292
        %s294 = sand.u32 %s70, 1
        %s295 = smul.addr %s294, 896
        %s296 = scalar_lea.vmem [#allocation2], %s295
        // Predicated region
        $region41: #{stretcher_forward.5} parent=39 // pred_check
          %p297 = pneg %p83
        $region42: #{stretcher_forward.5} parent=39 // pred_check_branch
          %299 = sbr.rel (%p297) target = $region44
        $region43: #{stretcher_forward.5} parent=39 // pred_region
          %300 = dma.done %s293, 14336
        $region44: #{stretcher_forward.5} parent=39 // pred_fallthru
          _
        %s301 = sand.u32 %s22, 1
        %s302 = scalar_lea.sflag [#allocation5], %s301
        %s303 = sand.u32 %s96, 1
        %s304 = smul.addr %s303, 2
        %s305 = scalar_lea.vmem [#allocation4], %s304
        // Predicated region
        $region45: #{stretcher_forward.5} parent=39 // pred_check
          %p306 = pneg %p109
        $region46: #{stretcher_forward.5} parent=39 // pred_check_branch
          %308 = sbr.rel (%p306) target = $region48
        $region47: #{stretcher_forward.5} parent=39 // pred_region
          %309 = dma.done %s302, 32
        $region48: #{stretcher_forward.5} parent=39 // pred_fallthru
          _
        %s310 = sand.u32 %s22, 1
        %s311 = scalar_lea.sflag [#allocation5], %s310
        %s312 = sand.u32 %s122, 1
        %s313 = smul.addr %s312, 2
        %s314 = scalar_lea.vmem [#allocation6], %s313
        // Predicated region
        $region49: #{stretcher_forward.5} parent=39 // pred_check
          %p315 = pneg %p135
        $region50: #{stretcher_forward.5} parent=39 // pred_check_branch
          %317 = sbr.rel (%p315) target = $region52
        $region51: #{stretcher_forward.5} parent=39 // pred_region
          %318 = dma.done %s311, 32
        $region52: #{stretcher_forward.5} parent=39 // pred_fallthru
          _
        %s319 = smul.u32 7, %s27
        %p320 = scmp.lt.s32.totalorder %s319, 48
        %s321 = scalar_select %p320, %s319, 48
        %s322 = scalar_lea.vmem %s0, %s321
        %p323 = pneg %p55
        %p324 = pneg %p52
        %s325 = sand.u32 %s70, 1
        %s326 = scalar_lea.sflag [#allocation3], %s325
        %s327 = sand.u32 %s70, 1
        %s328 = smul.addr %s327, 896
        %s329 = scalar_lea.vmem [#allocation2], %s328
        %p330 = pneg %p83
        %p331 = pneg %p80
        %s332 = sand.u32 %s22, 1
        %s333 = scalar_lea.sflag [#allocation5], %s332
        %s334 = sand.u32 %s96, 1
        %s335 = smul.addr %s334, 2
        %s336 = scalar_lea.vmem [#allocation4], %s335
        %p337 = pneg %p109
        %p338 = pneg %p106
        %s339 = sand.u32 %s22, 1
        %s340 = scalar_lea.sflag [#allocation5], %s339
        %s341 = sand.u32 %s122, 1
        %s342 = smul.addr %s341, 2
        %s343 = scalar_lea.vmem [#allocation6], %s342
        %p344 = pneg %p135
        %p345 = pneg %p132
        %s346 = smul.u32 2, %s26
        %p347 = scmp.lt.s32.totalorder %s346, 7
        %s348 = scalar_select %p347, %s346, 7
        %s349 = smul.addr %s348, 2
        %s350 = scalar_lea.vmem %s4, %s349
        %p351 = pneg %p161
        %p352 = pneg %p158
        %p353 = pneg %p187
        %p354 = pneg %p184
        %s355 = smul.u32 2, %s26
        %p356 = scmp.lt.s32.totalorder %s355, 7
        %s357 = scalar_select %p356, %s355, 7
        %s358 = smul.addr %s357, 2
        %s359 = scalar_lea.vmem %s5, %s358
        %s360 = smul.u32 7, %s27
        %p361 = scmp.lt.s32.totalorder %s360, 48
        %s362 = scalar_select %p361, %s360, 48
        %s363 = scalar_lea.vmem %s0, %s362
        %s364 = smul.u32 7, %s27
        %s365 = smul.u32 112, %s27
        %s366 = smul.u32 2, %s26
        %s367 = smul.u32 2, %s26
        %s368 = smul.u32 2, %s26
        %s369 = smul.u32 2, %s26
        %p370 = scmp.lt.s32.totalorder %s369, 7
        %s371 = scalar_select %p370, %s369, 7
        %s372 = smul.addr %s371, 2
        %s373 = scalar_lea.vmem %s4, %s372
        %s374 = smul.u32 2, %s26
        %s375 = smul.u32 2, %s26
        %p376 = scmp.lt.s32.totalorder %s375, 7
        %s377 = scalar_select %p376, %s375, 7
        %s378 = smul.addr %s377, 2
        %s379 = scalar_lea.vmem %s5, %s378
        %s380 = smul.u32 2, %s26
        %p382 = scmp.eq.s32.totalorder %s27, 0
        // Predicated region
        $region53: #{stretcher_forward.5} parent=39 // pred_check
          %p383 = pneg %p382
        $region54: #{stretcher_forward.5} parent=39 // pred_check_branch
          %385 = sbr.rel (%p383) target = $region56
        $region55: #{stretcher_forward.5} parent=39 // pred_region
          %386 = vst [vmem:[%s379] sm:$0xf] 0.0
        $region56: #{stretcher_forward.5} parent=39 // pred_fallthru
          _
        %v387 = vld [vmem:[%s379] sm:$0xf]
        %v388 = vld [vmem:[%s363] sm:$0x7f]
        %v389 = vld [vmem:[%s296] sm:$0xff]
        %v390 = vld [vmem:[%s296 + $0x8] sm:$0xff]
        %v391 = vld [vmem:[%s296 + $0x10] sm:$0xff]
        %v392 = vld [vmem:[%s296 + $0x18] sm:$0xff]
        %v393 = vld [vmem:[%s296 + $0x20] sm:$0xff]
        %v394 = vld [vmem:[%s296 + $0x28] sm:$0xff]
        %v395 = vld [vmem:[%s296 + $0x30] sm:$0xff]
        %v396 = vld [vmem:[%s296 + $0x38] sm:$0xff]
        %v397 = vld [vmem:[%s296 + $0x40] sm:$0xff]
        %v398 = vld [vmem:[%s296 + $0x48] sm:$0xff]
        %v399 = vld [vmem:[%s296 + $0x50] sm:$0xff]
        %v400 = vld [vmem:[%s296 + $0x58] sm:$0xff]
        %v401 = vld [vmem:[%s296 + $0x60] sm:$0xff]
        %v402 = vld [vmem:[%s296 + $0x68] sm:$0xff]
        %v403 = vld [vmem:[%s296 + $0x70] sm:$0xff]
        %v404 = vld [vmem:[%s296 + $0x78] sm:$0xff]
        %v405 = vld [vmem:[%s296 + $0x80] sm:$0xff]
        %v406 = vld [vmem:[%s296 + $0x88] sm:$0xff]
        %v407 = vld [vmem:[%s296 + $0x90] sm:$0xff]
        %v408 = vld [vmem:[%s296 + $0x98] sm:$0xff]
        %v409 = vld [vmem:[%s296 + $0xa0] sm:$0xff]
        %v410 = vld [vmem:[%s296 + $0xa8] sm:$0xff]
        %v411 = vld [vmem:[%s296 + $0xb0] sm:$0xff]
        %v412 = vld [vmem:[%s296 + $0xb8] sm:$0xff]
        %v413 = vld [vmem:[%s296 + $0xc0] sm:$0xff]
        %v414 = vld [vmem:[%s296 + $0xc8] sm:$0xff]
        %v415 = vld [vmem:[%s296 + $0xd0] sm:$0xff]
        %v416 = vld [vmem:[%s296 + $0xd8] sm:$0xff]
        %v417 = vld [vmem:[%s296 + $0xe0] sm:$0xff]
        %v418 = vld [vmem:[%s296 + $0xe8] sm:$0xff]
        %v419 = vld [vmem:[%s296 + $0xf0] sm:$0xff]
        %v420 = vld [vmem:[%s296 + $0xf8] sm:$0xff]
        %v421 = vld [vmem:[%s296 + $0x100] sm:$0xff]
        %v422 = vld [vmem:[%s296 + $0x108] sm:$0xff]
        %v423 = vld [vmem:[%s296 + $0x110] sm:$0xff]
        %v424 = vld [vmem:[%s296 + $0x118] sm:$0xff]
        %v425 = vld [vmem:[%s296 + $0x120] sm:$0xff]
        %v426 = vld [vmem:[%s296 + $0x128] sm:$0xff]
        %v427 = vld [vmem:[%s296 + $0x130] sm:$0xff]
        %v428 = vld [vmem:[%s296 + $0x138] sm:$0xff]
        %v429 = vld [vmem:[%s296 + $0x140] sm:$0xff]
        %v430 = vld [vmem:[%s296 + $0x148] sm:$0xff]
        %v431 = vld [vmem:[%s296 + $0x150] sm:$0xff]
        %v432 = vld [vmem:[%s296 + $0x158] sm:$0xff]
        %v433 = vld [vmem:[%s296 + $0x160] sm:$0xff]
        %v434 = vld [vmem:[%s296 + $0x168] sm:$0xff]
        %v435 = vld [vmem:[%s296 + $0x170] sm:$0xff]
        %v436 = vld [vmem:[%s296 + $0x178] sm:$0xff]
        %v437 = vld [vmem:[%s296 + $0x180] sm:$0xff]
        %v438 = vld [vmem:[%s296 + $0x188] sm:$0xff]
        %v439 = vld [vmem:[%s296 + $0x190] sm:$0xff]
        %v440 = vld [vmem:[%s296 + $0x198] sm:$0xff]
        %v441 = vld [vmem:[%s296 + $0x1a0] sm:$0xff]
        %v442 = vld [vmem:[%s296 + $0x1a8] sm:$0xff]
        %v443 = vld [vmem:[%s296 + $0x1b0] sm:$0xff]
        %v444 = vld [vmem:[%s296 + $0x1b8] sm:$0xff]
        %v445 = vld [vmem:[%s296 + $0x1c0] sm:$0xff]
        %v446 = vld [vmem:[%s296 + $0x1c8] sm:$0xff]
        %v447 = vld [vmem:[%s296 + $0x1d0] sm:$0xff]
        %v448 = vld [vmem:[%s296 + $0x1d8] sm:$0xff]
        %v449 = vld [vmem:[%s296 + $0x1e0] sm:$0xff]
        %v450 = vld [vmem:[%s296 + $0x1e8] sm:$0xff]
        %v451 = vld [vmem:[%s296 + $0x1f0] sm:$0xff]
        %v452 = vld [vmem:[%s296 + $0x1f8] sm:$0xff]
        %v453 = vld [vmem:[%s296 + $0x200] sm:$0xff]
        %v454 = vld [vmem:[%s296 + $0x208] sm:$0xff]
        %v455 = vld [vmem:[%s296 + $0x210] sm:$0xff]
        %v456 = vld [vmem:[%s296 + $0x218] sm:$0xff]
        %v457 = vld [vmem:[%s296 + $0x220] sm:$0xff]
        %v458 = vld [vmem:[%s296 + $0x228] sm:$0xff]
        %v459 = vld [vmem:[%s296 + $0x230] sm:$0xff]
        %v460 = vld [vmem:[%s296 + $0x238] sm:$0xff]
        %v461 = vld [vmem:[%s296 + $0x240] sm:$0xff]
        %v462 = vld [vmem:[%s296 + $0x248] sm:$0xff]
        %v463 = vld [vmem:[%s296 + $0x250] sm:$0xff]
        %v464 = vld [vmem:[%s296 + $0x258] sm:$0xff]
        %v465 = vld [vmem:[%s296 + $0x260] sm:$0xff]
        %v466 = vld [vmem:[%s296 + $0x268] sm:$0xff]
        %v467 = vld [vmem:[%s296 + $0x270] sm:$0xff]
        %v468 = vld [vmem:[%s296 + $0x278] sm:$0xff]
        %v469 = vld [vmem:[%s296 + $0x280] sm:$0xff]
        %v470 = vld [vmem:[%s296 + $0x288] sm:$0xff]
        %v471 = vld [vmem:[%s296 + $0x290] sm:$0xff]
        %v472 = vld [vmem:[%s296 + $0x298] sm:$0xff]
        %v473 = vld [vmem:[%s296 + $0x2a0] sm:$0xff]
        %v474 = vld [vmem:[%s296 + $0x2a8] sm:$0xff]
        %v475 = vld [vmem:[%s296 + $0x2b0] sm:$0xff]
        %v476 = vld [vmem:[%s296 + $0x2b8] sm:$0xff]
        %v477 = vld [vmem:[%s296 + $0x2c0] sm:$0xff]
        %v478 = vld [vmem:[%s296 + $0x2c8] sm:$0xff]
        %v479 = vld [vmem:[%s296 + $0x2d0] sm:$0xff]
        %v480 = vld [vmem:[%s296 + $0x2d8] sm:$0xff]
        %v481 = vld [vmem:[%s296 + $0x2e0] sm:$0xff]
        %v482 = vld [vmem:[%s296 + $0x2e8] sm:$0xff]
        %v483 = vld [vmem:[%s296 + $0x2f0] sm:$0xff]
        %v484 = vld [vmem:[%s296 + $0x2f8] sm:$0xff]
        %v485 = vld [vmem:[%s296 + $0x300] sm:$0xff]
        %v486 = vld [vmem:[%s296 + $0x308] sm:$0xff]
        %v487 = vld [vmem:[%s296 + $0x310] sm:$0xff]
        %v488 = vld [vmem:[%s296 + $0x318] sm:$0xff]
        %v489 = vld [vmem:[%s296 + $0x320] sm:$0xff]
        %v490 = vld [vmem:[%s296 + $0x328] sm:$0xff]
        %v491 = vld [vmem:[%s296 + $0x330] sm:$0xff]
        %v492 = vld [vmem:[%s296 + $0x338] sm:$0xff]
        %v493 = vld [vmem:[%s296 + $0x340] sm:$0xff]
        %v494 = vld [vmem:[%s296 + $0x348] sm:$0xff]
        %v495 = vld [vmem:[%s296 + $0x350] sm:$0xff]
        %v496 = vld [vmem:[%s296 + $0x358] sm:$0xff]
        %v497 = vld [vmem:[%s296 + $0x360] sm:$0xff]
        %v498 = vld [vmem:[%s296 + $0x368] sm:$0xff]
        %v499 = vld [vmem:[%s296 + $0x370] sm:$0xff]
        %v500 = vld [vmem:[%s296 + $0x378] sm:$0xff]
        %v502 = vcombine.high %v388, %v388
        %v504 = vunpack.c.l.s4 1966171168
        %v505 = vunpack.c.0.s8 %v504
        %v506 = vlaneseq
        %v507 = vshrl.u32 %v506, 7
        %v508 = vsub.s32 %v505, %v507
        %v509 = vrot.slane %v388, %v508
        %v511 = vunpack.c.l.s4 1966171168
        %v512 = vunpack.c.0.s8 %v511
        %v513 = vlaneseq
        %v514 = vshrl.u32 %v513, 7
        %v515 = vsub.s32 %v512, %v514
        %v516 = vrot.slane %v502, %v515
        %v517 = vcombine.high %v509, %v509
        %v518 = vcombine.high %v516, %v516
        %v520 = vunpack.c.l.s4 1966171168
        %v521 = vunpack.c.0.s8 %v520
        %v522 = vlaneseq
        %v523 = vshrl.u32 %v522, 7
        %v524 = vsub.s32 %v521, %v523
        %v525 = vrot.slane %v509, %v524
        %v527 = vunpack.c.l.s4 1966171168
        %v528 = vunpack.c.0.s8 %v527
        %v529 = vlaneseq
        %v530 = vshrl.u32 %v529, 7
        %v531 = vsub.s32 %v528, %v530
        %v532 = vrot.slane %v516, %v531
        %v534 = vunpack.c.l.s4 1966171168
        %v535 = vunpack.c.0.s8 %v534
        %v536 = vlaneseq
        %v537 = vshrl.u32 %v536, 7
        %v538 = vsub.s32 %v535, %v537
        %v539 = vrot.slane %v517, %v538
        %v541 = vunpack.c.l.s4 1966171168
        %v542 = vunpack.c.0.s8 %v541
        %v543 = vlaneseq
        %v544 = vshrl.u32 %v543, 7
        %v545 = vsub.s32 %v542, %v544
        %v546 = vrot.slane %v518, %v545
        %v547 = vcombine.high %v525, %v525
        %v548 = vcombine.high %v532, %v532
        %v549 = vcombine.high %v539, %v539
        %v669 = vunpack.c.l.b16 %v389
        %v670 = vunpack.c.h.b16 %v389
        %v671 = vunpack.c.l.b16 %v390
        %v672 = vunpack.c.h.b16 %v390
        %v673 = vunpack.c.l.b16 %v391
        %v674 = vunpack.c.h.b16 %v391
        %v675 = vunpack.c.l.b16 %v392
        %v676 = vunpack.c.h.b16 %v392
        %v677 = vunpack.c.l.b16 %v393
        %v678 = vunpack.c.h.b16 %v393
        %v679 = vunpack.c.l.b16 %v394
        %v680 = vunpack.c.h.b16 %v394
        %v681 = vunpack.c.l.b16 %v395
        %v682 = vunpack.c.h.b16 %v395
        %v683 = vunpack.c.l.b16 %v396
        %v684 = vunpack.c.h.b16 %v396
        %v685 = vunpack.c.l.b16 %v397
        %v686 = vunpack.c.h.b16 %v397
        %v687 = vunpack.c.l.b16 %v398
        %v688 = vunpack.c.h.b16 %v398
        %v689 = vunpack.c.l.b16 %v399
        %v690 = vunpack.c.h.b16 %v399
        %v691 = vunpack.c.l.b16 %v400
        %v692 = vunpack.c.h.b16 %v400
        %v693 = vunpack.c.l.b16 %v401
        %v694 = vunpack.c.h.b16 %v401
        %v695 = vunpack.c.l.b16 %v402
        %v696 = vunpack.c.h.b16 %v402
        %v697 = vunpack.c.l.b16 %v403
        %v698 = vunpack.c.h.b16 %v403
        %v699 = vunpack.c.l.b16 %v404
        %v700 = vunpack.c.h.b16 %v404
        %v701 = vunpack.c.l.b16 %v405
        %v702 = vunpack.c.h.b16 %v405
        %v703 = vunpack.c.l.b16 %v406
        %v704 = vunpack.c.h.b16 %v406
        %v705 = vunpack.c.l.b16 %v407
        %v706 = vunpack.c.h.b16 %v407
        %v707 = vunpack.c.l.b16 %v408
        %v708 = vunpack.c.h.b16 %v408
        %v709 = vunpack.c.l.b16 %v409
        %v710 = vunpack.c.h.b16 %v409
        %v711 = vunpack.c.l.b16 %v410
        %v712 = vunpack.c.h.b16 %v410
        %v713 = vunpack.c.l.b16 %v411
        %v714 = vunpack.c.h.b16 %v411
        %v715 = vunpack.c.l.b16 %v412
        %v716 = vunpack.c.h.b16 %v412
        %v717 = vunpack.c.l.b16 %v413
        %v718 = vunpack.c.h.b16 %v413
        %v719 = vunpack.c.l.b16 %v414
        %v720 = vunpack.c.h.b16 %v414
        %v721 = vunpack.c.l.b16 %v415
        %v722 = vunpack.c.h.b16 %v415
        %v723 = vunpack.c.l.b16 %v416
        %v724 = vunpack.c.h.b16 %v416
        %v725 = vunpack.c.l.b16 %v417
        %v726 = vunpack.c.h.b16 %v417
        %v727 = vunpack.c.l.b16 %v418
        %v728 = vunpack.c.h.b16 %v418
        %v729 = vunpack.c.l.b16 %v419
        %v730 = vunpack.c.h.b16 %v419
        %v731 = vunpack.c.l.b16 %v420
        %v732 = vunpack.c.h.b16 %v420
        %v733 = vunpack.c.l.b16 %v421
        %v734 = vunpack.c.h.b16 %v421
        %v735 = vunpack.c.l.b16 %v422
        %v736 = vunpack.c.h.b16 %v422
        %v737 = vunpack.c.l.b16 %v423
        %v738 = vunpack.c.h.b16 %v423
        %v739 = vunpack.c.l.b16 %v424
        %v740 = vunpack.c.h.b16 %v424
        %v741 = vunpack.c.l.b16 %v425
        %v742 = vunpack.c.h.b16 %v425
        %v743 = vunpack.c.l.b16 %v426
        %v744 = vunpack.c.h.b16 %v426
        %v745 = vunpack.c.l.b16 %v427
        %v746 = vunpack.c.h.b16 %v427
        %v747 = vunpack.c.l.b16 %v428
        %v748 = vunpack.c.h.b16 %v428
        %v749 = vunpack.c.l.b16 %v429
        %v750 = vunpack.c.h.b16 %v429
        %v751 = vunpack.c.l.b16 %v430
        %v752 = vunpack.c.h.b16 %v430
        %v753 = vunpack.c.l.b16 %v431
        %v754 = vunpack.c.h.b16 %v431
        %v755 = vunpack.c.l.b16 %v432
        %v756 = vunpack.c.h.b16 %v432
        %v757 = vunpack.c.l.b16 %v433
        %v758 = vunpack.c.h.b16 %v433
        %v759 = vunpack.c.l.b16 %v434
        %v760 = vunpack.c.h.b16 %v434
        %v761 = vunpack.c.l.b16 %v435
        %v762 = vunpack.c.h.b16 %v435
        %v763 = vunpack.c.l.b16 %v436
        %v764 = vunpack.c.h.b16 %v436
        %v765 = vunpack.c.l.b16 %v437
        %v766 = vunpack.c.h.b16 %v437
        %v767 = vunpack.c.l.b16 %v438
        %v768 = vunpack.c.h.b16 %v438
        %v769 = vunpack.c.l.b16 %v439
        %v770 = vunpack.c.h.b16 %v439
        %v771 = vunpack.c.l.b16 %v440
        %v772 = vunpack.c.h.b16 %v440
        %v773 = vunpack.c.l.b16 %v441
        %v774 = vunpack.c.h.b16 %v441
        %v775 = vunpack.c.l.b16 %v442
        %v776 = vunpack.c.h.b16 %v442
        %v777 = vunpack.c.l.b16 %v443
        %v778 = vunpack.c.h.b16 %v443
        %v779 = vunpack.c.l.b16 %v444
        %v780 = vunpack.c.h.b16 %v444
        %v781 = vunpack.c.l.b16 %v445
        %v782 = vunpack.c.h.b16 %v445
        %v783 = vunpack.c.l.b16 %v446
        %v784 = vunpack.c.h.b16 %v446
        %v785 = vunpack.c.l.b16 %v447
        %v786 = vunpack.c.h.b16 %v447
        %v787 = vunpack.c.l.b16 %v448
        %v788 = vunpack.c.h.b16 %v448
        %v789 = vunpack.c.l.b16 %v449
        %v790 = vunpack.c.h.b16 %v449
        %v791 = vunpack.c.l.b16 %v450
        %v792 = vunpack.c.h.b16 %v450
        %v793 = vunpack.c.l.b16 %v451
        %v794 = vunpack.c.h.b16 %v451
        %v795 = vunpack.c.l.b16 %v452
        %v796 = vunpack.c.h.b16 %v452
        %v797 = vunpack.c.l.b16 %v453
        %v798 = vunpack.c.h.b16 %v453
        %v799 = vunpack.c.l.b16 %v454
        %v800 = vunpack.c.h.b16 %v454
        %v801 = vunpack.c.l.b16 %v455
        %v802 = vunpack.c.h.b16 %v455
        %v803 = vunpack.c.l.b16 %v456
        %v804 = vunpack.c.h.b16 %v456
        %v805 = vunpack.c.l.b16 %v457
        %v806 = vunpack.c.h.b16 %v457
        %v807 = vunpack.c.l.b16 %v458
        %v808 = vunpack.c.h.b16 %v458
        %v809 = vunpack.c.l.b16 %v459
        %v810 = vunpack.c.h.b16 %v459
        %v811 = vunpack.c.l.b16 %v460
        %v812 = vunpack.c.h.b16 %v460
        %v813 = vunpack.c.l.b16 %v461
        %v814 = vunpack.c.h.b16 %v461
        %v815 = vunpack.c.l.b16 %v462
        %v816 = vunpack.c.h.b16 %v462
        %v817 = vunpack.c.l.b16 %v463
        %v818 = vunpack.c.h.b16 %v463
        %v819 = vunpack.c.l.b16 %v464
        %v820 = vunpack.c.h.b16 %v464
        %v821 = vunpack.c.l.b16 %v465
        %v822 = vunpack.c.h.b16 %v465
        %v823 = vunpack.c.l.b16 %v466
        %v824 = vunpack.c.h.b16 %v466
        %v825 = vunpack.c.l.b16 %v467
        %v826 = vunpack.c.h.b16 %v467
        %v827 = vunpack.c.l.b16 %v468
        %v828 = vunpack.c.h.b16 %v468
        %v829 = vunpack.c.l.b16 %v469
        %v830 = vunpack.c.h.b16 %v469
        %v831 = vunpack.c.l.b16 %v470
        %v832 = vunpack.c.h.b16 %v470
        %v833 = vunpack.c.l.b16 %v471
        %v834 = vunpack.c.h.b16 %v471
        %v835 = vunpack.c.l.b16 %v472
        %v836 = vunpack.c.h.b16 %v472
        %v837 = vunpack.c.l.b16 %v473
        %v838 = vunpack.c.h.b16 %v473
        %v839 = vunpack.c.l.b16 %v474
        %v840 = vunpack.c.h.b16 %v474
        %v841 = vunpack.c.l.b16 %v475
        %v842 = vunpack.c.h.b16 %v475
        %v843 = vunpack.c.l.b16 %v476
        %v844 = vunpack.c.h.b16 %v476
        %v845 = vunpack.c.l.b16 %v477
        %v846 = vunpack.c.h.b16 %v477
        %v847 = vunpack.c.l.b16 %v478
        %v848 = vunpack.c.h.b16 %v478
        %v849 = vunpack.c.l.b16 %v479
        %v850 = vunpack.c.h.b16 %v479
        %v851 = vunpack.c.l.b16 %v480
        %v852 = vunpack.c.h.b16 %v480
        %v853 = vunpack.c.l.b16 %v481
        %v854 = vunpack.c.h.b16 %v481
        %v855 = vunpack.c.l.b16 %v482
        %v856 = vunpack.c.h.b16 %v482
        %v857 = vunpack.c.l.b16 %v483
        %v858 = vunpack.c.h.b16 %v483
        %v859 = vunpack.c.l.b16 %v484
        %v860 = vunpack.c.h.b16 %v484
        %v861 = vunpack.c.l.b16 %v485
        %v862 = vunpack.c.h.b16 %v485
        %v863 = vunpack.c.l.b16 %v486
        %v864 = vunpack.c.h.b16 %v486
        %v865 = vunpack.c.l.b16 %v487
        %v866 = vunpack.c.h.b16 %v487
        %v867 = vunpack.c.l.b16 %v488
        %v868 = vunpack.c.h.b16 %v488
        %v869 = vunpack.c.l.b16 %v489
        %v870 = vunpack.c.h.b16 %v489
        %v871 = vunpack.c.l.b16 %v490
        %v872 = vunpack.c.h.b16 %v490
        %v873 = vunpack.c.l.b16 %v491
        %v874 = vunpack.c.h.b16 %v491
        %v875 = vunpack.c.l.b16 %v492
        %v876 = vunpack.c.h.b16 %v492
        %v877 = vunpack.c.l.b16 %v493
        %v878 = vunpack.c.h.b16 %v493
        %v879 = vunpack.c.l.b16 %v494
        %v880 = vunpack.c.h.b16 %v494
        %v881 = vunpack.c.l.b16 %v495
        %v882 = vunpack.c.h.b16 %v495
        %v883 = vunpack.c.l.b16 %v496
        %v884 = vunpack.c.h.b16 %v496
        %v885 = vunpack.c.l.b16 %v497
        %v886 = vunpack.c.h.b16 %v497
        %v887 = vunpack.c.l.b16 %v498
        %v888 = vunpack.c.h.b16 %v498
        %v889 = vunpack.c.l.b16 %v499
        %v890 = vunpack.c.h.b16 %v499
        %v891 = vunpack.c.l.b16 %v500
        %v892 = vunpack.c.h.b16 %v500
        %v893 = vpack.c.b16 %v671, %v669
        %v894 = vpack.c.b16 %v672, %v670
        %v895 = vpack.c.b16 %v675, %v673
        %v896 = vpack.c.b16 %v676, %v674
        %v897 = vpack.c.b16 %v679, %v677
        %v898 = vpack.c.b16 %v680, %v678
        %v899 = vpack.c.b16 %v683, %v681
        %v900 = vpack.c.b16 %v684, %v682
        %v901 = vpack.c.b16 %v687, %v685
        %v902 = vpack.c.b16 %v688, %v686
        %v903 = vpack.c.b16 %v691, %v689
        %v904 = vpack.c.b16 %v692, %v690
        %v905 = vpack.c.b16 %v695, %v693
        %v906 = vpack.c.b16 %v696, %v694
        %v907 = vpack.c.b16 %v699, %v697
        %v908 = vpack.c.b16 %v700, %v698
        %v909 = vpack.c.b16 %v703, %v701
        %v910 = vpack.c.b16 %v704, %v702
        %v911 = vpack.c.b16 %v707, %v705
        %v912 = vpack.c.b16 %v708, %v706
        %v913 = vpack.c.b16 %v711, %v709
        %v914 = vpack.c.b16 %v712, %v710
        %v915 = vpack.c.b16 %v715, %v713
        %v916 = vpack.c.b16 %v716, %v714
        %v917 = vpack.c.b16 %v719, %v717
        %v918 = vpack.c.b16 %v720, %v718
        %v919 = vpack.c.b16 %v723, %v721
        %v920 = vpack.c.b16 %v724, %v722
        %v921 = vpack.c.b16 %v727, %v725
        %v922 = vpack.c.b16 %v728, %v726
        %v923 = vpack.c.b16 %v731, %v729
        %v924 = vpack.c.b16 %v732, %v730
        %v925 = vpack.c.b16 %v735, %v733
        %v926 = vpack.c.b16 %v736, %v734
        %v927 = vpack.c.b16 %v739, %v737
        %v928 = vpack.c.b16 %v740, %v738
        %v929 = vpack.c.b16 %v743, %v741
        %v930 = vpack.c.b16 %v744, %v742
        %v931 = vpack.c.b16 %v747, %v745
        %v932 = vpack.c.b16 %v748, %v746
        %v933 = vpack.c.b16 %v751, %v749
        %v934 = vpack.c.b16 %v752, %v750
        %v935 = vpack.c.b16 %v755, %v753
        %v936 = vpack.c.b16 %v756, %v754
        %v937 = vpack.c.b16 %v759, %v757
        %v938 = vpack.c.b16 %v760, %v758
        %v939 = vpack.c.b16 %v763, %v761
        %v940 = vpack.c.b16 %v764, %v762
        %v941 = vpack.c.b16 %v767, %v765
        %v942 = vpack.c.b16 %v768, %v766
        %v943 = vpack.c.b16 %v771, %v769
        %v944 = vpack.c.b16 %v772, %v770
        %v945 = vpack.c.b16 %v775, %v773
        %v946 = vpack.c.b16 %v776, %v774
        %v947 = vpack.c.b16 %v779, %v777
        %v948 = vpack.c.b16 %v780, %v778
        %v949 = vpack.c.b16 %v783, %v781
        %v950 = vpack.c.b16 %v784, %v782
        %v951 = vpack.c.b16 %v787, %v785
        %v952 = vpack.c.b16 %v788, %v786
        %v953 = vpack.c.b16 %v791, %v789
        %v954 = vpack.c.b16 %v792, %v790
        %v955 = vpack.c.b16 %v795, %v793
        %v956 = vpack.c.b16 %v796, %v794
        %v957 = vpack.c.b16 %v799, %v797
        %v958 = vpack.c.b16 %v800, %v798
        %v959 = vpack.c.b16 %v803, %v801
        %v960 = vpack.c.b16 %v804, %v802
        %v961 = vpack.c.b16 %v807, %v805
        %v962 = vpack.c.b16 %v808, %v806
        %v963 = vpack.c.b16 %v811, %v809
        %v964 = vpack.c.b16 %v812, %v810
        %v965 = vpack.c.b16 %v815, %v813
        %v966 = vpack.c.b16 %v816, %v814
        %v967 = vpack.c.b16 %v819, %v817
        %v968 = vpack.c.b16 %v820, %v818
        %v969 = vpack.c.b16 %v823, %v821
        %v970 = vpack.c.b16 %v824, %v822
        %v971 = vpack.c.b16 %v827, %v825
        %v972 = vpack.c.b16 %v828, %v826
        %v973 = vpack.c.b16 %v831, %v829
        %v974 = vpack.c.b16 %v832, %v830
        %v975 = vpack.c.b16 %v835, %v833
        %v976 = vpack.c.b16 %v836, %v834
        %v977 = vpack.c.b16 %v839, %v837
        %v978 = vpack.c.b16 %v840, %v838
        %v979 = vpack.c.b16 %v843, %v841
        %v980 = vpack.c.b16 %v844, %v842
        %v981 = vpack.c.b16 %v847, %v845
        %v982 = vpack.c.b16 %v848, %v846
        %v983 = vpack.c.b16 %v851, %v849
        %v984 = vpack.c.b16 %v852, %v850
        %v985 = vpack.c.b16 %v855, %v853
        %v986 = vpack.c.b16 %v856, %v854
        %v987 = vpack.c.b16 %v859, %v857
        %v988 = vpack.c.b16 %v860, %v858
        %v989 = vpack.c.b16 %v863, %v861
        %v990 = vpack.c.b16 %v864, %v862
        %v991 = vpack.c.b16 %v867, %v865
        %v992 = vpack.c.b16 %v868, %v866
        %v993 = vpack.c.b16 %v871, %v869
        %v994 = vpack.c.b16 %v872, %v870
        %v995 = vpack.c.b16 %v875, %v873
        %v996 = vpack.c.b16 %v876, %v874
        %v997 = vpack.c.b16 %v879, %v877
        %v998 = vpack.c.b16 %v880, %v878
        %v999 = vpack.c.b16 %v883, %v881
        %v1000 = vpack.c.b16 %v884, %v882
        %v1001 = vpack.c.b16 %v887, %v885
        %v1002 = vpack.c.b16 %v888, %v886
        %v1003 = vpack.c.b16 %v891, %v889
        %v1004 = vpack.c.b16 %v892, %v890
        %1117 = vmatprep.subr.bf16.mxu0 %v894
        %1118 = vmatpush1.bf16.msra.mxu0 %v893
        %1119 = vmatprep.subr.bf16.mxu0 %v896
        %1120 = vmatpush1.bf16.msra.mxu0 %v895
        %1121 = vmatprep.subr.bf16.mxu0 %v898
        %1122 = vmatpush1.bf16.msra.mxu0 %v897
        %1123 = vmatprep.subr.bf16.mxu0 %v900
        %1124 = vmatpush1.bf16.msra.mxu0 %v899
        %1125 = vmatprep.subr.bf16.mxu0 %v902
        %1126 = vmatpush1.bf16.msra.mxu0 %v901
        %1127 = vmatprep.subr.bf16.mxu0 %v904
        %1128 = vmatpush1.bf16.msra.mxu0 %v903
        %1129 = vmatprep.subr.bf16.mxu0 %v906
        %1130 = vmatpush1.bf16.msra.mxu0 %v905
        %1131 = vmatprep.subr.bf16.mxu0 %v908
        %1132 = vmatpush1.bf16.msra.mxu0 %v907
        %1133 = vmatprep.subr.bf16.mxu0 %v910
        %1134 = vmatpush1.bf16.msra.mxu0 %v909
        %1135 = vmatprep.subr.bf16.mxu0 %v912
        %1136 = vmatpush1.bf16.msra.mxu0 %v911
        %1137 = vmatprep.subr.bf16.mxu0 %v914
        %1138 = vmatpush1.bf16.msra.mxu0 %v913
        %1139 = vmatprep.subr.bf16.mxu0 %v916
        %1140 = vmatpush1.bf16.msra.mxu0 %v915
        %1141 = vmatprep.subr.bf16.mxu0 %v918
        %1142 = vmatpush1.bf16.msra.mxu0 %v917
        %1143 = vmatprep.subr.bf16.mxu0 %v920
        %1144 = vmatpush1.bf16.msra.mxu0 %v919
        %1145 = vmatprep.subr.bf16.mxu0 %v922
        %1146 = vmatpush1.bf16.msra.mxu0 %v921
        %1147 = vmatprep.subr.bf16.mxu0 %v924
        %1148 = vmatpush1.bf16.msra.mxu0 %v923
        %1149 = vmatprep.mubr.bf16.mxu0 %v539
        %1150 = vmatmul.mubr.bf16.gmra.mrb[0].mxu0 %v525
        %v1151 = vpop.f32.mrb[0].mxu0
        %v1152 = vadd.f32 0.0, %v1151
        %v1153 = vpop.f32.mrb[0].mxu0
        %v1154 = vadd.f32 0.0, %v1153
        %v1155 = vpop.f32.mrb[0].mxu0
        %v1156 = vpop.f32.mrb[0].mxu0
        %1157 = vdwg.mxu0
        %1158 = vmatprep.subr.bf16.mxu0 %v926
        %1159 = vmatpush1.bf16.msra.mxu0 %v925
        %1160 = vmatprep.subr.bf16.mxu0 %v928
        %1161 = vmatpush1.bf16.msra.mxu0 %v927
        %1162 = vmatprep.subr.bf16.mxu0 %v930
        %1163 = vmatpush1.bf16.msra.mxu0 %v929
        %1164 = vmatprep.subr.bf16.mxu0 %v932
        %1165 = vmatpush1.bf16.msra.mxu0 %v931
        %1166 = vmatprep.subr.bf16.mxu0 %v934
        %1167 = vmatpush1.bf16.msra.mxu0 %v933
        %1168 = vmatprep.subr.bf16.mxu0 %v936
        %1169 = vmatpush1.bf16.msra.mxu0 %v935
        %1170 = vmatprep.subr.bf16.mxu0 %v938
        %1171 = vmatpush1.bf16.msra.mxu0 %v937
        %1172 = vmatprep.subr.bf16.mxu0 %v940
        %1173 = vmatpush1.bf16.msra.mxu0 %v939
        %1174 = vmatprep.subr.bf16.mxu0 %v942
        %1175 = vmatpush1.bf16.msra.mxu0 %v941
        %1176 = vmatprep.subr.bf16.mxu0 %v944
        %1177 = vmatpush1.bf16.msra.mxu0 %v943
        %1178 = vmatprep.subr.bf16.mxu0 %v946
        %1179 = vmatpush1.bf16.msra.mxu0 %v945
        %1180 = vmatprep.subr.bf16.mxu0 %v948
        %1181 = vmatpush1.bf16.msra.mxu0 %v947
        %1182 = vmatprep.subr.bf16.mxu0 %v950
        %1183 = vmatpush1.bf16.msra.mxu0 %v949
        %1184 = vmatprep.subr.bf16.mxu0 %v952
        %1185 = vmatpush1.bf16.msra.mxu0 %v951
        %1186 = vmatprep.subr.bf16.mxu0 %v954
        %1187 = vmatpush1.bf16.msra.mxu0 %v953
        %1188 = vmatprep.subr.bf16.mxu0 %v956
        %1189 = vmatpush1.bf16.msra.mxu0 %v955
        %1190 = vmatprep.mubr.bf16.mxu0 %v549
        %1191 = vmatmul.mubr.bf16.gmra.mrb[0].mxu0 %v547
        %v1192 = vpop.f32.mrb[0].mxu0
        %v1193 = vadd.f32 %v1152, %v1192
        %v1194 = vpop.f32.mrb[0].mxu0
        %v1195 = vadd.f32 %v1154, %v1194
        %v1196 = vpop.f32.mrb[0].mxu0
        %v1197 = vpop.f32.mrb[0].mxu0
        %1198 = vdwg.mxu0
        %1199 = vmatprep.subr.bf16.mxu0 %v958
        %1200 = vmatpush1.bf16.msra.mxu0 %v957
        %1201 = vmatprep.subr.bf16.mxu0 %v960
        %1202 = vmatpush1.bf16.msra.mxu0 %v959
        %1203 = vmatprep.subr.bf16.mxu0 %v962
        %1204 = vmatpush1.bf16.msra.mxu0 %v961
        %1205 = vmatprep.subr.bf16.mxu0 %v964
        %1206 = vmatpush1.bf16.msra.mxu0 %v963
        %1207 = vmatprep.subr.bf16.mxu0 %v966
        %1208 = vmatpush1.bf16.msra.mxu0 %v965
        %1209 = vmatprep.subr.bf16.mxu0 %v968
        %1210 = vmatpush1.bf16.msra.mxu0 %v967
        %1211 = vmatprep.subr.bf16.mxu0 %v970
        %1212 = vmatpush1.bf16.msra.mxu0 %v969
        %1213 = vmatprep.subr.bf16.mxu0 %v972
        %1214 = vmatpush1.bf16.msra.mxu0 %v971
        %1215 = vmatprep.subr.bf16.mxu0 %v974
        %1216 = vmatpush1.bf16.msra.mxu0 %v973
        %1217 = vmatprep.subr.bf16.mxu0 %v976
        %1218 = vmatpush1.bf16.msra.mxu0 %v975
        %1219 = vmatprep.subr.bf16.mxu0 %v978
        %1220 = vmatpush1.bf16.msra.mxu0 %v977
        %1221 = vmatprep.subr.bf16.mxu0 %v980
        %1222 = vmatpush1.bf16.msra.mxu0 %v979
        %1223 = vmatprep.subr.bf16.mxu0 %v982
        %1224 = vmatpush1.bf16.msra.mxu0 %v981
        %1225 = vmatprep.subr.bf16.mxu0 %v984
        %1226 = vmatpush1.bf16.msra.mxu0 %v983
        %1227 = vmatprep.subr.bf16.mxu0 %v986
        %1228 = vmatpush1.bf16.msra.mxu0 %v985
        %1229 = vmatprep.subr.bf16.mxu0 %v988
        %1230 = vmatpush1.bf16.msra.mxu0 %v987
        %1231 = vmatprep.mubr.bf16.mxu0 %v546
        %1232 = vmatmul.mubr.bf16.gmra.mrb[0].mxu0 %v532
        %v1233 = vpop.f32.mrb[0].mxu0
        %v1234 = vadd.f32 %v1193, %v1233
        %v1235 = vpop.f32.mrb[0].mxu0
        %v1236 = vadd.f32 %v1195, %v1235
        %v1237 = vpop.f32.mrb[0].mxu0
        %v1238 = vpop.f32.mrb[0].mxu0
        %1239 = vdwg.mxu0
        %1240 = vmatprep.subr.bf16.mxu0 %v990
        %1241 = vmatpush1.bf16.msra.mxu0 %v989
        %1242 = vmatprep.subr.bf16.mxu0 %v992
        %1243 = vmatpush1.bf16.msra.mxu0 %v991
        %1244 = vmatprep.subr.bf16.mxu0 %v994
        %1245 = vmatpush1.bf16.msra.mxu0 %v993
        %1246 = vmatprep.subr.bf16.mxu0 %v996
        %1247 = vmatpush1.bf16.msra.mxu0 %v995
        %1248 = vmatprep.subr.bf16.mxu0 %v998
        %1249 = vmatpush1.bf16.msra.mxu0 %v997
        %1250 = vmatprep.subr.bf16.mxu0 %v1000
        %1251 = vmatpush1.bf16.msra.mxu0 %v999
        %1252 = vmatprep.subr.bf16.mxu0 %v1002
        %1253 = vmatpush1.bf16.msra.mxu0 %v1001
        %1254 = vmatprep.subr.bf16.mxu0 %v1004
        %1255 = vmatpush1.bf16.msra.mxu0 %v1003
        %1256 = vmatprep.subr.bf16.mxu0 0
        %1257 = vmatpush1.bf16.msra.mxu0 0
        %1258 = vmatprep.subr.bf16.mxu0 0
        %1259 = vmatpush1.bf16.msra.mxu0 0
        %1260 = vmatprep.subr.bf16.mxu0 0
        %1261 = vmatpush1.bf16.msra.mxu0 0
        %1262 = vmatprep.subr.bf16.mxu0 0
        %1263 = vmatpush1.bf16.msra.mxu0 0
        %1264 = vmatprep.subr.bf16.mxu0 0
        %1265 = vmatpush1.bf16.msra.mxu0 0
        %1266 = vmatprep.subr.bf16.mxu0 0
        %1267 = vmatpush1.bf16.msra.mxu0 0
        %1268 = vmatprep.subr.bf16.mxu0 0
        %1269 = vmatpush1.bf16.msra.mxu0 0
        %1270 = vmatprep.subr.bf16.mxu0 0
        %1271 = vmatpush1.bf16.msra.mxu0 0
        %1272 = vmatprep.mubr.bf16.mxu0 0
        %1273 = vmatmul.mubr.bf16.gmra.mrb[0].mxu0 %v548
        %v1274 = vpop.f32.mrb[0].mxu0
        %v1275 = vadd.f32 %v1234, %v1274
        %v1276 = vpop.f32.mrb[0].mxu0
        %v1277 = vadd.f32 %v1236, %v1276
        %v1278 = vpop.f32.mrb[0].mxu0
        %v1279 = vpop.f32.mrb[0].mxu0
        %1280 = vdwg.mxu0
        %v1283 = vcombine.low %v1275, %v1277
        %v1285 = vunpack.c.l.s4 1983009808
        %v1286 = vunpack.c.0.s8 %v1285
        %v1287 = vlaneseq
        %v1288 = vshrl.u32 %v1287, 7
        %v1289 = vsub.s32 %v1286, %v1288
        %v1290 = vrot.slane %v1283, %v1289
        %v1292 = vadd.f32 %v387, %v1290
        %1293 = vst [vmem:[%s379] sm:$0xf] %v1292
        %p1294 = scmp.eq.s32.totalorder %s27, 6
        // Predicated region
        $region57: #{stretcher_forward.5} parent=39 // pred_check
          %p1295 = pneg %p1294
        $region58: #{stretcher_forward.5} parent=39 // pred_check_branch
          %1297 = sbr.rel (%p1295) target = $region60
        $region59: #{stretcher_forward.5} parent=39 // pred_region
          %v1298 = vld [vmem:[%s379] sm:$0xf]
          %v1299 = vld [vmem:[%s373] sm:$0xf]
          %v1300 = vadd.f32 %v1298, %v1299
          %v1303 = vunpack.c.l.s4 1983009808
          %v1304 = vunpack.c.0.s8 %v1303
          %v1305 = vlaneseq
          %v1306 = vshrl.u32 %v1305, 7
          %v1307 = vsub.s32 %v1304, %v1306
          %v1308 = vrot.slane %v1300, %v1307
          %v1309 = vcombine.high %v1308, %v1308
          %vm1312 = vcmask 1041408
          %v1313 = vsel %vm1312, %v1308, 0.0
          %v1314 = vrot.slane %v1313, 4
          %v1315 = vadd.f32 %v1313, %v1314
          %v1316 = vrot.slane %v1315, 2
          %v1317 = vadd.f32 %v1315, %v1316
          %v1318 = vrot.slane %v1317, 1
          %v1319 = vadd.f32 %v1317, %v1318
          %v1320 = vsel %vm1312, %v1309, 0.0
          %v1321 = vrot.slane %v1320, 4
          %v1322 = vadd.f32 %v1320, %v1321
          %v1323 = vrot.slane %v1322, 2
          %v1324 = vadd.f32 %v1322, %v1323
          %v1325 = vrot.slane %v1324, 1
          %v1326 = vadd.f32 %v1324, %v1325
          %v1327 = vrcp.pop 2.0
          %v1328 = vmul.f32 %v1319, %v1327
          %v1329 = vmul.f32 %v1326, %v1327
          %v1332 = vcombine.low %v1328, %v1329
          %v1334 = vunpack.c.l.s4 1983009808
          %v1335 = vunpack.c.0.s8 %v1334
          %v1336 = vlaneseq
          %v1337 = vshrl.u32 %v1336, 7
          %v1338 = vsub.s32 %v1335, %v1337
          %v1339 = vrot.slane %v1332, %v1338
          %v1341 = vsub.f32 %v1300, %v1339
          %v1342 = vmul.f32 %v1341, %v1341
          %v1345 = vunpack.c.l.s4 1983009808
          %v1346 = vunpack.c.0.s8 %v1345
          %v1347 = vlaneseq
          %v1348 = vshrl.u32 %v1347, 7
          %v1349 = vsub.s32 %v1346, %v1348
          %v1350 = vrot.slane %v1342, %v1349
          %v1351 = vcombine.high %v1350, %v1350
          %v1354 = vsel %vm1312, %v1350, 0.0
          %v1355 = vrot.slane %v1354, 4
          %v1356 = vadd.f32 %v1354, %v1355
          %v1357 = vrot.slane %v1356, 2
          %v1358 = vadd.f32 %v1356, %v1357
          %v1359 = vrot.slane %v1358, 1
          %v1360 = vadd.f32 %v1358, %v1359
          %v1361 = vsel %vm1312, %v1351, 0.0
          %v1362 = vrot.slane %v1361, 4
          %v1363 = vadd.f32 %v1361, %v1362
          %v1364 = vrot.slane %v1363, 2
          %v1365 = vadd.f32 %v1363, %v1364
          %v1366 = vrot.slane %v1365, 1
          %v1367 = vadd.f32 %v1365, %v1366
          %v1368 = vmul.f32 %v1360, %v1327
          %v1369 = vmul.f32 %v1367, %v1327
          %v1370 = vld [vmem:[%s305] sm:$0x3]
          %v1371 = vadd.f32 %v1368, 1e-05
          %v1372 = vadd.f32 %v1369, 1e-05
          %v1373 = vrsqrt.pop %v1371
          %v1374 = vrsqrt.pop %v1372
          %v1377 = vcombine.low %v1373, %v1374
          %v1379 = vunpack.c.l.s4 1966171168
          %v1380 = vunpack.c.0.s8 %v1379
          %v1381 = vlaneseq
          %v1382 = vshrl.u32 %v1381, 7
          %v1383 = vsub.s32 %v1380, %v1382
          %v1384 = vrot.slane %v1377, %v1383
          %v1386 = vunpack.c.l.s4 1966171168
          %v1387 = vunpack.c.0.s8 %v1386
          %v1388 = vlaneseq
          %v1389 = vshrl.u32 %v1388, 7
          %v1390 = vsub.s32 %v1387, %v1389
          %v1391 = vrot.slane %v1384, %v1390
          %v1393 = vmul.f32 %v1370, %v1391
          %v1394 = vld [vmem:[%s314] sm:$0x3]
          %v1396 = vlaneseq
          %v1397 = vshrl.u32 %v1396, 7
          %v1398 = vsub.s32 0, %v1397
          %v1399 = vrot.slane %v1393, %v1398
          %v1400 = vlaneseq
          %v1401 = vshrl.u32 %v1400, 7
          %v1402 = vsub.s32 1, %v1401
          %v1403 = vrot.slane %v1393, %v1402
          %v1406 = vmul.f32 %v1328, %v1399
          %v1407 = vmul.f32 %v1329, %v1403
          %v1410 = vcombine.low %v1406, %v1407
          %v1412 = vunpack.c.l.s4 1966171168
          %v1413 = vunpack.c.0.s8 %v1412
          %v1414 = vlaneseq
          %v1415 = vshrl.u32 %v1414, 7
          %v1416 = vsub.s32 %v1413, %v1415
          %v1417 = vrot.slane %v1410, %v1416
          %v1419 = vunpack.c.l.s4 1966171168
          %v1420 = vunpack.c.0.s8 %v1419
          %v1421 = vlaneseq
          %v1422 = vshrl.u32 %v1421, 7
          %v1423 = vsub.s32 %v1420, %v1422
          %v1424 = vrot.slane %v1417, %v1423
          %v1426 = vsub.f32 %v1394, %v1424
          %v1427 = vcombine.low %v1399, %v1403
          %v1429 = vunpack.c.l.s4 1983009808
          %v1430 = vunpack.c.0.s8 %v1429
          %v1431 = vlaneseq
          %v1432 = vshrl.u32 %v1431, 7
          %v1433 = vsub.s32 %v1430, %v1432
          %v1434 = vrot.slane %v1427, %v1433
          %v1436 = vmul.f32 %v1300, %v1434
          %v1438 = vlaneseq
          %v1439 = vshrl.u32 %v1438, 7
          %v1440 = vsub.s32 0, %v1439
          %v1441 = vrot.slane %v1426, %v1440
          %v1442 = vlaneseq
          %v1443 = vshrl.u32 %v1442, 7
          %v1444 = vsub.s32 1, %v1443
          %v1445 = vrot.slane %v1426, %v1444
          %v1446 = vcombine.low %v1441, %v1445
          %v1448 = vunpack.c.l.s4 1983009808
          %v1449 = vunpack.c.0.s8 %v1448
          %v1450 = vlaneseq
          %v1451 = vshrl.u32 %v1450, 7
          %v1452 = vsub.s32 %v1449, %v1451
          %v1453 = vrot.slane %v1446, %v1452
          %v1455 = vadd.f32 %v1436, %v1453
          %vm1456 = vcmp.ge.f32.partialorder %v1455, 0.0
          %v1457 = vmul.f32 %v1455, 0.1
          %v1458 = vsel %vm1456, %v1455, %v1457
          %1459 = vst [vmem:[%s379] sm:$0xf] %v1458
        $region60: #{stretcher_forward.5} parent=39 // pred_fallthru
          _
        %s1460 = smul.u32 2, %s26
        %p1461 = scmp.lt.s32.totalorder %s1460, 7
        %s1462 = scalar_select %p1461, %s1460, 7
        %s1463 = smul.addr %s1462, 2
        %s1464 = scalar_lea.vmem %s5, %s1463
        // Predicated region
        $region61: #{stretcher_forward.5} parent=39 // pred_check
          %p1465 = pneg %p184
        $region62: #{stretcher_forward.5} parent=39 // pred_check_branch
          %1467 = sbr.rel (%p1465) target = $region64
        $region63: #{stretcher_forward.5} parent=39 // pred_region
          %s1468 = smul.u32 2, %s26
        $region64: #{stretcher_forward.5} parent=39 // pred_fallthru
          _
      $region40: #{stretcher_forward.5} parent=5 // pred_fallthru
        _
      %p1469 = scmp.le.s32.totalorder 2, %s17
      // Predicated region
      $region65: #{stretcher_forward.5} parent=5 // pred_check
        %p1470 = pneg %p1469
      $region66: #{stretcher_forward.5} parent=5 // pred_check_branch
        %1472 = sbr.rel (%p1470) target = $region68
      $region67: #{stretcher_forward.5} parent=5 // pred_region
        %s1473 = ssub.s32 %s17, 2
        // Predicated region
        $region69: #{stretcher_forward.5} parent=67 // pred_check
          %p1474 = pneg %p190
        $region70: #{stretcher_forward.5} parent=67 // pred_check_branch
          %1476 = sbr.rel (%p1474) target = $region72
        $region71: #{stretcher_forward.5} parent=67 // pred_region
          %s1477 = smul.u32 2, %s28
          %p1478 = scmp.lt.s32.totalorder %s1477, 7
          %s1479 = scalar_select %p1478, %s1477, 7
          %s1480 = smul.addr %s1479, 2
          %s1481 = scalar_lea.vmem %s5, %s1480
        $region72: #{stretcher_forward.5} parent=67 // pred_fallthru
          _
      $region68: #{stretcher_forward.5} parent=5 // pred_fallthru
        _
    $region6: #{stretcher_forward.5} parent=1 // loop_footer
      %s21 = sadd.s32 1, %s17
    $region7: #{stretcher_forward.5} parent=1 // loop_footer_branch
      %16 = sbr.rel target = $region3
    $region8: #{stretcher_forward.5} parent=1 // loop_exit
      _
    %1482 = vsyncpa [#allocation3], 1
    %s1483 = scalar_lea.sflag [#allocation3], 1
    %1484 = vsyncpa %s1483, 1
    %1485 = vsyncpa [#allocation5], 1
    %s1486 = scalar_lea.sflag [#allocation5], 1
    %1487 = vsyncpa %s1486, 1

</llo_original>
